<compile_context>
chip_gen: v6e
topology: v6e:2x2x1
jax: 0.10.0
libtpu: 0.0.40
codegen_flags: <defaults>
</compile_context>

<pallas_src>
import numpy as np
import jax
import jax.numpy as jnp
from jax.experimental import pallas as pl
from jax.experimental.pallas import tpu as pltpu

BN_EPS = 1e-5
LEAKY_SLOPE = 0.2
LANE = 128


def _round_up(x, m):
    return (x + m - 1) // m * m


def _leaky(h):
    # slope < 1  =>  max(h, slope*h) == LeakyReLU(h); one vmax instead of cmp+select.
    return jnp.maximum(h, LEAKY_SLOPE * h)


def _make_residual_gate_kernel(n_aux, n_rest_g, n_rest_r, ng_pad, dim_out):
    """Kernel factory, specialised on the static branch structure.

    n_aux               : number of auxiliary modalities (each its own bf16 input).
    n_rest_g / n_rest_r : (W, b) layers remaining per branch after the fused first layer.
    ng_pad              : 128-aligned output width of the gated branch's first layer
                          (the split point of the fused activation).
    dim_out             : true output width (used to drop padding when a branch has
                          no rest layers).
    """

    def kernel(*refs):
        it = iter(refs)
        main_ref = next(it)                               # [TB, dim_in]   f32  (tiled)
        aux_refs = [next(it) for _ in range(n_aux)]       # [TB, d_k]      bf16 (tiled)
        wf_refs = [next(it) for _ in range(n_aux + 1)]    # [d_k, Ngp+Nrp] bf16 (resident)
        bf_ref = next(it)                                 # [1, Ngp+Nrp]   f32  (resident)
        g_layers = [(next(it), next(it)) for _ in range(n_rest_g)]   # (W bf16, b f32)
        r_layers = [(next(it), next(it)) for _ in range(n_rest_r)]
        wg_ref = next(it)                                 # (2,) f32 SMEM
        out_ref = next(it)                                # [TB, dim_out] f32

        w0 = wg_ref[0]
        w1 = wg_ref[1]

        main = main_ref[...]                              # f32 copy for the epilogue

        # Fused first layer of BOTH branches, BN folded, concat removed:
        #   cat(mods) @ Wf == sum_k  mod_k @ Wf[rows_k]
        h0 = jnp.dot(main.astype(jnp.bfloat16), wf_refs[0][...],
                     preferred_element_type=jnp.float32)
        for a_ref, w_ref in zip(aux_refs, wf_refs[1:]):
            h0 = h0 + jnp.dot(a_ref[...], w_ref[...],
                              preferred_element_type=jnp.float32)
        h0 = h0 + bf_ref[...]

        # ng_pad is a multiple of 128 -> both slices are lane-aligned.
        hg = h0[:, :ng_pad]
        hr = h0[:, ng_pad:]

        def run_rest(h, layers):
            if not layers:
                # The fused first layer was the final Linear; drop padding columns.
                return h[:, :dim_out]
            h = _leaky(h)          # fused first layer was a hidden layer
            n = len(layers)
            for idx, (w_ref, b_ref) in enumerate(layers):
                h = jnp.dot(h.astype(jnp.bfloat16), w_ref[...],
                            preferred_element_type=jnp.float32) + b_ref[...]
                if idx < n - 1:    # every layer but the final Linear is hidden
                    h = _leaky(h)
            return h

        f1 = run_rest(hg, g_layers)      # gated branch output    [TB, dim_out]
        f2 = run_rest(hr, r_layers)      # residual branch output [TB, dim_out]

        # Epilogue in f32 (v5e-safe).
        out_ref[...] = jax.nn.sigmoid(f1) * main * w0 + f2 * w1

    return kernel


def prepare_params(params, modality_dims):
    """One-time parameter prep:
      * fold eval-mode BatchNorm into the first Linear of each branch,
      * pad each branch's first-layer output width to a multiple of 128 with zero
        columns (zero rows added to the next layer) -> lane-aligned in-kernel split,
      * fuse the two first layers along the output axis (one wide MXU pass),
      * split the fused weight row-wise per modality (removes both concats),
      * cast matmul weights to bfloat16 (biases stay f32)."""

    def fold_bn(branch):
        gamma, beta, mean, var = branch["bn"]
        s = gamma * jax.lax.rsqrt(var + BN_EPS)        # [1, dim_inner]
        shift = beta - mean * s                        # [1, dim_inner]
        layers = list(branch["hidden"]) + [branch["final"]]
        w0, b0 = layers[0]
        layers[0] = (w0 * s.reshape(-1, 1), b0 + shift @ w0)
        return layers

    def pad_cols(w, b, to):
        pad = to - w.shape[1]
        if pad:
            w = jnp.pad(w, ((0, 0), (0, pad)))
            b = jnp.pad(b, ((0, 0), (0, pad)))
        return w, b

    def pad_rows(w, to):
        pad = to - w.shape[0]
        return jnp.pad(w, ((0, pad), (0, 0))) if pad else w

    dim_out = int(params["gated"]["final"][0].shape[1])

    g_layers = fold_bn(params["gated"])
    r_layers = fold_bn(params["res"])

    (wg0, bg0), (wr0, br0) = g_layers[0], r_layers[0]
    ng_pad = _round_up(wg0.shape[1], LANE)
    nr_pad = _round_up(wr0.shape[1], LANE)
    wg0, bg0 = pad_cols(wg0, bg0, ng_pad)
    wr0, br0 = pad_cols(wr0, br0, nr_pad)

    wf = jnp.concatenate([wg0, wr0], axis=1)           # [dim_inner, Ngp+Nrp]
    bf = jnp.concatenate([bg0, br0], axis=1)           # [1, Ngp+Nrp]

    # Row-split the fused weight per modality (main first) -> no activation concat.
    assert sum(modality_dims) == wf.shape[0]
    wf_parts, off = [], 0
    for d in modality_dims:
        wf_parts.append(wf[off:off + d].astype(jnp.bfloat16))
        off += d

    g_rest = list(g_layers[1:])
    r_rest = list(r_layers[1:])
    if g_rest:
        w, b = g_rest[0]
        g_rest[0] = (pad_rows(w, ng_pad), b)
    if r_rest:
        w, b = r_rest[0]
        r_rest[0] = (pad_rows(w, nr_pad), b)

    def cast(layers):
        return [(w.astype(jnp.bfloat16), b.astype(jnp.float32)) for w, b in layers]

    return {
        "modality_dims": tuple(int(d) for d in modality_dims),
        "wf_parts": wf_parts,
        "bf": bf.astype(jnp.float32),
        "ng_pad": int(ng_pad),
        "nr_pad": int(nr_pad),
        "g_rest": cast(g_rest),
        "r_rest": cast(r_rest),
        "dim_out": dim_out,
        "weight_gate": params["weight_gate"].astype(jnp.float32),
    }


def residual_gate_forward(prep, modalities, *, tile_b=512):
    """Wrapper: per-modality inputs go straight to the kernel (no concat, no pad);
    the batch axis is tiled with an implicit (masked) edge block."""
    assert len(modalities) > 1
    main = modalities[0]
    B, dim_in = main.shape
    mod_dims = tuple(m.shape[1] for m in modalities)
    assert mod_dims == prep["modality_dims"]
    dim_out = prep["dim_out"]
    # sigmoid(f1) * modal_main requires matching feature widths.
    assert dim_out == dim_in, "ResidualGate needs dim_out == dim_in"

    # Auxiliary modalities feed only the bf16 MXU pass -> ship them as bf16.
    # (In production, have the upstream op emit bf16 so this cast disappears.)
    aux_bf16 = [m.astype(jnp.bfloat16) for m in modalities[1:]]

    # Batch tile: big (kernel is HBM/step-overhead bound), multiple of 8, and at
    # least 2 grid steps when B allows it so the "parallel" batch axis can split
    # across both v7x TensorCores.  No explicit padding: grid = cdiv(B, tile_b);
    # Pallas masks the out-of-bounds rows of the last block.
    if B <= 8:
        tile_b = B
    else:
        tile_b = min(tile_b, _round_up(B, 8), _round_up(pl.cdiv(B, 2), 8))
        tile_b = max(8, _round_up(tile_b, 8))
    grid = (pl.cdiv(B, tile_b),)

    def row_spec(d):
        # Tiled over batch; last dim = full feature width.
        return pl.BlockSpec((tile_b, d), lambda i: (i, 0))

    weights = list(prep["wf_parts"]) + [prep["bf"]]
    for w, b in prep["g_rest"] + prep["r_rest"]:
        weights += [w, b]

    # VMEM budget: resident weights + pipelined row tiles + f32 working set for the
    # fused activation.  Clamped to 64 MiB so the same budget fits a v7x TensorCore.
    resident = sum(int(w.size) * w.dtype.itemsize for w in weights)
    tile_io = tile_b * (dim_in * 4 + sum(mod_dims[1:]) * 2 + dim_out * 4)
    work = tile_b * (prep["ng_pad"] + prep["nr_pad"]) * 4 * 4
    vmem_limit = int(min(max(2 * resident + 3 * tile_io + work + (4 << 20), 32 << 20),
                         64 << 20))

    kernel = _make_residual_gate_kernel(
        len(modalities) - 1, len(prep["g_rest"]), len(prep["r_rest"]),
        prep["ng_pad"], dim_out)

    def run(single_buffer_weights):
        def const_spec(shape):
            idx = lambda i: (0,) * len(shape)
            if single_buffer_weights:
                # Resident weights are revisited, never re-DMAed: one buffer suffices.
                return pl.BlockSpec(shape, idx, pipeline_mode=pl.Buffered(1))
            return pl.BlockSpec(shape, idx)

        in_specs = [row_spec(dim_in)]
        in_specs += [row_spec(d) for d in mod_dims[1:]]
        in_specs += [const_spec(w.shape) for w in weights]
        in_specs += [pl.BlockSpec(memory_space=pltpu.MemorySpace.SMEM)]

        out = pl.pallas_call(
            kernel,
            out_shape=jax.ShapeDtypeStruct((B, dim_out), jnp.float32),
            grid=grid,
            in_specs=in_specs,
            out_specs=row_spec(dim_out),
            compiler_params=pltpu.CompilerParams(
                dimension_semantics=("parallel",),
                vmem_limit_bytes=vmem_limit),
        )(main, *aux_bf16, *weights, prep["weight_gate"])
        return jax.block_until_ready(out)

    try:
        return run(True)
    except Exception:
        # pipeline_mode=pl.Buffered(1) not supported by this jax build: fall back to
        # default double-buffered resident weights (correctness unchanged).
        return run(False)


def init_params(key, dim_in, dim_out, residual_dim, layers_gated, layers_residual,
                init_weight=(1.0, 1.0)):
    """Deterministic synthetic parameter init matching the nn.Module shapes.
    Linear weights stored as [in_features, out_features] (i.e. PyTorch W.T)."""
    dim_inner = dim_in + residual_dim
    keys = iter(jax.random.split(key, 128))

    def bn(d):
        return [
            1.0 + 0.1 * jax.random.normal(next(keys), (1, d), jnp.float32),           # gamma
            0.1 * jax.random.normal(next(keys), (1, d), jnp.float32),                 # beta
            0.1 * jax.random.normal(next(keys), (1, d), jnp.float32),                 # running mean
            jnp.abs(1.0 + 0.1 * jax.random.normal(next(keys), (1, d), jnp.float32)),  # running var
        ]

    def linear(din, dout):
        scale = 1.0 / np.sqrt(din)
        w = jax.random.uniform(next(keys), (din, dout), jnp.float32, -scale, scale)
        b = jax.random.uniform(next(keys), (1, dout), jnp.float32, -scale, scale)
        return (w, b)

    def branch(n_layers):
        return {
            "bn": bn(dim_inner),
            "hidden": [linear(dim_inner, dim_inner) for _ in range(n_layers - 1)],
            "final": linear(dim_inner, dim_out),
        }

    return {
        "weight_gate": jnp.asarray(init_weight, jnp.float32),
        "gated": branch(layers_gated),
        "res": branch(layers_residual),
    }


def residual_gate_reference(params, modalities):
    """Pure-JAX f32 reference (mirrors the PyTorch module in eval mode)."""
    main = modalities[0]
    aux = jnp.concatenate(modalities[1:], axis=1)
    x = jnp.concatenate([main, aux], axis=1)

    def branch(p):
        gamma, beta, mean, var = p["bn"]
        h = (x - mean) / jnp.sqrt(var + BN_EPS) * gamma + beta
        for w, b in p["hidden"]:
            h = h @ w + b
            h = jnp.where(h >= 0, h, LEAKY_SLOPE * h)
        w, b = p["final"]
        return h @ w + b

    f1 = branch(params["gated"])
    f2 = branch(params["res"])
    wg = params["weight_gate"]
    return jax.nn.sigmoid(f1) * main * wg[0] + f2 * wg[1]


if __name__ == "__main__":
    # Small config (dim_in == dim_out required by sigmoid(f1) * modal_main).
    B, dim_in, residual_dim, dim_out = 256, 32, 32, 32
    layers_gated, layers_residual = 2, 3
    dropout = 0.1  # eval mode -> identity

    key = jax.random.PRNGKey(0)
    k_p, k1, k2, k3 = jax.random.split(key, 4)
    params = init_params(k_p, dim_in, dim_out, residual_dim, layers_gated, layers_residual)

    modality_dims = (dim_in, residual_dim // 2, residual_dim // 2)
    prep = prepare_params(params, modality_dims)

    def make_mods(b, ks):
        return [jax.random.normal(k, (b, d), jnp.float32)
                for k, d in zip(ks, modality_dims)]

    # Case 1: B divides into tiles exactly (2 pipelined grid steps).
    mods = make_mods(B, (k1, k2, k3))
    out = residual_gate_forward(prep, mods)
    ref = residual_gate_reference(params, mods)
    assert out.shape == (B, dim_out)
    # bf16 MXU inputs with f32 accumulation vs. f32 reference -> loose-ish tolerance.
    np.testing.assert_allclose(np.asarray(out), np.asarray(ref), rtol=2e-2, atol=5e-2)

    # Case 2: B not divisible by the tile (exercises the masked edge block).
    k4, k5, k6 = jax.random.split(k_p, 3)
    mods2 = make_mods(200, (k4, k5, k6))
    out2 = residual_gate_forward(prep, mods2)
    ref2 = residual_gate_reference(params, mods2)
    assert out2.shape == (200, dim_out)
    np.testing.assert_allclose(np.asarray(out2), np.asarray(ref2), rtol=2e-2, atol=5e-2)

    print("KERNEL_OK")
</pallas_src>

<mosaic_0001>
module attributes {stable_mosaic.version = 11 : i64} {
  func.func @kernel(%arg0: i32, %arg1: memref<128x32xf32, #tpu.memory_space<vmem>>, %arg2: memref<128x16xbf16, #tpu.memory_space<vmem>>, %arg3: memref<128x16xbf16, #tpu.memory_space<vmem>>, %arg4: memref<32x256xbf16, #tpu.memory_space<vmem>>, %arg5: memref<16x256xbf16, #tpu.memory_space<vmem>>, %arg6: memref<16x256xbf16, #tpu.memory_space<vmem>>, %arg7: memref<1x256xf32, #tpu.memory_space<vmem>>, %arg8: memref<128x32xbf16, #tpu.memory_space<vmem>>, %arg9: memref<1x32xf32, #tpu.memory_space<vmem>>, %arg10: memref<128x64xbf16, #tpu.memory_space<vmem>>, %arg11: memref<1x64xf32, #tpu.memory_space<vmem>>, %arg12: memref<64x32xbf16, #tpu.memory_space<vmem>>, %arg13: memref<1x32xf32, #tpu.memory_space<vmem>>, %arg14: memref<2xf32, #tpu.memory_space<smem>>, %arg15: memref<128x32xf32, #tpu.memory_space<vmem>>) attributes {dimension_semantics = [#tpu.dimension_semantics<parallel>], iteration_bounds = array<i64: 2>, scalar_prefetch = 0 : i64, scratch_operands = 0 : i64, tpu.core_type = #tpu.core_type<tc>, window_params = [{transform_indices = @transform_0, window_bounds = array<i64: 128, 32>}, {transform_indices = @transform_1, window_bounds = array<i64: 128, 16>}, {transform_indices = @transform_2, window_bounds = array<i64: 128, 16>}, {pipeline_mode = #tpu.pipeline_mode<synchronous>, transform_indices = @transform_3, window_bounds = array<i64: 32, 256>}, {pipeline_mode = #tpu.pipeline_mode<synchronous>, transform_indices = @transform_4, window_bounds = array<i64: 16, 256>}, {pipeline_mode = #tpu.pipeline_mode<synchronous>, transform_indices = @transform_5, window_bounds = array<i64: 16, 256>}, {pipeline_mode = #tpu.pipeline_mode<synchronous>, transform_indices = @transform_6, window_bounds = array<i64: 1, 256>}, {pipeline_mode = #tpu.pipeline_mode<synchronous>, transform_indices = @transform_7, window_bounds = array<i64: 128, 32>}, {pipeline_mode = #tpu.pipeline_mode<synchronous>, transform_indices = @transform_8, window_bounds = array<i64: 1, 32>}, {pipeline_mode = #tpu.pipeline_mode<synchronous>, transform_indices = @transform_9, window_bounds = array<i64: 128, 64>}, {pipeline_mode = #tpu.pipeline_mode<synchronous>, transform_indices = @transform_10, window_bounds = array<i64: 1, 64>}, {pipeline_mode = #tpu.pipeline_mode<synchronous>, transform_indices = @transform_11, window_bounds = array<i64: 64, 32>}, {pipeline_mode = #tpu.pipeline_mode<synchronous>, transform_indices = @transform_12, window_bounds = array<i64: 1, 32>}, {transform_indices = @transform_13, window_bounds = array<i64: 2>}, {transform_indices = @transform_14, window_bounds = array<i64: 128, 32>}]} {
    %c0 = arith.constant 0 : index
    %0 = memref.load %arg14[%c0] : memref<2xf32, #tpu.memory_space<smem>>
    %c1 = arith.constant 1 : index
    %1 = memref.load %arg14[%c1] : memref<2xf32, #tpu.memory_space<smem>>
    %c0_0 = arith.constant 0 : index
    %c0_1 = arith.constant 0 : index
    %2 = vector.load %arg1[%c0_0, %c0_1] : memref<128x32xf32, #tpu.memory_space<vmem>>, vector<128x32xf32>
    %3 = arith.truncf %2 : vector<128x32xf32> to vector<128x32xbf16>
    %c0_2 = arith.constant 0 : index
    %c0_3 = arith.constant 0 : index
    %4 = vector.load %arg4[%c0_2, %c0_3] : memref<32x256xbf16, #tpu.memory_space<vmem>>, vector<32x256xbf16>
    %cst = arith.constant dense<0.000000e+00> : vector<128x256xf32>
    %5 = tpu.matmul %3, %4, %cst {dimension_numbers = #tpu.dot_dimension_numbers<[1], [0], [0], [1], [0, 0, 1, 1], [], []>} : vector<128x32xbf16>, vector<32x256xbf16>, vector<128x256xf32> -> vector<128x256xf32>
    %c0_4 = arith.constant 0 : index
    %c0_5 = arith.constant 0 : index
    %6 = vector.load %arg2[%c0_4, %c0_5] : memref<128x16xbf16, #tpu.memory_space<vmem>>, vector<128x16xbf16>
    %c0_6 = arith.constant 0 : index
    %c0_7 = arith.constant 0 : index
    %7 = vector.load %arg5[%c0_6, %c0_7] : memref<16x256xbf16, #tpu.memory_space<vmem>>, vector<16x256xbf16>
    %cst_8 = arith.constant dense<0.000000e+00> : vector<128x256xf32>
    %8 = tpu.matmul %6, %7, %cst_8 {dimension_numbers = #tpu.dot_dimension_numbers<[1], [0], [0], [1], [0, 0, 1, 1], [], []>} : vector<128x16xbf16>, vector<16x256xbf16>, vector<128x256xf32> -> vector<128x256xf32>
    %9 = arith.addf %5, %8 : vector<128x256xf32>
    %c0_9 = arith.constant 0 : index
    %c0_10 = arith.constant 0 : index
    %10 = vector.load %arg3[%c0_9, %c0_10] : memref<128x16xbf16, #tpu.memory_space<vmem>>, vector<128x16xbf16>
    %c0_11 = arith.constant 0 : index
    %c0_12 = arith.constant 0 : index
    %11 = vector.load %arg6[%c0_11, %c0_12] : memref<16x256xbf16, #tpu.memory_space<vmem>>, vector<16x256xbf16>
    %cst_13 = arith.constant dense<0.000000e+00> : vector<128x256xf32>
    %12 = tpu.matmul %10, %11, %cst_13 {dimension_numbers = #tpu.dot_dimension_numbers<[1], [0], [0], [1], [0, 0, 1, 1], [], []>} : vector<128x16xbf16>, vector<16x256xbf16>, vector<128x256xf32> -> vector<128x256xf32>
    %13 = arith.addf %9, %12 : vector<128x256xf32>
    %c0_14 = arith.constant 0 : index
    %c0_15 = arith.constant 0 : index
    %14 = vector.load %arg7[%c0_14, %c0_15] : memref<1x256xf32, #tpu.memory_space<vmem>>, vector<1x256xf32>
    %15 = vector.broadcast %14 : vector<1x256xf32> to vector<128x256xf32>
    %16 = arith.addf %13, %15 : vector<128x256xf32>
    %17 = vector.extract_strided_slice %16 {offsets = [0, 0], sizes = [128, 128], strides = [1, 1]} : vector<128x256xf32> to vector<128x128xf32>
    %18 = vector.extract_strided_slice %16 {offsets = [0, 128], sizes = [128, 128], strides = [1, 1]} : vector<128x256xf32> to vector<128x128xf32>
    %cst_16 = arith.constant 2.000000e-01 : f32
    %19 = vector.broadcast %cst_16 : f32 to vector<128x128xf32>
    %20 = arith.mulf %19, %17 : vector<128x128xf32>
    %21 = arith.maximumf %17, %20 : vector<128x128xf32>
    %22 = arith.truncf %21 : vector<128x128xf32> to vector<128x128xbf16>
    %c0_17 = arith.constant 0 : index
    %c0_18 = arith.constant 0 : index
    %23 = vector.load %arg8[%c0_17, %c0_18] : memref<128x32xbf16, #tpu.memory_space<vmem>>, vector<128x32xbf16>
    %cst_19 = arith.constant dense<0.000000e+00> : vector<128x32xf32>
    %24 = tpu.matmul %22, %23, %cst_19 {dimension_numbers = #tpu.dot_dimension_numbers<[1], [0], [0], [1], [0, 0, 1, 1], [], []>} : vector<128x128xbf16>, vector<128x32xbf16>, vector<128x32xf32> -> vector<128x32xf32>
    %c0_20 = arith.constant 0 : index
    %c0_21 = arith.constant 0 : index
    %25 = vector.load %arg9[%c0_20, %c0_21] : memref<1x32xf32, #tpu.memory_space<vmem>>, vector<1x32xf32>
    %26 = vector.broadcast %25 : vector<1x32xf32> to vector<128x32xf32>
    %27 = arith.addf %24, %26 : vector<128x32xf32>
    %cst_22 = arith.constant 2.000000e-01 : f32
    %28 = vector.broadcast %cst_22 : f32 to vector<128x128xf32>
    %29 = arith.mulf %28, %18 : vector<128x128xf32>
    %30 = arith.maximumf %18, %29 : vector<128x128xf32>
    %31 = arith.truncf %30 : vector<128x128xf32> to vector<128x128xbf16>
    %c0_23 = arith.constant 0 : index
    %c0_24 = arith.constant 0 : index
    %32 = vector.load %arg10[%c0_23, %c0_24] : memref<128x64xbf16, #tpu.memory_space<vmem>>, vector<128x64xbf16>
    %cst_25 = arith.constant dense<0.000000e+00> : vector<128x64xf32>
    %33 = tpu.matmul %31, %32, %cst_25 {dimension_numbers = #tpu.dot_dimension_numbers<[1], [0], [0], [1], [0, 0, 1, 1], [], []>} : vector<128x128xbf16>, vector<128x64xbf16>, vector<128x64xf32> -> vector<128x64xf32>
    %c0_26 = arith.constant 0 : index
    %c0_27 = arith.constant 0 : index
    %34 = vector.load %arg11[%c0_26, %c0_27] : memref<1x64xf32, #tpu.memory_space<vmem>>, vector<1x64xf32>
    %35 = vector.broadcast %34 : vector<1x64xf32> to vector<128x64xf32>
    %36 = arith.addf %33, %35 : vector<128x64xf32>
    %cst_28 = arith.constant 2.000000e-01 : f32
    %37 = vector.broadcast %cst_28 : f32 to vector<128x64xf32>
    %38 = arith.mulf %37, %36 : vector<128x64xf32>
    %39 = arith.maximumf %36, %38 : vector<128x64xf32>
    %40 = arith.truncf %39 : vector<128x64xf32> to vector<128x64xbf16>
    %c0_29 = arith.constant 0 : index
    %c0_30 = arith.constant 0 : index
    %41 = vector.load %arg12[%c0_29, %c0_30] : memref<64x32xbf16, #tpu.memory_space<vmem>>, vector<64x32xbf16>
    %cst_31 = arith.constant dense<0.000000e+00> : vector<128x32xf32>
    %42 = tpu.matmul %40, %41, %cst_31 {dimension_numbers = #tpu.dot_dimension_numbers<[1], [0], [0], [1], [0, 0, 1, 1], [], []>} : vector<128x64xbf16>, vector<64x32xbf16>, vector<128x32xf32> -> vector<128x32xf32>
    %c0_32 = arith.constant 0 : index
    %c0_33 = arith.constant 0 : index
    %43 = vector.load %arg13[%c0_32, %c0_33] : memref<1x32xf32, #tpu.memory_space<vmem>>, vector<1x32xf32>
    %44 = vector.broadcast %43 : vector<1x32xf32> to vector<128x32xf32>
    %45 = arith.addf %42, %44 : vector<128x32xf32>
    %46 = arith.negf %27 : vector<128x32xf32>
    %47 = math.exp %46 : vector<128x32xf32>
    %cst_34 = arith.constant 1.000000e+00 : f32
    %48 = vector.broadcast %cst_34 : f32 to vector<128x32xf32>
    %49 = arith.addf %48, %47 : vector<128x32xf32>
    %50 = arith.divf %48, %49 : vector<128x32xf32>
    %51 = arith.mulf %50, %2 : vector<128x32xf32>
    %52 = vector.broadcast %0 : f32 to vector<128x32xf32>
    %53 = arith.mulf %51, %52 : vector<128x32xf32>
    %54 = vector.broadcast %1 : f32 to vector<128x32xf32>
    %55 = arith.mulf %45, %54 : vector<128x32xf32>
    %56 = arith.addf %53, %55 : vector<128x32xf32>
    %c0_35 = arith.constant 0 : index
    %c0_36 = arith.constant 0 : index
    %57 = vector.load %arg15[%c0_35, %c0_36] : memref<128x32xf32, #tpu.memory_space<vmem>>, vector<128x32xf32>
    tpu.vector_store %arg15[%c0_35, %c0_36], %56 {strides = array<i32>} : memref<128x32xf32, #tpu.memory_space<vmem>>, vector<128x32xf32>,
    return
  }
  func.func @transform_0(%arg0: i32) -> (i32, i32) {
    %c0_i32 = arith.constant 0 : i32
    %c0_i32_0 = arith.constant 0 : i32
    return %arg0, %c0_i32 : i32, i32
  }
  func.func @transform_1(%arg0: i32) -> (i32, i32) {
    %c0_i32 = arith.constant 0 : i32
    %c0_i32_0 = arith.constant 0 : i32
    return %arg0, %c0_i32 : i32, i32
  }
  func.func @transform_2(%arg0: i32) -> (i32, i32) {
    %c0_i32 = arith.constant 0 : i32
    %c0_i32_0 = arith.constant 0 : i32
    return %arg0, %c0_i32 : i32, i32
  }
  func.func @transform_3(%arg0: i32) -> (i32, i32) {
    %c0_i32 = arith.constant 0 : i32
    %c0_i32_0 = arith.constant 0 : i32
    %c0_i32_1 = arith.constant 0 : i32
    return %c0_i32, %c0_i32_0 : i32, i32
  }
  func.func @transform_4(%arg0: i32) -> (i32, i32) {
    %c0_i32 = arith.constant 0 : i32
    %c0_i32_0 = arith.constant 0 : i32
    %c0_i32_1 = arith.constant 0 : i32
    return %c0_i32, %c0_i32_0 : i32, i32
  }
  func.func @transform_5(%arg0: i32) -> (i32, i32) {
    %c0_i32 = arith.constant 0 : i32
    %c0_i32_0 = arith.constant 0 : i32
    %c0_i32_1 = arith.constant 0 : i32
    return %c0_i32, %c0_i32_0 : i32, i32
  }
  func.func @transform_6(%arg0: i32) -> (i32, i32) {
    %c0_i32 = arith.constant 0 : i32
    %c0_i32_0 = arith.constant 0 : i32
    %c0_i32_1 = arith.constant 0 : i32
    return %c0_i32, %c0_i32_0 : i32, i32
  }
  func.func @transform_7(%arg0: i32) -> (i32, i32) {
    %c0_i32 = arith.constant 0 : i32
    %c0_i32_0 = arith.constant 0 : i32
    %c0_i32_1 = arith.constant 0 : i32
    return %c0_i32, %c0_i32_0 : i32, i32
  }
  func.func @transform_8(%arg0: i32) -> (i32, i32) {
    %c0_i32 = arith.constant 0 : i32
    %c0_i32_0 = arith.constant 0 : i32
    %c0_i32_1 = arith.constant 0 : i32
    return %c0_i32, %c0_i32_0 : i32, i32
  }
  func.func @transform_9(%arg0: i32) -> (i32, i32) {
    %c0_i32 = arith.constant 0 : i32
    %c0_i32_0 = arith.constant 0 : i32
    %c0_i32_1 = arith.constant 0 : i32
    return %c0_i32, %c0_i32_0 : i32, i32
  }
  func.func @transform_10(%arg0: i32) -> (i32, i32) {
    %c0_i32 = arith.constant 0 : i32
    %c0_i32_0 = arith.constant 0 : i32
    %c0_i32_1 = arith.constant 0 : i32
    return %c0_i32, %c0_i32_0 : i32, i32
  }
  func.func @transform_11(%arg0: i32) -> (i32, i32) {
    %c0_i32 = arith.constant 0 : i32
    %c0_i32_0 = arith.constant 0 : i32
    %c0_i32_1 = arith.constant 0 : i32
    return %c0_i32, %c0_i32_0 : i32, i32
  }
  func.func @transform_12(%arg0: i32) -> (i32, i32) {
    %c0_i32 = arith.constant 0 : i32
    %c0_i32_0 = arith.constant 0 : i32
    %c0_i32_1 = arith.constant 0 : i32
    return %c0_i32, %c0_i32_0 : i32, i32
  }
  func.func @transform_13(%arg0: i32) -> i32 {
    %c0_i32 = arith.constant 0 : i32
    %c0_i32_0 = arith.constant 0 : i32
    return %c0_i32 : i32
  }
  func.func @transform_14(%arg0: i32) -> (i32, i32) {
    %c0_i32 = arith.constant 0 : i32
    %c0_i32_0 = arith.constant 0 : i32
    return %arg0, %c0_i32 : i32, i32
  }
}

module attributes {stable_mosaic.version = 11 : i64} {
  func.func @kernel(%arg0: i32, %arg1: memref<128x32xf32, #tpu.memory_space<vmem>>, %arg2: memref<128x16xbf16, #tpu.memory_space<vmem>>, %arg3: memref<128x16xbf16, #tpu.memory_space<vmem>>, %arg4: memref<32x256xbf16, #tpu.memory_space<vmem>>, %arg5: memref<16x256xbf16, #tpu.memory_space<vmem>>, %arg6: memref<16x256xbf16, #tpu.memory_space<vmem>>, %arg7: memref<1x256xf32, #tpu.memory_space<vmem>>, %arg8: memref<128x32xbf16, #tpu.memory_space<vmem>>, %arg9: memref<1x32xf32, #tpu.memory_space<vmem>>, %arg10: memref<128x64xbf16, #tpu.memory_space<vmem>>, %arg11: memref<1x64xf32, #tpu.memory_space<vmem>>, %arg12: memref<64x32xbf16, #tpu.memory_space<vmem>>, %arg13: memref<1x32xf32, #tpu.memory_space<vmem>>, %arg14: memref<2xf32, #tpu.memory_space<smem>>, %arg15: memref<128x32xf32, #tpu.memory_space<vmem>>) attributes {dimension_semantics = [#tpu.dimension_semantics<parallel>], iteration_bounds = array<i64: 2>, scalar_prefetch = 0 : i64, scratch_operands = 0 : i64, tpu.core_type = #tpu.core_type<tc>, window_params = [{transform_indices = @transform_0, window_bounds = array<i64: 128, 32>}, {transform_indices = @transform_1, window_bounds = array<i64: 128, 16>}, {transform_indices = @transform_2, window_bounds = array<i64: 128, 16>}, {pipeline_mode = #tpu.pipeline_mode<synchronous>, transform_indices = @transform_3, window_bounds = array<i64: 32, 256>}, {pipeline_mode = #tpu.pipeline_mode<synchronous>, transform_indices = @transform_4, window_bounds = array<i64: 16, 256>}, {pipeline_mode = #tpu.pipeline_mode<synchronous>, transform_indices = @transform_5, window_bounds = array<i64: 16, 256>}, {pipeline_mode = #tpu.pipeline_mode<synchronous>, transform_indices = @transform_6, window_bounds = array<i64: 1, 256>}, {pipeline_mode = #tpu.pipeline_mode<synchronous>, transform_indices = @transform_7, window_bounds = array<i64: 128, 32>}, {pipeline_mode = #tpu.pipeline_mode<synchronous>, transform_indices = @transform_8, window_bounds = array<i64: 1, 32>}, {pipeline_mode = #tpu.pipeline_mode<synchronous>, transform_indices = @transform_9, window_bounds = array<i64: 128, 64>}, {pipeline_mode = #tpu.pipeline_mode<synchronous>, transform_indices = @transform_10, window_bounds = array<i64: 1, 64>}, {pipeline_mode = #tpu.pipeline_mode<synchronous>, transform_indices = @transform_11, window_bounds = array<i64: 64, 32>}, {pipeline_mode = #tpu.pipeline_mode<synchronous>, transform_indices = @transform_12, window_bounds = array<i64: 1, 32>}, {transform_indices = @transform_13, window_bounds = array<i64: 2>}, {transform_indices = @transform_14, window_bounds = array<i64: 128, 32>}]} {
    %c0 = arith.constant 0 : index
    %0 = memref.load %arg14[%c0] : memref<2xf32, #tpu.memory_space<smem>>
    %c1 = arith.constant 1 : index
    %1 = memref.load %arg14[%c1] : memref<2xf32, #tpu.memory_space<smem>>
    %c0_0 = arith.constant 0 : index
    %c0_1 = arith.constant 0 : index
    %2 = vector.load %arg1[%c0_0, %c0_1] : memref<128x32xf32, #tpu.memory_space<vmem>>, vector<128x32xf32>
    %3 = arith.truncf %2 : vector<128x32xf32> to vector<128x32xbf16>
    %c0_2 = arith.constant 0 : index
    %c0_3 = arith.constant 0 : index
    %4 = vector.load %arg4[%c0_2, %c0_3] : memref<32x256xbf16, #tpu.memory_space<vmem>>, vector<32x256xbf16>
    %cst = arith.constant dense<0.000000e+00> : vector<128x256xf32>
    %5 = tpu.matmul %3, %4, %cst {dimension_numbers = #tpu.dot_dimension_numbers<[1], [0], [0], [1], [0, 0, 1, 1], [], []>} : vector<128x32xbf16>, vector<32x256xbf16>, vector<128x256xf32> -> vector<128x256xf32>
    %c0_4 = arith.constant 0 : index
    %c0_5 = arith.constant 0 : index
    %6 = vector.load %arg2[%c0_4, %c0_5] : memref<128x16xbf16, #tpu.memory_space<vmem>>, vector<128x16xbf16>
    %c0_6 = arith.constant 0 : index
    %c0_7 = arith.constant 0 : index
    %7 = vector.load %arg5[%c0_6, %c0_7] : memref<16x256xbf16, #tpu.memory_space<vmem>>, vector<16x256xbf16>
    %cst_8 = arith.constant dense<0.000000e+00> : vector<128x256xf32>
    %8 = tpu.matmul %6, %7, %cst_8 {dimension_numbers = #tpu.dot_dimension_numbers<[1], [0], [0], [1], [0, 0, 1, 1], [], []>} : vector<128x16xbf16>, vector<16x256xbf16>, vector<128x256xf32> -> vector<128x256xf32>
    %9 = arith.addf %5, %8 : vector<128x256xf32>
    %c0_9 = arith.constant 0 : index
    %c0_10 = arith.constant 0 : index
    %10 = vector.load %arg3[%c0_9, %c0_10] : memref<128x16xbf16, #tpu.memory_space<vmem>>, vector<128x16xbf16>
    %c0_11 = arith.constant 0 : index
    %c0_12 = arith.constant 0 : index
    %11 = vector.load %arg6[%c0_11, %c0_12] : memref<16x256xbf16, #tpu.memory_space<vmem>>, vector<16x256xbf16>
    %cst_13 = arith.constant dense<0.000000e+00> : vector<128x256xf32>
    %12 = tpu.matmul %10, %11, %cst_13 {dimension_numbers = #tpu.dot_dimension_numbers<[1], [0], [0], [1], [0, 0, 1, 1], [], []>} : vector<128x16xbf16>, vector<16x256xbf16>, vector<128x256xf32> -> vector<128x256xf32>
    %13 = arith.addf %9, %12 : vector<128x256xf32>
    %c0_14 = arith.constant 0 : index
    %c0_15 = arith.constant 0 : index
    %14 = vector.load %arg7[%c0_14, %c0_15] : memref<1x256xf32, #tpu.memory_space<vmem>>, vector<1x256xf32>
    %15 = vector.broadcast %14 : vector<1x256xf32> to vector<128x256xf32>
    %16 = arith.addf %13, %15 : vector<128x256xf32>
    %17 = vector.extract_strided_slice %16 {offsets = [0, 0], sizes = [128, 128], strides = [1, 1]} : vector<128x256xf32> to vector<128x128xf32>
    %18 = vector.extract_strided_slice %16 {offsets = [0, 128], sizes = [128, 128], strides = [1, 1]} : vector<128x256xf32> to vector<128x128xf32>
    %cst_16 = arith.constant 2.000000e-01 : f32
    %19 = vector.broadcast %cst_16 : f32 to vector<128x128xf32>
    %20 = arith.mulf %19, %17 : vector<128x128xf32>
    %21 = arith.maximumf %17, %20 : vector<128x128xf32>
    %22 = arith.truncf %21 : vector<128x128xf32> to vector<128x128xbf16>
    %c0_17 = arith.constant 0 : index
    %c0_18 = arith.constant 0 : index
    %23 = vector.load %arg8[%c0_17, %c0_18] : memref<128x32xbf16, #tpu.memory_space<vmem>>, vector<128x32xbf16>
    %cst_19 = arith.constant dense<0.000000e+00> : vector<128x32xf32>
    %24 = tpu.matmul %22, %23, %cst_19 {dimension_numbers = #tpu.dot_dimension_numbers<[1], [0], [0], [1], [0, 0, 1, 1], [], []>} : vector<128x128xbf16>, vector<128x32xbf16>, vector<128x32xf32> -> vector<128x32xf32>
    %c0_20 = arith.constant 0 : index
    %c0_21 = arith.constant 0 : index
    %25 = vector.load %arg9[%c0_20, %c0_21] : memref<1x32xf32, #tpu.memory_space<vmem>>, vector<1x32xf32>
    %26 = vector.broadcast %25 : vector<1x32xf32> to vector<128x32xf32>
    %27 = arith.addf %24, %26 : vector<128x32xf32>
    %cst_22 = arith.constant 2.000000e-01 : f32
    %28 = vector.broadcast %cst_22 : f32 to vector<128x128xf32>
    %29 = arith.mulf %28, %18 : vector<128x128xf32>
    %30 = arith.maximumf %18, %29 : vector<128x128xf32>
    %31 = arith.truncf %30 : vector<128x128xf32> to vector<128x128xbf16>
    %c0_23 = arith.constant 0 : index
    %c0_24 = arith.constant 0 : index
    %32 = vector.load %arg10[%c0_23, %c0_24] : memref<128x64xbf16, #tpu.memory_space<vmem>>, vector<128x64xbf16>
    %cst_25 = arith.constant dense<0.000000e+00> : vector<128x64xf32>
    %33 = tpu.matmul %31, %32, %cst_25 {dimension_numbers = #tpu.dot_dimension_numbers<[1], [0], [0], [1], [0, 0, 1, 1], [], []>} : vector<128x128xbf16>, vector<128x64xbf16>, vector<128x64xf32> -> vector<128x64xf32>
    %c0_26 = arith.constant 0 : index
    %c0_27 = arith.constant 0 : index
    %34 = vector.load %arg11[%c0_26, %c0_27] : memref<1x64xf32, #tpu.memory_space<vmem>>, vector<1x64xf32>
    %35 = vector.broadcast %34 : vector<1x64xf32> to vector<128x64xf32>
    %36 = arith.addf %33, %35 : vector<128x64xf32>
    %cst_28 = arith.constant 2.000000e-01 : f32
    %37 = vector.broadcast %cst_28 : f32 to vector<128x64xf32>
    %38 = arith.mulf %37, %36 : vector<128x64xf32>
    %39 = arith.maximumf %36, %38 : vector<128x64xf32>
    %40 = arith.truncf %39 : vector<128x64xf32> to vector<128x64xbf16>
    %c0_29 = arith.constant 0 : index
    %c0_30 = arith.constant 0 : index
    %41 = vector.load %arg12[%c0_29, %c0_30] : memref<64x32xbf16, #tpu.memory_space<vmem>>, vector<64x32xbf16>
    %cst_31 = arith.constant dense<0.000000e+00> : vector<128x32xf32>
    %42 = tpu.matmul %40, %41, %cst_31 {dimension_numbers = #tpu.dot_dimension_numbers<[1], [0], [0], [1], [0, 0, 1, 1], [], []>} : vector<128x64xbf16>, vector<64x32xbf16>, vector<128x32xf32> -> vector<128x32xf32>
    %c0_32 = arith.constant 0 : index
    %c0_33 = arith.constant 0 : index
    %43 = vector.load %arg13[%c0_32, %c0_33] : memref<1x32xf32, #tpu.memory_space<vmem>>, vector<1x32xf32>
    %44 = vector.broadcast %43 : vector<1x32xf32> to vector<128x32xf32>
    %45 = arith.addf %42, %44 : vector<128x32xf32>
    %46 = arith.negf %27 : vector<128x32xf32>
    %47 = math.exp %46 : vector<128x32xf32>
    %cst_34 = arith.constant 1.000000e+00 : f32
    %48 = vector.broadcast %cst_34 : f32 to vector<128x32xf32>
    %49 = arith.addf %48, %47 : vector<128x32xf32>
    %50 = arith.divf %48, %49 : vector<128x32xf32>
    %51 = arith.mulf %50, %2 : vector<128x32xf32>
    %52 = vector.broadcast %0 : f32 to vector<128x32xf32>
    %53 = arith.mulf %51, %52 : vector<128x32xf32>
    %54 = vector.broadcast %1 : f32 to vector<128x32xf32>
    %55 = arith.mulf %45, %54 : vector<128x32xf32>
    %56 = arith.addf %53, %55 : vector<128x32xf32>
    %c0_35 = arith.constant 0 : index
    %c0_36 = arith.constant 0 : index
    %57 = vector.load %arg15[%c0_35, %c0_36] : memref<128x32xf32, #tpu.memory_space<vmem>>, vector<128x32xf32>
    tpu.vector_store %arg15[%c0_35, %c0_36], %56 {strides = array<i32>} : memref<128x32xf32, #tpu.memory_space<vmem>>, vector<128x32xf32>,
    return
  }
  func.func @transform_0(%arg0: i32) -> (i32, i32) {
    %c0_i32 = arith.constant 0 : i32
    %c0_i32_0 = arith.constant 0 : i32
    return %arg0, %c0_i32 : i32, i32
  }
  func.func @transform_1(%arg0: i32) -> (i32, i32) {
    %c0_i32 = arith.constant 0 : i32
    %c0_i32_0 = arith.constant 0 : i32
    return %arg0, %c0_i32 : i32, i32
  }
  func.func @transform_2(%arg0: i32) -> (i32, i32) {
    %c0_i32 = arith.constant 0 : i32
    %c0_i32_0 = arith.constant 0 : i32
    return %arg0, %c0_i32 : i32, i32
  }
  func.func @transform_3(%arg0: i32) -> (i32, i32) {
    %c0_i32 = arith.constant 0 : i32
    %c0_i32_0 = arith.constant 0 : i32
    %c0_i32_1 = arith.constant 0 : i32
    return %c0_i32, %c0_i32_0 : i32, i32
  }
  func.func @transform_4(%arg0: i32) -> (i32, i32) {
    %c0_i32 = arith.constant 0 : i32
    %c0_i32_0 = arith.constant 0 : i32
    %c0_i32_1 = arith.constant 0 : i32
    return %c0_i32, %c0_i32_0 : i32, i32
  }
  func.func @transform_5(%arg0: i32) -> (i32, i32) {
    %c0_i32 = arith.constant 0 : i32
    %c0_i32_0 = arith.constant 0 : i32
    %c0_i32_1 = arith.constant 0 : i32
    return %c0_i32, %c0_i32_0 : i32, i32
  }
  func.func @transform_6(%arg0: i32) -> (i32, i32) {
    %c0_i32 = arith.constant 0 : i32
    %c0_i32_0 = arith.constant 0 : i32
    %c0_i32_1 = arith.constant 0 : i32
    return %c0_i32, %c0_i32_0 : i32, i32
  }
  func.func @transform_7(%arg0: i32) -> (i32, i32) {
    %c0_i32 = arith.constant 0 : i32
    %c0_i32_0 = arith.constant 0 : i32
    %c0_i32_1 = arith.constant 0 : i32
    return %c0_i32, %c0_i32_0 : i32, i32
  }
  func.func @transform_8(%arg0: i32) -> (i32, i32) {
    %c0_i32 = arith.constant 0 : i32
    %c0_i32_0 = arith.constant 0 : i32
    %c0_i32_1 = arith.constant 0 : i32
    return %c0_i32, %c0_i32_0 : i32, i32
  }
  func.func @transform_9(%arg0: i32) -> (i32, i32) {
    %c0_i32 = arith.constant 0 : i32
    %c0_i32_0 = arith.constant 0 : i32
    %c0_i32_1 = arith.constant 0 : i32
    return %c0_i32, %c0_i32_0 : i32, i32
  }
  func.func @transform_10(%arg0: i32) -> (i32, i32) {
    %c0_i32 = arith.constant 0 : i32
    %c0_i32_0 = arith.constant 0 : i32
    %c0_i32_1 = arith.constant 0 : i32
    return %c0_i32, %c0_i32_0 : i32, i32
  }
  func.func @transform_11(%arg0: i32) -> (i32, i32) {
    %c0_i32 = arith.constant 0 : i32
    %c0_i32_0 = arith.constant 0 : i32
    %c0_i32_1 = arith.constant 0 : i32
    return %c0_i32, %c0_i32_0 : i32, i32
  }
  func.func @transform_12(%arg0: i32) -> (i32, i32) {
    %c0_i32 = arith.constant 0 : i32
    %c0_i32_0 = arith.constant 0 : i32
    %c0_i32_1 = arith.constant 0 : i32
    return %c0_i32, %c0_i32_0 : i32, i32
  }
  func.func @transform_13(%arg0: i32) -> i32 {
    %c0_i32 = arith.constant 0 : i32
    %c0_i32_0 = arith.constant 0 : i32
    return %c0_i32 : i32
  }
  func.func @transform_14(%arg0: i32) -> (i32, i32) {
    %c0_i32 = arith.constant 0 : i32
    %c0_i32_0 = arith.constant 0 : i32
    return %arg0, %c0_i32 : i32, i32
  }
}

</mosaic_0001>

<llo_original>
// kernel: tpu_custom_call.1
$region0: #{tpu_custom_call.1}
  #allocation0 [shape = 'u32[]', space=smem, size = 0x4, offset = 0x4, fixed_abs, tag = 'smem constant byte address 0x4 - core index']
  #allocation1 [shape = 'u32[144,128]{1,0:T(1,128)}', space=vmem, size = 0x12000, scoped, tag = 'internal scratch']
  %s0 = inlined_call_operand.vmem [shape: f32[256,32], index: 0, kind: input, shape index: {}]
  %s1 = inlined_call_operand.vmem [shape: bf16[256,16], index: 1, kind: input, shape index: {}]
  %s2 = inlined_call_operand.vmem [shape: bf16[256,16], index: 2, kind: input, shape index: {}]
  %s3 = inlined_call_operand.vmem [shape: bf16[32,256], index: 3, kind: input, shape index: {}]
  %s4 = inlined_call_operand.vmem [shape: bf16[16,256], index: 4, kind: input, shape index: {}]
  %s5 = inlined_call_operand.vmem [shape: bf16[16,256], index: 5, kind: input, shape index: {}]
  %s6 = inlined_call_operand.vmem [shape: f32[1,256], index: 6, kind: input, shape index: {}]
  %s7 = inlined_call_operand.vmem [shape: bf16[128,32], index: 7, kind: input, shape index: {}]
  %s8 = inlined_call_operand.vmem [shape: f32[1,32], index: 8, kind: input, shape index: {}]
  %s9 = inlined_call_operand.vmem [shape: bf16[128,64], index: 9, kind: input, shape index: {}]
  %s10 = inlined_call_operand.vmem [shape: f32[1,64], index: 10, kind: input, shape index: {}]
  %s11 = inlined_call_operand.vmem [shape: bf16[64,32], index: 11, kind: input, shape index: {}]
  %s12 = inlined_call_operand.vmem [shape: f32[1,32], index: 12, kind: input, shape index: {}]
  %s13 = inlined_call_operand.vmem [shape: f32[2], index: 13, kind: input, shape index: {}]
  %s14 = inlined_call_operand.vmem [shape: f32[256,32], index: 14, kind: output, shape index: {}]
  %s15 = sld [smem:[#allocation0]]
  $region93: #{tpu_custom_call.1} parent=0
    _
  %s17 = ssub.s32 1, %s15
  %s18 = scalar_select 0, %s17, %s15
  $region1: #{tpu_custom_call.1} parent=0
    #allocation2 [shape = 'u8[512]{0}', space=smem, size = 0x200, scoped, tag = 'input window, operand 13, single buffered']
    #allocation3 [shape = 's32[2]{0}', space=sflag, size = 0x8, scoped, tag = 'scoped memory for tpu_custom_call.1']
    %19 = vsyncpa [#allocation3], 0
    loop: start=0, step=1, limit=4
    $region2: #{tpu_custom_call.1} parent=1 // loop_pre_header
      _
    $region3: #{tpu_custom_call.1} parent=1 // loop_header
      %s21 = sphi 0, %s25
      %p22 = scmp.ge.s32.totalorder %s21, 4
      %s31 = sphi 0, %s33
      %s34 = sphi 0, %s31
      %s35 = sphi 0, %s34
      %s51 = sphi 0, %s35
      %s57 = sphi 0, %s59
      %s60 = sphi 0, %s57
      %s61 = sphi 0, %s60
      %s77 = sphi 0, %s61
      %s83 = sphi 0, %s85
      %s86 = sphi 0, %s83
      %s87 = sphi 0, %s86
      %s103 = sphi 0, %s87
      %s107 = sphi 0, %s107
      %s109 = sphi 0, %s107
      %s110 = sphi 0, %s109
      %s124 = sphi 0, %s110
      %s128 = sphi 0, %s128
      %s130 = sphi 0, %s128
      %s131 = sphi 0, %s130
      %s145 = sphi 0, %s131
      %s149 = sphi 0, %s149
      %s151 = sphi 0, %s149
      %s152 = sphi 0, %s151
      %s166 = sphi 0, %s152
      %s170 = sphi 0, %s170
      %s172 = sphi 0, %s170
      %s173 = sphi 0, %s172
      %s187 = sphi 0, %s173
      %s191 = sphi 0, %s191
      %s193 = sphi 0, %s191
      %s194 = sphi 0, %s193
      %s208 = sphi 0, %s194
      %s212 = sphi 0, %s212
      %s214 = sphi 0, %s212
      %s215 = sphi 0, %s214
      %s229 = sphi 0, %s215
      %s233 = sphi 0, %s233
      %s235 = sphi 0, %s233
      %s236 = sphi 0, %s235
      %s250 = sphi 0, %s236
      %s254 = sphi 0, %s254
      %s256 = sphi 0, %s254
      %s257 = sphi 0, %s256
      %s271 = sphi 0, %s257
      %s275 = sphi 0, %s275
      %s277 = sphi 0, %s275
      %s278 = sphi 0, %s277
      %s292 = sphi 0, %s278
      %s296 = sphi 0, %s296
      %s298 = sphi 0, %s296
      %s299 = sphi 0, %s298
      %s313 = sphi 0, %s299
      %s317 = sphi 0, %s317
      %s319 = sphi 0, %s317
      %s320 = sphi 0, %s319
      %s334 = sphi 0, %s320
      %s340 = sphi 0, %s342
      %s343 = sphi 0, %s340
      %s344 = sphi 0, %s343
      %s360 = sphi 0, %s344
    $region4: #{tpu_custom_call.1} parent=1 // loop_header_branch
      %24 = sbr.rel (%p22) target = $region8
    $region5: #{tpu_custom_call.1} parent=1 // loop_body
      %s26 = ssub.s32 %s21, 1
      %s27 = ssub.s32 %s21, 2
      %s28 = sadd.s32 %s21, 1
      %s29 = ssub.s32 %s21, %s28
      %p30 = scmp.eq.s32.totalorder %s29, 0
      %s32 = sadd.s32 %s31, 1
      %s33 = scalar_select %p30, %s31, %s32
      %p36 = pneg %p30
      %p37 = scmp.eq.s32.totalorder %s21, 1
      %p38 = por %p36, %p37
      %p39 = scmp.ne.s32.totalorder %s31, %s34
      %p40 = scmp.eq.s32.totalorder %s21, 0
      %p41 = por %p39, %p40
      %p42 = scmp.ne.s32.totalorder %s31, %s34
      %p43 = scmp.eq.s32.totalorder %s26, 1
      %p44 = por %p42, %p43
      %p45 = scmp.ne.s32.totalorder %s34, %s35
      %p46 = scmp.eq.s32.totalorder %s26, 0
      %p47 = por %p45, %p46
      %p48 = scmp.ne.s32.totalorder %s34, %s35
      %p49 = scmp.eq.s32.totalorder %s27, 1
      %p50 = por %p48, %p49
      %p52 = scmp.ne.s32.totalorder %s35, %s51
      %p53 = scmp.eq.s32.totalorder %s27, 0
      %p54 = por %p52, %p53
      %s55 = ssub.s32 %s21, %s28
      %p56 = scmp.eq.s32.totalorder %s55, 0
      %s58 = sadd.s32 %s57, 1
      %s59 = scalar_select %p56, %s57, %s58
      %p62 = pneg %p56
      %p63 = scmp.eq.s32.totalorder %s21, 1
      %p64 = por %p62, %p63
      %p65 = scmp.ne.s32.totalorder %s57, %s60
      %p66 = scmp.eq.s32.totalorder %s21, 0
      %p67 = por %p65, %p66
      %p68 = scmp.ne.s32.totalorder %s57, %s60
      %p69 = scmp.eq.s32.totalorder %s26, 1
      %p70 = por %p68, %p69
      %p71 = scmp.ne.s32.totalorder %s60, %s61
      %p72 = scmp.eq.s32.totalorder %s26, 0
      %p73 = por %p71, %p72
      %p74 = scmp.ne.s32.totalorder %s60, %s61
      %p75 = scmp.eq.s32.totalorder %s27, 1
      %p76 = por %p74, %p75
      %p78 = scmp.ne.s32.totalorder %s61, %s77
      %p79 = scmp.eq.s32.totalorder %s27, 0
      %p80 = por %p78, %p79
      %s81 = ssub.s32 %s21, %s28
      %p82 = scmp.eq.s32.totalorder %s81, 0
      %s84 = sadd.s32 %s83, 1
      %s85 = scalar_select %p82, %s83, %s84
      %p88 = pneg %p82
      %p89 = scmp.eq.s32.totalorder %s21, 1
      %p90 = por %p88, %p89
      %p91 = scmp.ne.s32.totalorder %s83, %s86
      %p92 = scmp.eq.s32.totalorder %s21, 0
      %p93 = por %p91, %p92
      %p94 = scmp.ne.s32.totalorder %s83, %s86
      %p95 = scmp.eq.s32.totalorder %s26, 1
      %p96 = por %p94, %p95
      %p97 = scmp.ne.s32.totalorder %s86, %s87
      %p98 = scmp.eq.s32.totalorder %s26, 0
      %p99 = por %p97, %p98
      %p100 = scmp.ne.s32.totalorder %s86, %s87
      %p101 = scmp.eq.s32.totalorder %s27, 1
      %p102 = por %p100, %p101
      %p104 = scmp.ne.s32.totalorder %s87, %s103
      %p105 = scmp.eq.s32.totalorder %s27, 0
      %p106 = por %p104, %p105
      %s108 = sadd.s32 %s107, 1
      %p111 = scmp.eq.s32.totalorder %s21, 1
      %p112 = scmp.ne.s32.totalorder %s107, %s109
      %p113 = scmp.eq.s32.totalorder %s21, 0
      %p114 = por %p112, %p113
      %p115 = scmp.ne.s32.totalorder %s107, %s109
      %p116 = scmp.eq.s32.totalorder %s26, 1
      %p117 = por %p115, %p116
      %p118 = scmp.ne.s32.totalorder %s109, %s110
      %p119 = scmp.eq.s32.totalorder %s26, 0
      %p120 = por %p118, %p119
      %p121 = scmp.ne.s32.totalorder %s109, %s110
      %p122 = scmp.eq.s32.totalorder %s27, 1
      %p123 = por %p121, %p122
      %p125 = scmp.ne.s32.totalorder %s110, %s124
      %p126 = scmp.eq.s32.totalorder %s27, 0
      %p127 = por %p125, %p126
      %s129 = sadd.s32 %s128, 1
      %p132 = scmp.eq.s32.totalorder %s21, 1
      %p133 = scmp.ne.s32.totalorder %s128, %s130
      %p134 = scmp.eq.s32.totalorder %s21, 0
      %p135 = por %p133, %p134
      %p136 = scmp.ne.s32.totalorder %s128, %s130
      %p137 = scmp.eq.s32.totalorder %s26, 1
      %p138 = por %p136, %p137
      %p139 = scmp.ne.s32.totalorder %s130, %s131
      %p140 = scmp.eq.s32.totalorder %s26, 0
      %p141 = por %p139, %p140
      %p142 = scmp.ne.s32.totalorder %s130, %s131
      %p143 = scmp.eq.s32.totalorder %s27, 1
      %p144 = por %p142, %p143
      %p146 = scmp.ne.s32.totalorder %s131, %s145
      %p147 = scmp.eq.s32.totalorder %s27, 0
      %p148 = por %p146, %p147
      %s150 = sadd.s32 %s149, 1
      %p153 = scmp.eq.s32.totalorder %s21, 1
      %p154 = scmp.ne.s32.totalorder %s149, %s151
      %p155 = scmp.eq.s32.totalorder %s21, 0
      %p156 = por %p154, %p155
      %p157 = scmp.ne.s32.totalorder %s149, %s151
      %p158 = scmp.eq.s32.totalorder %s26, 1
      %p159 = por %p157, %p158
      %p160 = scmp.ne.s32.totalorder %s151, %s152
      %p161 = scmp.eq.s32.totalorder %s26, 0
      %p162 = por %p160, %p161
      %p163 = scmp.ne.s32.totalorder %s151, %s152
      %p164 = scmp.eq.s32.totalorder %s27, 1
      %p165 = por %p163, %p164
      %p167 = scmp.ne.s32.totalorder %s152, %s166
      %p168 = scmp.eq.s32.totalorder %s27, 0
      %p169 = por %p167, %p168
      %s171 = sadd.s32 %s170, 1
      %p174 = scmp.eq.s32.totalorder %s21, 1
      %p175 = scmp.ne.s32.totalorder %s170, %s172
      %p176 = scmp.eq.s32.totalorder %s21, 0
      %p177 = por %p175, %p176
      %p178 = scmp.ne.s32.totalorder %s170, %s172
      %p179 = scmp.eq.s32.totalorder %s26, 1
      %p180 = por %p178, %p179
      %p181 = scmp.ne.s32.totalorder %s172, %s173
      %p182 = scmp.eq.s32.totalorder %s26, 0
      %p183 = por %p181, %p182
      %p184 = scmp.ne.s32.totalorder %s172, %s173
      %p185 = scmp.eq.s32.totalorder %s27, 1
      %p186 = por %p184, %p185
      %p188 = scmp.ne.s32.totalorder %s173, %s187
      %p189 = scmp.eq.s32.totalorder %s27, 0
      %p190 = por %p188, %p189
      %s192 = sadd.s32 %s191, 1
      %p195 = scmp.eq.s32.totalorder %s21, 1
      %p196 = scmp.ne.s32.totalorder %s191, %s193
      %p197 = scmp.eq.s32.totalorder %s21, 0
      %p198 = por %p196, %p197
      %p199 = scmp.ne.s32.totalorder %s191, %s193
      %p200 = scmp.eq.s32.totalorder %s26, 1
      %p201 = por %p199, %p200
      %p202 = scmp.ne.s32.totalorder %s193, %s194
      %p203 = scmp.eq.s32.totalorder %s26, 0
      %p204 = por %p202, %p203
      %p205 = scmp.ne.s32.totalorder %s193, %s194
      %p206 = scmp.eq.s32.totalorder %s27, 1
      %p207 = por %p205, %p206
      %p209 = scmp.ne.s32.totalorder %s194, %s208
      %p210 = scmp.eq.s32.totalorder %s27, 0
      %p211 = por %p209, %p210
      %s213 = sadd.s32 %s212, 1
      %p216 = scmp.eq.s32.totalorder %s21, 1
      %p217 = scmp.ne.s32.totalorder %s212, %s214
      %p218 = scmp.eq.s32.totalorder %s21, 0
      %p219 = por %p217, %p218
      %p220 = scmp.ne.s32.totalorder %s212, %s214
      %p221 = scmp.eq.s32.totalorder %s26, 1
      %p222 = por %p220, %p221
      %p223 = scmp.ne.s32.totalorder %s214, %s215
      %p224 = scmp.eq.s32.totalorder %s26, 0
      %p225 = por %p223, %p224
      %p226 = scmp.ne.s32.totalorder %s214, %s215
      %p227 = scmp.eq.s32.totalorder %s27, 1
      %p228 = por %p226, %p227
      %p230 = scmp.ne.s32.totalorder %s215, %s229
      %p231 = scmp.eq.s32.totalorder %s27, 0
      %p232 = por %p230, %p231
      %s234 = sadd.s32 %s233, 1
      %p237 = scmp.eq.s32.totalorder %s21, 1
      %p238 = scmp.ne.s32.totalorder %s233, %s235
      %p239 = scmp.eq.s32.totalorder %s21, 0
      %p240 = por %p238, %p239
      %p241 = scmp.ne.s32.totalorder %s233, %s235
      %p242 = scmp.eq.s32.totalorder %s26, 1
      %p243 = por %p241, %p242
      %p244 = scmp.ne.s32.totalorder %s235, %s236
      %p245 = scmp.eq.s32.totalorder %s26, 0
      %p246 = por %p244, %p245
      %p247 = scmp.ne.s32.totalorder %s235, %s236
      %p248 = scmp.eq.s32.totalorder %s27, 1
      %p249 = por %p247, %p248
      %p251 = scmp.ne.s32.totalorder %s236, %s250
      %p252 = scmp.eq.s32.totalorder %s27, 0
      %p253 = por %p251, %p252
      %s255 = sadd.s32 %s254, 1
      %p258 = scmp.eq.s32.totalorder %s21, 1
      %p259 = scmp.ne.s32.totalorder %s254, %s256
      %p260 = scmp.eq.s32.totalorder %s21, 0
      %p261 = por %p259, %p260
      %p262 = scmp.ne.s32.totalorder %s254, %s256
      %p263 = scmp.eq.s32.totalorder %s26, 1
      %p264 = por %p262, %p263
      %p265 = scmp.ne.s32.totalorder %s256, %s257
      %p266 = scmp.eq.s32.totalorder %s26, 0
      %p267 = por %p265, %p266
      %p268 = scmp.ne.s32.totalorder %s256, %s257
      %p269 = scmp.eq.s32.totalorder %s27, 1
      %p270 = por %p268, %p269
      %p272 = scmp.ne.s32.totalorder %s257, %s271
      %p273 = scmp.eq.s32.totalorder %s27, 0
      %p274 = por %p272, %p273
      %s276 = sadd.s32 %s275, 1
      %p279 = scmp.eq.s32.totalorder %s21, 1
      %p280 = scmp.ne.s32.totalorder %s275, %s277
      %p281 = scmp.eq.s32.totalorder %s21, 0
      %p282 = por %p280, %p281
      %p283 = scmp.ne.s32.totalorder %s275, %s277
      %p284 = scmp.eq.s32.totalorder %s26, 1
      %p285 = por %p283, %p284
      %p286 = scmp.ne.s32.totalorder %s277, %s278
      %p287 = scmp.eq.s32.totalorder %s26, 0
      %p288 = por %p286, %p287
      %p289 = scmp.ne.s32.totalorder %s277, %s278
      %p290 = scmp.eq.s32.totalorder %s27, 1
      %p291 = por %p289, %p290
      %p293 = scmp.ne.s32.totalorder %s278, %s292
      %p294 = scmp.eq.s32.totalorder %s27, 0
      %p295 = por %p293, %p294
      %s297 = sadd.s32 %s296, 1
      %p300 = scmp.eq.s32.totalorder %s21, 1
      %p301 = scmp.ne.s32.totalorder %s296, %s298
      %p302 = scmp.eq.s32.totalorder %s21, 0
      %p303 = por %p301, %p302
      %p304 = scmp.ne.s32.totalorder %s296, %s298
      %p305 = scmp.eq.s32.totalorder %s26, 1
      %p306 = por %p304, %p305
      %p307 = scmp.ne.s32.totalorder %s298, %s299
      %p308 = scmp.eq.s32.totalorder %s26, 0
      %p309 = por %p307, %p308
      %p310 = scmp.ne.s32.totalorder %s298, %s299
      %p311 = scmp.eq.s32.totalorder %s27, 1
      %p312 = por %p310, %p311
      %p314 = scmp.ne.s32.totalorder %s299, %s313
      %p315 = scmp.eq.s32.totalorder %s27, 0
      %p316 = por %p314, %p315
      %s318 = sadd.s32 %s317, 1
      %p321 = scmp.eq.s32.totalorder %s21, 1
      %p322 = scmp.ne.s32.totalorder %s317, %s319
      %p323 = scmp.eq.s32.totalorder %s21, 0
      %p324 = por %p322, %p323
      %p325 = scmp.ne.s32.totalorder %s317, %s319
      %p326 = scmp.eq.s32.totalorder %s26, 1
      %p327 = por %p325, %p326
      %p328 = scmp.ne.s32.totalorder %s319, %s320
      %p329 = scmp.eq.s32.totalorder %s26, 0
      %p330 = por %p328, %p329
      %p331 = scmp.ne.s32.totalorder %s319, %s320
      %p332 = scmp.eq.s32.totalorder %s27, 1
      %p333 = por %p331, %p332
      %p335 = scmp.ne.s32.totalorder %s320, %s334
      %p336 = scmp.eq.s32.totalorder %s27, 0
      %p337 = por %p335, %p336
      %s338 = ssub.s32 %s21, %s28
      %p339 = scmp.eq.s32.totalorder %s338, 0
      %s341 = sadd.s32 %s340, 1
      %s342 = scalar_select %p339, %s340, %s341
      %p345 = pneg %p339
      %p346 = scmp.eq.s32.totalorder %s21, 1
      %p347 = por %p345, %p346
      %p348 = scmp.ne.s32.totalorder %s340, %s343
      %p349 = scmp.eq.s32.totalorder %s21, 0
      %p350 = por %p348, %p349
      %p351 = scmp.ne.s32.totalorder %s340, %s343
      %p352 = scmp.eq.s32.totalorder %s26, 1
      %p353 = por %p351, %p352
      %p354 = scmp.ne.s32.totalorder %s343, %s344
      %p355 = scmp.eq.s32.totalorder %s26, 0
      %p356 = por %p354, %p355
      %p357 = scmp.ne.s32.totalorder %s343, %s344
      %p358 = scmp.eq.s32.totalorder %s27, 1
      %p359 = por %p357, %p358
      %p361 = scmp.ne.s32.totalorder %s344, %s360
      %p362 = scmp.eq.s32.totalorder %s27, 0
      %p363 = por %p361, %p362
      %p364 = scmp.le.s32.totalorder 1, %s21
      %p365 = scmp.lt.s32.totalorder %s21, 3
      %p366 = pnand %p364, %p365
      %p367 = pneg %p366
      // Predicated region
      $region9: #{tpu_custom_call.1} parent=5 // pred_check
        _
      $region10: #{tpu_custom_call.1} parent=5 // pred_check_branch
        %369 = sbr.rel (%p366) target = $region12
      $region11: #{tpu_custom_call.1} parent=5 // pred_region
        %s370 = ssub.s32 %s21, 1
        // Predicated region
        $region13: #{tpu_custom_call.1} parent=11 // pred_check
          %p371 = pneg %p120
        $region14: #{tpu_custom_call.1} parent=11 // pred_check_branch
          %373 = sbr.rel (%p371) target = $region16
        $region15: #{tpu_custom_call.1} parent=11 // pred_region
          _
        $region16: #{tpu_custom_call.1} parent=11 // pred_fallthru
          _
        // Predicated region
        $region17: #{tpu_custom_call.1} parent=11 // pred_check
          %p374 = pneg %p141
        $region18: #{tpu_custom_call.1} parent=11 // pred_check_branch
          %376 = sbr.rel (%p374) target = $region20
        $region19: #{tpu_custom_call.1} parent=11 // pred_region
          _
        $region20: #{tpu_custom_call.1} parent=11 // pred_fallthru
          _
        // Predicated region
        $region21: #{tpu_custom_call.1} parent=11 // pred_check
          %p377 = pneg %p162
        $region22: #{tpu_custom_call.1} parent=11 // pred_check_branch
          %379 = sbr.rel (%p377) target = $region24
        $region23: #{tpu_custom_call.1} parent=11 // pred_region
          _
        $region24: #{tpu_custom_call.1} parent=11 // pred_fallthru
          _
        // Predicated region
        $region25: #{tpu_custom_call.1} parent=11 // pred_check
          %p380 = pneg %p183
        $region26: #{tpu_custom_call.1} parent=11 // pred_check_branch
          %382 = sbr.rel (%p380) target = $region28
        $region27: #{tpu_custom_call.1} parent=11 // pred_region
          _
        $region28: #{tpu_custom_call.1} parent=11 // pred_fallthru
          _
        // Predicated region
        $region29: #{tpu_custom_call.1} parent=11 // pred_check
          %p383 = pneg %p204
        $region30: #{tpu_custom_call.1} parent=11 // pred_check_branch
          %385 = sbr.rel (%p383) target = $region32
        $region31: #{tpu_custom_call.1} parent=11 // pred_region
          _
        $region32: #{tpu_custom_call.1} parent=11 // pred_fallthru
          _
        // Predicated region
        $region33: #{tpu_custom_call.1} parent=11 // pred_check
          %p386 = pneg %p225
        $region34: #{tpu_custom_call.1} parent=11 // pred_check_branch
          %388 = sbr.rel (%p386) target = $region36
        $region35: #{tpu_custom_call.1} parent=11 // pred_region
          _
        $region36: #{tpu_custom_call.1} parent=11 // pred_fallthru
          _
        // Predicated region
        $region37: #{tpu_custom_call.1} parent=11 // pred_check
          %p389 = pneg %p246
        $region38: #{tpu_custom_call.1} parent=11 // pred_check_branch
          %391 = sbr.rel (%p389) target = $region40
        $region39: #{tpu_custom_call.1} parent=11 // pred_region
          _
        $region40: #{tpu_custom_call.1} parent=11 // pred_fallthru
          _
        // Predicated region
        $region41: #{tpu_custom_call.1} parent=11 // pred_check
          %p392 = pneg %p267
        $region42: #{tpu_custom_call.1} parent=11 // pred_check_branch
          %394 = sbr.rel (%p392) target = $region44
        $region43: #{tpu_custom_call.1} parent=11 // pred_region
          _
        $region44: #{tpu_custom_call.1} parent=11 // pred_fallthru
          _
        // Predicated region
        $region45: #{tpu_custom_call.1} parent=11 // pred_check
          %p395 = pneg %p288
        $region46: #{tpu_custom_call.1} parent=11 // pred_check_branch
          %397 = sbr.rel (%p395) target = $region48
        $region47: #{tpu_custom_call.1} parent=11 // pred_region
          _
        $region48: #{tpu_custom_call.1} parent=11 // pred_fallthru
          _
        // Predicated region
        $region49: #{tpu_custom_call.1} parent=11 // pred_check
          %p398 = pneg %p309
        $region50: #{tpu_custom_call.1} parent=11 // pred_check_branch
          %400 = sbr.rel (%p398) target = $region52
        $region51: #{tpu_custom_call.1} parent=11 // pred_region
          _
        $region52: #{tpu_custom_call.1} parent=11 // pred_fallthru
          _
        // Predicated region
        $region53: #{tpu_custom_call.1} parent=11 // pred_check
          %p401 = pneg %p330
        $region54: #{tpu_custom_call.1} parent=11 // pred_check_branch
          %403 = sbr.rel (%p401) target = $region56
        $region55: #{tpu_custom_call.1} parent=11 // pred_region
          %s405 = ssub.s32 16, 16
          %406 = vsyncadd [#allocation3], %s405
          %s408 = sshll.u32 %s13, 4
          %s409 = int_to_ptr.vmem [resolvable:$true] %s408
          %411 = dma.vmem_to_smem %s409, 16, [#allocation2], [#allocation3]
        $region56: #{tpu_custom_call.1} parent=11 // pred_fallthru
          _
      $region12: #{tpu_custom_call.1} parent=5 // pred_fallthru
        _
      %p412 = scmp.lt.s32.totalorder %s21, 2
      // Predicated region
      $region57: #{tpu_custom_call.1} parent=5 // pred_check
        %p413 = pneg %p412
      $region58: #{tpu_custom_call.1} parent=5 // pred_check_branch
        %415 = sbr.rel (%p413) target = $region60
      $region59: #{tpu_custom_call.1} parent=5 // pred_region
        // Predicated region
        $region61: #{tpu_custom_call.1} parent=59 // pred_check
          %p416 = pneg %p41
        $region62: #{tpu_custom_call.1} parent=59 // pred_check_branch
          %418 = sbr.rel (%p416) target = $region64
        $region63: #{tpu_custom_call.1} parent=59 // pred_region
          %s419 = smul.u32 16, %s21
          %p420 = scmp.lt.s32.totalorder %s419, 31
          %s421 = scalar_select %p420, %s419, 31
          %s422 = smul.addr %s421, 8
          %s423 = scalar_lea.vmem %s0, %s422
          %s424 = smul.u32 16, %s21
        $region64: #{tpu_custom_call.1} parent=59 // pred_fallthru
          _
        // Predicated region
        $region65: #{tpu_custom_call.1} parent=59 // pred_check
          %p425 = pneg %p67
        $region66: #{tpu_custom_call.1} parent=59 // pred_check_branch
          %427 = sbr.rel (%p425) target = $region68
        $region67: #{tpu_custom_call.1} parent=59 // pred_region
          %s428 = smul.u32 16, %s21
          %p429 = scmp.lt.s32.totalorder %s428, 31
          %s430 = scalar_select %p429, %s428, 31
          %s431 = smul.addr %s430, 4
          %s432 = scalar_lea.vmem %s1, %s431
          %s433 = smul.u32 16, %s21
        $region68: #{tpu_custom_call.1} parent=59 // pred_fallthru
          _
        // Predicated region
        $region69: #{tpu_custom_call.1} parent=59 // pred_check
          %p434 = pneg %p93
        $region70: #{tpu_custom_call.1} parent=59 // pred_check_branch
          %436 = sbr.rel (%p434) target = $region72
        $region71: #{tpu_custom_call.1} parent=59 // pred_region
          %s437 = smul.u32 16, %s21
          %p438 = scmp.lt.s32.totalorder %s437, 31
          %s439 = scalar_select %p438, %s437, 31
          %s440 = smul.addr %s439, 4
          %s441 = scalar_lea.vmem %s2, %s440
          %s442 = smul.u32 16, %s21
        $region72: #{tpu_custom_call.1} parent=59 // pred_fallthru
          _
      $region60: #{tpu_custom_call.1} parent=5 // pred_fallthru
        _
      %p443 = scmp.le.s32.totalorder 1, %s21
      %p444 = scmp.lt.s32.totalorder %s21, 3
      %p445 = pnand %p443, %p444
      %p446 = pneg %p445
      // Predicated region
      $region73: #{tpu_custom_call.1} parent=5 // pred_check
        _
      $region74: #{tpu_custom_call.1} parent=5 // pred_check_branch
        %448 = sbr.rel (%p445) target = $region76
      $region75: #{tpu_custom_call.1} parent=5 // pred_region
        %s449 = ssub.s32 %s21, 1
        // Predicated region
        $region77: #{tpu_custom_call.1} parent=75 // pred_check
          %p450 = pneg %p330
        $region78: #{tpu_custom_call.1} parent=75 // pred_check_branch
          %452 = sbr.rel (%p450) target = $region80
        $region79: #{tpu_custom_call.1} parent=75 // pred_region
          %453 = dma.done [#allocation3], 16
        $region80: #{tpu_custom_call.1} parent=75 // pred_fallthru
          _
        %454 = sfence
        %s455 = smul.u32 16, %s26
        %p456 = scmp.lt.s32.totalorder %s455, 31
        %s457 = scalar_select %p456, %s455, 31
        %s458 = smul.addr %s457, 8
        %s459 = scalar_lea.vmem %s0, %s458
        %p460 = pneg %p47
        %p461 = pneg %p44
        %s462 = smul.u32 16, %s26
        %p463 = scmp.lt.s32.totalorder %s462, 31
        %s464 = scalar_select %p463, %s462, 31
        %s465 = smul.addr %s464, 4
        %s466 = scalar_lea.vmem %s1, %s465
        %p467 = pneg %p73
        %p468 = pneg %p70
        %s469 = smul.u32 16, %s26
        %p470 = scmp.lt.s32.totalorder %s469, 31
        %s471 = scalar_select %p470, %s469, 31
        %s472 = smul.addr %s471, 4
        %s473 = scalar_lea.vmem %s2, %s472
        %p474 = pneg %p99
        %p475 = pneg %p96
        %p476 = pneg %p120
        %p477 = pneg %p117
        %p478 = pneg %p141
        %p479 = pneg %p138
        %p480 = pneg %p162
        %p481 = pneg %p159
        %p482 = pneg %p183
        %p483 = pneg %p180
        %p484 = pneg %p204
        %p485 = pneg %p201
        %p486 = pneg %p225
        %p487 = pneg %p222
        %p488 = pneg %p246
        %p489 = pneg %p243
        %p490 = pneg %p267
        %p491 = pneg %p264
        %p492 = pneg %p288
        %p493 = pneg %p285
        %p494 = pneg %p309
        %p495 = pneg %p306
        %p496 = pneg %p330
        %p497 = pneg %p327
        %p498 = pneg %p356
        %p499 = pneg %p353
        %s500 = smul.u32 16, %s26
        %p501 = scmp.lt.s32.totalorder %s500, 31
        %s502 = scalar_select %p501, %s500, 31
        %s503 = smul.addr %s502, 8
        %s504 = scalar_lea.vmem %s14, %s503
        %s505 = smul.u32 16, %s26
        %p506 = scmp.lt.s32.totalorder %s505, 31
        %s507 = scalar_select %p506, %s505, 31
        %s508 = smul.addr %s507, 8
        %s509 = scalar_lea.vmem %s0, %s508
        %s510 = smul.u32 16, %s26
        %s511 = smul.u32 16, %s26
        %p512 = scmp.lt.s32.totalorder %s511, 31
        %s513 = scalar_select %p512, %s511, 31
        %s514 = smul.addr %s513, 4
        %s515 = scalar_lea.vmem %s1, %s514
        %s516 = smul.u32 16, %s26
        %s517 = smul.u32 16, %s26
        %p518 = scmp.lt.s32.totalorder %s517, 31
        %s519 = scalar_select %p518, %s517, 31
        %s520 = smul.addr %s519, 4
        %s521 = scalar_lea.vmem %s2, %s520
        %s522 = smul.u32 16, %s26
        %s523 = smul.u32 16, %s26
        %p524 = scmp.lt.s32.totalorder %s523, 31
        %s525 = scalar_select %p524, %s523, 31
        %s526 = smul.addr %s525, 8
        %s527 = scalar_lea.vmem %s14, %s526
        %s528 = smul.u32 16, %s26
        %s530 = sld [smem:[#allocation2]]
        %s531 = sld [smem:[#allocation2 + $0x1]]
        %v532 = vld [vmem:[%s509] sm:$0xff]
        %v533 = vld [vmem:[%s509 + $0x8] sm:$0xff]
        %v534 = vld [vmem:[%s509 + $0x10] sm:$0xff]
        %v535 = vld [vmem:[%s509 + $0x18] sm:$0xff]
        %v536 = vld [vmem:[%s509 + $0x20] sm:$0xff]
        %v537 = vld [vmem:[%s509 + $0x28] sm:$0xff]
        %v538 = vld [vmem:[%s509 + $0x30] sm:$0xff]
        %v539 = vld [vmem:[%s509 + $0x38] sm:$0xff]
        %v540 = vld [vmem:[%s509 + $0x40] sm:$0xff]
        %v541 = vld [vmem:[%s509 + $0x48] sm:$0xff]
        %v542 = vld [vmem:[%s509 + $0x50] sm:$0xff]
        %v543 = vld [vmem:[%s509 + $0x58] sm:$0xff]
        %v544 = vld [vmem:[%s509 + $0x60] sm:$0xff]
        %v545 = vld [vmem:[%s509 + $0x68] sm:$0xff]
        %v546 = vld [vmem:[%s509 + $0x70] sm:$0xff]
        %v547 = vld [vmem:[%s509 + $0x78] sm:$0xff]
        %v548 = vpack.c.bf16 %v533, %v532
        %v549 = vpack.c.bf16 %v535, %v534
        %v550 = vpack.c.bf16 %v537, %v536
        %v551 = vpack.c.bf16 %v539, %v538
        %v552 = vpack.c.bf16 %v541, %v540
        %v553 = vpack.c.bf16 %v543, %v542
        %v554 = vpack.c.bf16 %v545, %v544
        %v555 = vpack.c.bf16 %v547, %v546
        %v556 = vld [vmem:[%s3] sm:$0xff]
        %v557 = vld [vmem:[%s3 + $0x8] sm:$0xff]
        %v558 = vld [vmem:[%s3 + $0x10] sm:$0xff]
        %v559 = vld [vmem:[%s3 + $0x18] sm:$0xff]
        %v560 = vld [vmem:[%s515] sm:$0xf]
        %v561 = vld [vmem:[%s515 + $0x4] sm:$0xf]
        %v562 = vld [vmem:[%s515 + $0x8] sm:$0xf]
        %v563 = vld [vmem:[%s515 + $0xc] sm:$0xf]
        %v564 = vld [vmem:[%s515 + $0x10] sm:$0xf]
        %v565 = vld [vmem:[%s515 + $0x14] sm:$0xf]
        %v566 = vld [vmem:[%s515 + $0x18] sm:$0xf]
        %v567 = vld [vmem:[%s515 + $0x1c] sm:$0xf]
        %v568 = vld [vmem:[%s515 + $0x20] sm:$0xf]
        %v569 = vld [vmem:[%s515 + $0x24] sm:$0xf]
        %v570 = vld [vmem:[%s515 + $0x28] sm:$0xf]
        %v571 = vld [vmem:[%s515 + $0x2c] sm:$0xf]
        %v572 = vld [vmem:[%s515 + $0x30] sm:$0xf]
        %v573 = vld [vmem:[%s515 + $0x34] sm:$0xf]
        %v574 = vld [vmem:[%s515 + $0x38] sm:$0xf]
        %v575 = vld [vmem:[%s515 + $0x3c] sm:$0xf]
        %v576 = vld [vmem:[%s4] sm:$0xff]
        %v577 = vld [vmem:[%s4 + $0x8] sm:$0xff]
        %v594 = vunpack.c.l.b16 %v560
        %v595 = vunpack.c.l.b16 %v561
        %v596 = vunpack.c.l.b16 %v562
        %v597 = vunpack.c.l.b16 %v563
        %v598 = vunpack.c.l.b16 %v564
        %v599 = vunpack.c.l.b16 %v565
        %v600 = vunpack.c.l.b16 %v566
        %v601 = vunpack.c.l.b16 %v567
        %v602 = vunpack.c.l.b16 %v568
        %v603 = vunpack.c.l.b16 %v569
        %v604 = vunpack.c.l.b16 %v570
        %v605 = vunpack.c.l.b16 %v571
        %v606 = vunpack.c.l.b16 %v572
        %v607 = vunpack.c.l.b16 %v573
        %v608 = vunpack.c.l.b16 %v574
        %v609 = vunpack.c.l.b16 %v575
        %v610 = vpack.c.b16 %v595, %v594
        %v611 = vpack.c.b16 %v597, %v596
        %v612 = vpack.c.b16 %v599, %v598
        %v613 = vpack.c.b16 %v601, %v600
        %v614 = vpack.c.b16 %v603, %v602
        %v615 = vpack.c.b16 %v605, %v604
        %v616 = vpack.c.b16 %v607, %v606
        %v617 = vpack.c.b16 %v609, %v608
        %v620 = vunpack.c.l.b16 %v576
        %v621 = vunpack.c.h.b16 %v576
        %v622 = vunpack.c.l.b16 %v577
        %v623 = vunpack.c.h.b16 %v577
        %v624 = vpack.c.b16 %v622, %v620
        %v625 = vpack.c.b16 %v623, %v621
        %vm628 = vcmask 130048
        %v630 = vsel %vm628, %v610, 0
        %v633 = vsel %vm628, %v611, 0
        %v636 = vsel %vm628, %v612, 0
        %v639 = vsel %vm628, %v613, 0
        %v642 = vsel %vm628, %v614, 0
        %v645 = vsel %vm628, %v615, 0
        %v648 = vsel %vm628, %v616, 0
        %v651 = vsel %vm628, %v617, 0
        %653 = vmatprep.subr.bf16.mxu0 0
        %654 = vmatpush1.bf16.msra.mxu0 0
        %655 = vmatprep.subr.bf16.mxu0 0
        %656 = vmatpush1.bf16.msra.mxu0 0
        %657 = vmatprep.subr.bf16.mxu0 0
        %658 = vmatpush1.bf16.msra.mxu0 0
        %659 = vmatprep.subr.bf16.mxu0 0
        %660 = vmatpush1.bf16.msra.mxu0 0
        %661 = vmatprep.subr.bf16.mxu0 0
        %662 = vmatpush1.bf16.msra.mxu0 0
        %663 = vmatprep.subr.bf16.mxu0 0
        %664 = vmatpush1.bf16.msra.mxu0 0
        %665 = vmatprep.subr.bf16.mxu0 0
        %666 = vmatpush1.bf16.msra.mxu0 0
        %667 = vmatprep.subr.bf16.mxu0 %v625
        %668 = vmatpush1.bf16.msra.mxu0 %v624
        %669 = vmatprep.subr.bf16.mxu0 0
        %670 = vmatpush2.bf16.msra.mxu0 0
        %671 = vmatprep.subr.bf16.mxu0 0
        %672 = vmatpush2.bf16.msra.mxu0 0
        %673 = vmatprep.subr.bf16.mxu0 0
        %674 = vmatpush2.bf16.msra.mxu0 0
        %675 = vmatprep.subr.bf16.mxu0 0
        %676 = vmatpush2.bf16.msra.mxu0 0
        %677 = vmatprep.subr.bf16.mxu0 0
        %678 = vmatpush2.bf16.msra.mxu0 0
        %679 = vmatprep.subr.bf16.mxu0 0
        %680 = vmatpush2.bf16.msra.mxu0 0
        %681 = vmatprep.subr.bf16.mxu0 0
        %682 = vmatpush2.bf16.msra.mxu0 0
        %683 = vmatprep.subr.bf16.mxu0 0
        %684 = vmatpush2.bf16.msra.mxu0 0
        %685 = vmatprep.mubr.bf16.mxu0 0
        %686 = vmatmul.mubr.bf16.gmra.mxu0 %v630
        %v687 = vpop.f32.mrf.mxu0
        %v688 = vadd.f32 0.0, %v687
        %v689 = vpop.f32.mrf.mxu0
        %v690 = vadd.f32 0.0, %v689
        %v691 = vpop.f32.mrf.mxu0
        %v692 = vadd.f32 0.0, %v691
        %v693 = vpop.f32.mrf.mxu0
        %v694 = vadd.f32 0.0, %v693
        %695 = vmatprep.mubr.bf16.mxu0 0
        %696 = vmatmul.mubr.bf16.gmra.mxu0 %v633
        %v697 = vpop.f32.mrf.mxu0
        %v698 = vadd.f32 0.0, %v697
        %v699 = vpop.f32.mrf.mxu0
        %v700 = vadd.f32 0.0, %v699
        %v701 = vpop.f32.mrf.mxu0
        %v702 = vadd.f32 0.0, %v701
        %v703 = vpop.f32.mrf.mxu0
        %v704 = vadd.f32 0.0, %v703
        %705 = vmatprep.mubr.bf16.mxu0 0
        %706 = vmatmul.mubr.bf16.gmra.mxu0 %v636
        %v707 = vpop.f32.mrf.mxu0
        %v708 = vadd.f32 0.0, %v707
        %v709 = vpop.f32.mrf.mxu0
        %v710 = vadd.f32 0.0, %v709
        %v711 = vpop.f32.mrf.mxu0
        %v712 = vadd.f32 0.0, %v711
        %v713 = vpop.f32.mrf.mxu0
        %v714 = vadd.f32 0.0, %v713
        %715 = vmatprep.mubr.bf16.mxu0 0
        %716 = vmatmul.mubr.bf16.gmra.mxu0 %v639
        %v717 = vpop.f32.mrf.mxu0
        %v718 = vadd.f32 0.0, %v717
        %v719 = vpop.f32.mrf.mxu0
        %v720 = vadd.f32 0.0, %v719
        %v721 = vpop.f32.mrf.mxu0
        %v722 = vadd.f32 0.0, %v721
        %v723 = vpop.f32.mrf.mxu0
        %v724 = vadd.f32 0.0, %v723
        %725 = vmatprep.mubr.bf16.mxu0 0
        %726 = vmatmul.mubr.bf16.gmra.mxu0 %v642
        %v727 = vpop.f32.mrf.mxu0
        %v728 = vadd.f32 0.0, %v727
        %v729 = vpop.f32.mrf.mxu0
        %v730 = vadd.f32 0.0, %v729
        %v731 = vpop.f32.mrf.mxu0
        %v732 = vadd.f32 0.0, %v731
        %v733 = vpop.f32.mrf.mxu0
        %v734 = vadd.f32 0.0, %v733
        %735 = vmatprep.mubr.bf16.mxu0 0
        %736 = vmatmul.mubr.bf16.gmra.mxu0 %v645
        %v737 = vpop.f32.mrf.mxu0
        %v738 = vadd.f32 0.0, %v737
        %v739 = vpop.f32.mrf.mxu0
        %v740 = vadd.f32 0.0, %v739
        %v741 = vpop.f32.mrf.mxu0
        %v742 = vadd.f32 0.0, %v741
        %v743 = vpop.f32.mrf.mxu0
        %v744 = vadd.f32 0.0, %v743
        %745 = vmatprep.mubr.bf16.mxu0 0
        %746 = vmatmul.mubr.bf16.gmra.mxu0 %v648
        %v747 = vpop.f32.mrf.mxu0
        %v748 = vadd.f32 0.0, %v747
        %v749 = vpop.f32.mrf.mxu0
        %v750 = vadd.f32 0.0, %v749
        %v751 = vpop.f32.mrf.mxu0
        %v752 = vadd.f32 0.0, %v751
        %v753 = vpop.f32.mrf.mxu0
        %v754 = vadd.f32 0.0, %v753
        %755 = vmatprep.mubr.bf16.mxu0 0
        %756 = vmatmul.mubr.bf16.gmra.mxu0 %v651
        %v757 = vpop.f32.mrf.mxu0
        %v758 = vadd.f32 0.0, %v757
        %v759 = vpop.f32.mrf.mxu0
        %v760 = vadd.f32 0.0, %v759
        %v761 = vpop.f32.mrf.mxu0
        %v762 = vadd.f32 0.0, %v761
        %v763 = vpop.f32.mrf.mxu0
        %v764 = vadd.f32 0.0, %v763
        %765 = vdwg.mxu0
        %v770 = vunpack.c.l.b16 %v556
        %v771 = vunpack.c.h.b16 %v556
        %v772 = vunpack.c.l.b16 %v557
        %v773 = vunpack.c.h.b16 %v557
        %v774 = vunpack.c.l.b16 %v558
        %v775 = vunpack.c.h.b16 %v558
        %v776 = vunpack.c.l.b16 %v559
        %v777 = vunpack.c.h.b16 %v559
        %v778 = vpack.c.b16 %v772, %v770
        %v779 = vpack.c.b16 %v773, %v771
        %v780 = vpack.c.b16 %v776, %v774
        %v781 = vpack.c.b16 %v777, %v775
        %vm786 = vcmask 261120
        %v788 = vsel %vm786, %v548, 0
        %v791 = vsel %vm786, %v549, 0
        %v794 = vsel %vm786, %v550, 0
        %v797 = vsel %vm786, %v551, 0
        %v800 = vsel %vm786, %v552, 0
        %v803 = vsel %vm786, %v553, 0
        %v806 = vsel %vm786, %v554, 0
        %v809 = vsel %vm786, %v555, 0
        %811 = vmatprep.subr.bf16.mxu0 0
        %812 = vmatpush1.bf16.msra.mxu0 0
        %813 = vmatprep.subr.bf16.mxu0 0
        %814 = vmatpush1.bf16.msra.mxu0 0
        %815 = vmatprep.subr.bf16.mxu0 0
        %816 = vmatpush1.bf16.msra.mxu0 0
        %817 = vmatprep.subr.bf16.mxu0 0
        %818 = vmatpush1.bf16.msra.mxu0 0
        %819 = vmatprep.subr.bf16.mxu0 0
        %820 = vmatpush1.bf16.msra.mxu0 0
        %821 = vmatprep.subr.bf16.mxu0 0
        %822 = vmatpush1.bf16.msra.mxu0 0
        %823 = vmatprep.subr.bf16.mxu0 %v781
        %824 = vmatpush1.bf16.msra.mxu0 %v780
        %825 = vmatprep.subr.bf16.mxu0 %v779
        %826 = vmatpush1.bf16.msra.mxu0 %v778
        %827 = vmatprep.subr.bf16.mxu0 0
        %828 = vmatpush2.bf16.msra.mxu0 0
        %829 = vmatprep.subr.bf16.mxu0 0
        %830 = vmatpush2.bf16.msra.mxu0 0
        %831 = vmatprep.subr.bf16.mxu0 0
        %832 = vmatpush2.bf16.msra.mxu0 0
        %833 = vmatprep.subr.bf16.mxu0 0
        %834 = vmatpush2.bf16.msra.mxu0 0
        %835 = vmatprep.subr.bf16.mxu0 0
        %836 = vmatpush2.bf16.msra.mxu0 0
        %837 = vmatprep.subr.bf16.mxu0 0
        %838 = vmatpush2.bf16.msra.mxu0 0
        %839 = vmatprep.subr.bf16.mxu0 0
        %840 = vmatpush2.bf16.msra.mxu0 0
        %841 = vmatprep.subr.bf16.mxu0 0
        %842 = vmatpush2.bf16.msra.mxu0 0
        %843 = vmatprep.mubr.bf16.mxu0 0
        %844 = vmatmul.mubr.bf16.gmra.mxu0 %v788
        %v845 = vpop.f32.mrf.mxu0
        %v846 = vadd.f32 %v688, %v845
        %v847 = vpop.f32.mrf.mxu0
        %v848 = vadd.f32 %v690, %v847
        %v849 = vpop.f32.mrf.mxu0
        %v850 = vadd.f32 %v692, %v849
        %v851 = vpop.f32.mrf.mxu0
        %v852 = vadd.f32 %v694, %v851
        %853 = vmatprep.mubr.bf16.mxu0 0
        %854 = vmatmul.mubr.bf16.gmra.mxu0 %v791
        %v855 = vpop.f32.mrf.mxu0
        %v856 = vadd.f32 %v698, %v855
        %v857 = vpop.f32.mrf.mxu0
        %v858 = vadd.f32 %v700, %v857
        %v859 = vpop.f32.mrf.mxu0
        %v860 = vadd.f32 %v702, %v859
        %v861 = vpop.f32.mrf.mxu0
        %v862 = vadd.f32 %v704, %v861
        %863 = vmatprep.mubr.bf16.mxu0 0
        %864 = vmatmul.mubr.bf16.gmra.mxu0 %v794
        %v865 = vpop.f32.mrf.mxu0
        %v866 = vadd.f32 %v708, %v865
        %v867 = vpop.f32.mrf.mxu0
        %v868 = vadd.f32 %v710, %v867
        %v869 = vpop.f32.mrf.mxu0
        %v870 = vadd.f32 %v712, %v869
        %v871 = vpop.f32.mrf.mxu0
        %v872 = vadd.f32 %v714, %v871
        %873 = vmatprep.mubr.bf16.mxu0 0
        %874 = vmatmul.mubr.bf16.gmra.mxu0 %v797
        %v875 = vpop.f32.mrf.mxu0
        %v876 = vadd.f32 %v718, %v875
        %v877 = vpop.f32.mrf.mxu0
        %v878 = vadd.f32 %v720, %v877
        %v879 = vpop.f32.mrf.mxu0
        %v880 = vadd.f32 %v722, %v879
        %v881 = vpop.f32.mrf.mxu0
        %v882 = vadd.f32 %v724, %v881
        %883 = vmatprep.mubr.bf16.mxu0 0
        %884 = vmatmul.mubr.bf16.gmra.mxu0 %v800
        %v885 = vpop.f32.mrf.mxu0
        %v886 = vadd.f32 %v728, %v885
        %v887 = vpop.f32.mrf.mxu0
        %v888 = vadd.f32 %v730, %v887
        %v889 = vpop.f32.mrf.mxu0
        %v890 = vadd.f32 %v732, %v889
        %v891 = vpop.f32.mrf.mxu0
        %v892 = vadd.f32 %v734, %v891
        %893 = vmatprep.mubr.bf16.mxu0 0
        %894 = vmatmul.mubr.bf16.gmra.mxu0 %v803
        %v895 = vpop.f32.mrf.mxu0
        %v896 = vadd.f32 %v738, %v895
        %v897 = vpop.f32.mrf.mxu0
        %v898 = vadd.f32 %v740, %v897
        %v899 = vpop.f32.mrf.mxu0
        %v900 = vadd.f32 %v742, %v899
        %v901 = vpop.f32.mrf.mxu0
        %v902 = vadd.f32 %v744, %v901
        %903 = vmatprep.mubr.bf16.mxu0 0
        %904 = vmatmul.mubr.bf16.gmra.mxu0 %v806
        %v905 = vpop.f32.mrf.mxu0
        %v906 = vadd.f32 %v748, %v905
        %v907 = vpop.f32.mrf.mxu0
        %v908 = vadd.f32 %v750, %v907
        %v909 = vpop.f32.mrf.mxu0
        %v910 = vadd.f32 %v752, %v909
        %v911 = vpop.f32.mrf.mxu0
        %v912 = vadd.f32 %v754, %v911
        %913 = vmatprep.mubr.bf16.mxu0 0
        %914 = vmatmul.mubr.bf16.gmra.mxu0 %v809
        %v915 = vpop.f32.mrf.mxu0
        %v916 = vadd.f32 %v758, %v915
        %v917 = vpop.f32.mrf.mxu0
        %v918 = vadd.f32 %v760, %v917
        %v919 = vpop.f32.mrf.mxu0
        %v920 = vadd.f32 %v762, %v919
        %v921 = vpop.f32.mrf.mxu0
        %v922 = vadd.f32 %v764, %v921
        %923 = vdwg.mxu0
        %v924 = vld [vmem:[%s521] sm:$0xf]
        %v925 = vld [vmem:[%s521 + $0x4] sm:$0xf]
        %v926 = vld [vmem:[%s521 + $0x8] sm:$0xf]
        %v927 = vld [vmem:[%s521 + $0xc] sm:$0xf]
        %v928 = vld [vmem:[%s521 + $0x10] sm:$0xf]
        %v929 = vld [vmem:[%s521 + $0x14] sm:$0xf]
        %v930 = vld [vmem:[%s521 + $0x18] sm:$0xf]
        %v931 = vld [vmem:[%s521 + $0x1c] sm:$0xf]
        %v932 = vld [vmem:[%s521 + $0x20] sm:$0xf]
        %v933 = vld [vmem:[%s521 + $0x24] sm:$0xf]
        %v934 = vld [vmem:[%s521 + $0x28] sm:$0xf]
        %v935 = vld [vmem:[%s521 + $0x2c] sm:$0xf]
        %v936 = vld [vmem:[%s521 + $0x30] sm:$0xf]
        %v937 = vld [vmem:[%s521 + $0x34] sm:$0xf]
        %v938 = vld [vmem:[%s521 + $0x38] sm:$0xf]
        %v939 = vld [vmem:[%s521 + $0x3c] sm:$0xf]
        %v940 = vld [vmem:[%s5] sm:$0xff]
        %v941 = vld [vmem:[%s5 + $0x8] sm:$0xff]
        %v958 = vunpack.c.l.b16 %v924
        %v959 = vunpack.c.l.b16 %v925
        %v960 = vunpack.c.l.b16 %v926
        %v961 = vunpack.c.l.b16 %v927
        %v962 = vunpack.c.l.b16 %v928
        %v963 = vunpack.c.l.b16 %v929
        %v964 = vunpack.c.l.b16 %v930
        %v965 = vunpack.c.l.b16 %v931
        %v966 = vunpack.c.l.b16 %v932
        %v967 = vunpack.c.l.b16 %v933
        %v968 = vunpack.c.l.b16 %v934
        %v969 = vunpack.c.l.b16 %v935
        %v970 = vunpack.c.l.b16 %v936
        %v971 = vunpack.c.l.b16 %v937
        %v972 = vunpack.c.l.b16 %v938
        %v973 = vunpack.c.l.b16 %v939
        %v974 = vpack.c.b16 %v959, %v958
        %v975 = vpack.c.b16 %v961, %v960
        %v976 = vpack.c.b16 %v963, %v962
        %v977 = vpack.c.b16 %v965, %v964
        %v978 = vpack.c.b16 %v967, %v966
        %v979 = vpack.c.b16 %v969, %v968
        %v980 = vpack.c.b16 %v971, %v970
        %v981 = vpack.c.b16 %v973, %v972
        %v984 = vunpack.c.l.b16 %v940
        %v985 = vunpack.c.h.b16 %v940
        %v986 = vunpack.c.l.b16 %v941
        %v987 = vunpack.c.h.b16 %v941
        %v988 = vpack.c.b16 %v986, %v984
        %v989 = vpack.c.b16 %v987, %v985
        %v993 = vsel %vm628, %v974, 0
        %v996 = vsel %vm628, %v975, 0
        %v999 = vsel %vm628, %v976, 0
        %v1002 = vsel %vm628, %v977, 0
        %v1005 = vsel %vm628, %v978, 0
        %v1008 = vsel %vm628, %v979, 0
        %v1011 = vsel %vm628, %v980, 0
        %v1014 = vsel %vm628, %v981, 0
        %1016 = vmatprep.subr.bf16.mxu0 0
        %1017 = vmatpush1.bf16.msra.mxu0 0
        %1018 = vmatprep.subr.bf16.mxu0 0
        %1019 = vmatpush1.bf16.msra.mxu0 0
        %1020 = vmatprep.subr.bf16.mxu0 0
        %1021 = vmatpush1.bf16.msra.mxu0 0
        %1022 = vmatprep.subr.bf16.mxu0 0
        %1023 = vmatpush1.bf16.msra.mxu0 0
        %1024 = vmatprep.subr.bf16.mxu0 0
        %1025 = vmatpush1.bf16.msra.mxu0 0
        %1026 = vmatprep.subr.bf16.mxu0 0
        %1027 = vmatpush1.bf16.msra.mxu0 0
        %1028 = vmatprep.subr.bf16.mxu0 0
        %1029 = vmatpush1.bf16.msra.mxu0 0
        %1030 = vmatprep.subr.bf16.mxu0 %v989
        %1031 = vmatpush1.bf16.msra.mxu0 %v988
        %1032 = vmatprep.subr.bf16.mxu0 0
        %1033 = vmatpush2.bf16.msra.mxu0 0
        %1034 = vmatprep.subr.bf16.mxu0 0
        %1035 = vmatpush2.bf16.msra.mxu0 0
        %1036 = vmatprep.subr.bf16.mxu0 0
        %1037 = vmatpush2.bf16.msra.mxu0 0
        %1038 = vmatprep.subr.bf16.mxu0 0
        %1039 = vmatpush2.bf16.msra.mxu0 0
        %1040 = vmatprep.subr.bf16.mxu0 0
        %1041 = vmatpush2.bf16.msra.mxu0 0
        %1042 = vmatprep.subr.bf16.mxu0 0
        %1043 = vmatpush2.bf16.msra.mxu0 0
        %1044 = vmatprep.subr.bf16.mxu0 0
        %1045 = vmatpush2.bf16.msra.mxu0 0
        %1046 = vmatprep.subr.bf16.mxu0 0
        %1047 = vmatpush2.bf16.msra.mxu0 0
        %1048 = vmatprep.mubr.bf16.mxu0 0
        %1049 = vmatmul.mubr.bf16.gmra.mxu0 %v993
        %v1050 = vpop.f32.mrf.mxu0
        %v1051 = vadd.f32 0.0, %v1050
        %v1052 = vpop.f32.mrf.mxu0
        %v1053 = vadd.f32 0.0, %v1052
        %v1054 = vpop.f32.mrf.mxu0
        %v1055 = vadd.f32 0.0, %v1054
        %v1056 = vpop.f32.mrf.mxu0
        %v1057 = vadd.f32 0.0, %v1056
        %1058 = vmatprep.mubr.bf16.mxu0 0
        %1059 = vmatmul.mubr.bf16.gmra.mxu0 %v996
        %v1060 = vpop.f32.mrf.mxu0
        %v1061 = vadd.f32 0.0, %v1060
        %v1062 = vpop.f32.mrf.mxu0
        %v1063 = vadd.f32 0.0, %v1062
        %v1064 = vpop.f32.mrf.mxu0
        %v1065 = vadd.f32 0.0, %v1064
        %v1066 = vpop.f32.mrf.mxu0
        %v1067 = vadd.f32 0.0, %v1066
        %1068 = vmatprep.mubr.bf16.mxu0 0
        %1069 = vmatmul.mubr.bf16.gmra.mxu0 %v999
        %v1070 = vpop.f32.mrf.mxu0
        %v1071 = vadd.f32 0.0, %v1070
        %v1072 = vpop.f32.mrf.mxu0
        %v1073 = vadd.f32 0.0, %v1072
        %v1074 = vpop.f32.mrf.mxu0
        %v1075 = vadd.f32 0.0, %v1074
        %v1076 = vpop.f32.mrf.mxu0
        %v1077 = vadd.f32 0.0, %v1076
        %1078 = vmatprep.mubr.bf16.mxu0 0
        %1079 = vmatmul.mubr.bf16.gmra.mxu0 %v1002
        %v1080 = vpop.f32.mrf.mxu0
        %v1081 = vadd.f32 0.0, %v1080
        %v1082 = vpop.f32.mrf.mxu0
        %v1083 = vadd.f32 0.0, %v1082
        %v1084 = vpop.f32.mrf.mxu0
        %v1085 = vadd.f32 0.0, %v1084
        %v1086 = vpop.f32.mrf.mxu0
        %v1087 = vadd.f32 0.0, %v1086
        %1088 = vmatprep.mubr.bf16.mxu0 0
        %1089 = vmatmul.mubr.bf16.gmra.mxu0 %v1005
        %v1090 = vpop.f32.mrf.mxu0
        %v1091 = vadd.f32 0.0, %v1090
        %v1092 = vpop.f32.mrf.mxu0
        %v1093 = vadd.f32 0.0, %v1092
        %v1094 = vpop.f32.mrf.mxu0
        %v1095 = vadd.f32 0.0, %v1094
        %v1096 = vpop.f32.mrf.mxu0
        %v1097 = vadd.f32 0.0, %v1096
        %1098 = vmatprep.mubr.bf16.mxu0 0
        %1099 = vmatmul.mubr.bf16.gmra.mxu0 %v1008
        %v1100 = vpop.f32.mrf.mxu0
        %v1101 = vadd.f32 0.0, %v1100
        %v1102 = vpop.f32.mrf.mxu0
        %v1103 = vadd.f32 0.0, %v1102
        %v1104 = vpop.f32.mrf.mxu0
        %v1105 = vadd.f32 0.0, %v1104
        %v1106 = vpop.f32.mrf.mxu0
        %v1107 = vadd.f32 0.0, %v1106
        %1108 = vmatprep.mubr.bf16.mxu0 0
        %1109 = vmatmul.mubr.bf16.gmra.mxu0 %v1011
        %v1110 = vpop.f32.mrf.mxu0
        %v1111 = vadd.f32 0.0, %v1110
        %v1112 = vpop.f32.mrf.mxu0
        %v1113 = vadd.f32 0.0, %v1112
        %v1114 = vpop.f32.mrf.mxu0
        %v1115 = vadd.f32 0.0, %v1114
        %v1116 = vpop.f32.mrf.mxu0
        %v1117 = vadd.f32 0.0, %v1116
        %1118 = vmatprep.mubr.bf16.mxu0 0
        %1119 = vmatmul.mubr.bf16.gmra.mxu0 %v1014
        %v1120 = vpop.f32.mrf.mxu0
        %v1121 = vadd.f32 0.0, %v1120
        %v1122 = vpop.f32.mrf.mxu0
        %v1123 = vadd.f32 0.0, %v1122
        %v1124 = vpop.f32.mrf.mxu0
        %v1125 = vadd.f32 0.0, %v1124
        %v1126 = vpop.f32.mrf.mxu0
        %v1127 = vadd.f32 0.0, %v1126
        %1128 = vdwg.mxu0
        %v1129 = vadd.f32 %v846, %v1051
        %v1130 = vadd.f32 %v848, %v1053
        %v1131 = vadd.f32 %v850, %v1055
        %v1132 = vadd.f32 %v852, %v1057
        %v1133 = vadd.f32 %v856, %v1061
        %v1134 = vadd.f32 %v858, %v1063
        %v1135 = vadd.f32 %v860, %v1065
        %v1136 = vadd.f32 %v862, %v1067
        %v1137 = vadd.f32 %v866, %v1071
        %v1138 = vadd.f32 %v868, %v1073
        %v1139 = vadd.f32 %v870, %v1075
        %v1140 = vadd.f32 %v872, %v1077
        %v1141 = vadd.f32 %v876, %v1081
        %v1142 = vadd.f32 %v878, %v1083
        %v1143 = vadd.f32 %v880, %v1085
        %v1144 = vadd.f32 %v882, %v1087
        %v1145 = vadd.f32 %v886, %v1091
        %v1146 = vadd.f32 %v888, %v1093
        %v1147 = vadd.f32 %v890, %v1095
        %v1148 = vadd.f32 %v892, %v1097
        %v1149 = vadd.f32 %v896, %v1101
        %v1150 = vadd.f32 %v898, %v1103
        %v1151 = vadd.f32 %v900, %v1105
        %v1152 = vadd.f32 %v902, %v1107
        %v1153 = vadd.f32 %v906, %v1111
        %v1154 = vadd.f32 %v908, %v1113
        %v1155 = vadd.f32 %v910, %v1115
        %v1156 = vadd.f32 %v912, %v1117
        %v1157 = vadd.f32 %v916, %v1121
        %v1158 = vadd.f32 %v918, %v1123
        %v1159 = vadd.f32 %v920, %v1125
        %v1160 = vadd.f32 %v922, %v1127
        %v1161 = vld [vmem:[%s6] sm:$0x3]
        %v1163 = vlaneseq
        %v1164 = vshrl.u32 %v1163, 7
        %v1165 = vsub.s32 0, %v1164
        %v1166 = vrot.slane %v1161, %v1165
        %v1167 = vlaneseq
        %v1168 = vshrl.u32 %v1167, 7
        %v1169 = vsub.s32 1, %v1168
        %v1170 = vrot.slane %v1161, %v1169
        %v1173 = vadd.f32 %v1129, %v1166
        %v1174 = vadd.f32 %v1130, %v1170
        %v1175 = vadd.f32 %v1131, %v1166
        %v1176 = vadd.f32 %v1132, %v1170
        %v1177 = vadd.f32 %v1133, %v1166
        %v1178 = vadd.f32 %v1134, %v1170
        %v1179 = vadd.f32 %v1135, %v1166
        %v1180 = vadd.f32 %v1136, %v1170
        %v1181 = vadd.f32 %v1137, %v1166
        %v1182 = vadd.f32 %v1138, %v1170
        %v1183 = vadd.f32 %v1139, %v1166
        %v1184 = vadd.f32 %v1140, %v1170
        %v1185 = vadd.f32 %v1141, %v1166
        %v1186 = vadd.f32 %v1142, %v1170
        %v1187 = vadd.f32 %v1143, %v1166
        %v1188 = vadd.f32 %v1144, %v1170
        %v1189 = vadd.f32 %v1145, %v1166
        %v1190 = vadd.f32 %v1146, %v1170
        %v1191 = vadd.f32 %v1147, %v1166
        %v1192 = vadd.f32 %v1148, %v1170
        %v1193 = vadd.f32 %v1149, %v1166
        %v1194 = vadd.f32 %v1150, %v1170
        %v1195 = vadd.f32 %v1151, %v1166
        %v1196 = vadd.f32 %v1152, %v1170
        %v1197 = vadd.f32 %v1153, %v1166
        %v1198 = vadd.f32 %v1154, %v1170
        %v1199 = vadd.f32 %v1155, %v1166
        %v1200 = vadd.f32 %v1156, %v1170
        %v1201 = vadd.f32 %v1157, %v1166
        %v1202 = vadd.f32 %v1158, %v1170
        %v1203 = vadd.f32 %v1159, %v1166
        %v1204 = vadd.f32 %v1160, %v1170
        %v1205 = vmul.f32 %v1173, 0.2
        %v1206 = vmul.f32 %v1175, 0.2
        %v1207 = vmul.f32 %v1177, 0.2
        %v1208 = vmul.f32 %v1179, 0.2
        %v1209 = vmul.f32 %v1181, 0.2
        %v1210 = vmul.f32 %v1183, 0.2
        %v1211 = vmul.f32 %v1185, 0.2
        %v1212 = vmul.f32 %v1187, 0.2
        %v1213 = vmul.f32 %v1189, 0.2
        %v1214 = vmul.f32 %v1191, 0.2
        %v1215 = vmul.f32 %v1193, 0.2
        %v1216 = vmul.f32 %v1195, 0.2
        %v1217 = vmul.f32 %v1197, 0.2
        %v1218 = vmul.f32 %v1199, 0.2
        %v1219 = vmul.f32 %v1201, 0.2
        %v1220 = vmul.f32 %v1203, 0.2
        %v1221 = vmax.f32 %v1173, %v1205
        %v1222 = vmax.f32 %v1175, %v1206
        %v1223 = vmax.f32 %v1177, %v1207
        %v1224 = vmax.f32 %v1179, %v1208
        %v1225 = vmax.f32 %v1181, %v1209
        %v1226 = vmax.f32 %v1183, %v1210
        %v1227 = vmax.f32 %v1185, %v1211
        %v1228 = vmax.f32 %v1187, %v1212
        %v1229 = vmax.f32 %v1189, %v1213
        %v1230 = vmax.f32 %v1191, %v1214
        %v1231 = vmax.f32 %v1193, %v1215
        %v1232 = vmax.f32 %v1195, %v1216
        %v1233 = vmax.f32 %v1197, %v1217
        %v1234 = vmax.f32 %v1199, %v1218
        %v1235 = vmax.f32 %v1201, %v1219
        %v1236 = vmax.f32 %v1203, %v1220
        %v1237 = vpack.c.bf16 %v1222, %v1221
        %v1238 = vpack.c.bf16 %v1224, %v1223
        %v1239 = vpack.c.bf16 %v1226, %v1225
        %v1240 = vpack.c.bf16 %v1228, %v1227
        %v1241 = vpack.c.bf16 %v1230, %v1229
        %v1242 = vpack.c.bf16 %v1232, %v1231
        %v1243 = vpack.c.bf16 %v1234, %v1233
        %v1244 = vpack.c.bf16 %v1236, %v1235
        %v1245 = vld [vmem:[%s7] sm:$0xf]
        %v1246 = vld [vmem:[%s7 + $0x4] sm:$0xf]
        %v1247 = vld [vmem:[%s7 + $0x8] sm:$0xf]
        %v1248 = vld [vmem:[%s7 + $0xc] sm:$0xf]
        %v1249 = vld [vmem:[%s7 + $0x10] sm:$0xf]
        %v1250 = vld [vmem:[%s7 + $0x14] sm:$0xf]
        %v1251 = vld [vmem:[%s7 + $0x18] sm:$0xf]
        %v1252 = vld [vmem:[%s7 + $0x1c] sm:$0xf]
        %v1253 = vld [vmem:[%s7 + $0x20] sm:$0xf]
        %v1254 = vld [vmem:[%s7 + $0x24] sm:$0xf]
        %v1255 = vld [vmem:[%s7 + $0x28] sm:$0xf]
        %v1256 = vld [vmem:[%s7 + $0x2c] sm:$0xf]
        %v1257 = vld [vmem:[%s7 + $0x30] sm:$0xf]
        %v1258 = vld [vmem:[%s7 + $0x34] sm:$0xf]
        %v1259 = vld [vmem:[%s7 + $0x38] sm:$0xf]
        %v1260 = vld [vmem:[%s7 + $0x3c] sm:$0xf]
        %v1261 = vld [vmem:[%s8] sm:$0x1]
        %v1263 = vlaneseq
        %v1264 = vshrl.u32 %v1263, 7
        %v1265 = vsub.s32 0, %v1264
        %v1266 = vrot.slane %v1261, %v1265
        %v1284 = vunpack.c.l.b16 %v1245
        %v1285 = vunpack.c.l.b16 %v1246
        %v1286 = vunpack.c.l.b16 %v1247
        %v1287 = vunpack.c.l.b16 %v1248
        %v1288 = vunpack.c.l.b16 %v1249
        %v1289 = vunpack.c.l.b16 %v1250
        %v1290 = vunpack.c.l.b16 %v1251
        %v1291 = vunpack.c.l.b16 %v1252
        %v1292 = vunpack.c.l.b16 %v1253
        %v1293 = vunpack.c.l.b16 %v1254
        %v1294 = vunpack.c.l.b16 %v1255
        %v1295 = vunpack.c.l.b16 %v1256
        %v1296 = vunpack.c.l.b16 %v1257
        %v1297 = vunpack.c.l.b16 %v1258
        %v1298 = vunpack.c.l.b16 %v1259
        %v1299 = vunpack.c.l.b16 %v1260
        %v1300 = vpack.c.b16 %v1285, %v1284
        %v1301 = vpack.c.b16 %v1287, %v1286
        %v1302 = vpack.c.b16 %v1289, %v1288
        %v1303 = vpack.c.b16 %v1291, %v1290
        %v1304 = vpack.c.b16 %v1293, %v1292
        %v1305 = vpack.c.b16 %v1295, %v1294
        %v1306 = vpack.c.b16 %v1297, %v1296
        %v1307 = vpack.c.b16 %v1299, %v1298
        %1316 = vmatprep.subr.bf16.mxu0 0
        %1317 = vmatpush1.bf16.msra.mxu0 %v1307
        %1318 = vmatprep.subr.bf16.mxu0 0
        %1319 = vmatpush1.bf16.msra.mxu0 %v1306
        %1320 = vmatprep.subr.bf16.mxu0 0
        %1321 = vmatpush1.bf16.msra.mxu0 %v1305
        %1322 = vmatprep.subr.bf16.mxu0 0
        %1323 = vmatpush1.bf16.msra.mxu0 %v1304
        %1324 = vmatprep.subr.bf16.mxu0 0
        %1325 = vmatpush1.bf16.msra.mxu0 %v1303
        %1326 = vmatprep.subr.bf16.mxu0 0
        %1327 = vmatpush1.bf16.msra.mxu0 %v1302
        %1328 = vmatprep.subr.bf16.mxu0 0
        %1329 = vmatpush1.bf16.msra.mxu0 %v1301
        %1330 = vmatprep.subr.bf16.mxu0 0
        %1331 = vmatpush1.bf16.msra.mxu0 %v1300
        %1332 = vmatprep.subr.bf16.mxu0 0
        %1333 = vmatpush2.bf16.msra.mxu0 0
        %1334 = vmatprep.subr.bf16.mxu0 0
        %1335 = vmatpush2.bf16.msra.mxu0 0
        %1336 = vmatprep.subr.bf16.mxu0 0
        %1337 = vmatpush2.bf16.msra.mxu0 0
        %1338 = vmatprep.subr.bf16.mxu0 0
        %1339 = vmatpush2.bf16.msra.mxu0 0
        %1340 = vmatprep.subr.bf16.mxu0 0
        %1341 = vmatpush2.bf16.msra.mxu0 0
        %1342 = vmatprep.subr.bf16.mxu0 0
        %1343 = vmatpush2.bf16.msra.mxu0 0
        %1344 = vmatprep.subr.bf16.mxu0 0
        %1345 = vmatpush2.bf16.msra.mxu0 0
        %1346 = vmatprep.subr.bf16.mxu0 0
        %1347 = vmatpush2.bf16.msra.mxu0 0
        %1348 = vmatprep.mubr.bf16.mxu0 0
        %1349 = vmatmul.mubr.bf16.gmra.mxu0 %v1237
        %v1350 = vpop.f32.mrf.mxu0
        %v1351 = vadd.f32 %v1266, %v1350
        %v1352 = vpop.f32.mrf.mxu0
        %v1353 = vpop.f32.mrf.mxu0
        %v1354 = vadd.f32 %v1266, %v1353
        %v1355 = vpop.f32.mrf.mxu0
        %1356 = vmatprep.mubr.bf16.mxu0 0
        %1357 = vmatmul.mubr.bf16.gmra.mxu0 %v1238
        %v1358 = vpop.f32.mrf.mxu0
        %v1359 = vadd.f32 %v1266, %v1358
        %v1360 = vpop.f32.mrf.mxu0
        %v1361 = vpop.f32.mrf.mxu0
        %v1362 = vadd.f32 %v1266, %v1361
        %v1363 = vpop.f32.mrf.mxu0
        %1364 = vmatprep.mubr.bf16.mxu0 0
        %1365 = vmatmul.mubr.bf16.gmra.mxu0 %v1239
        %v1366 = vpop.f32.mrf.mxu0
        %v1367 = vadd.f32 %v1266, %v1366
        %v1368 = vpop.f32.mrf.mxu0
        %v1369 = vpop.f32.mrf.mxu0
        %v1370 = vadd.f32 %v1266, %v1369
        %v1371 = vpop.f32.mrf.mxu0
        %1372 = vmatprep.mubr.bf16.mxu0 0
        %1373 = vmatmul.mubr.bf16.gmra.mxu0 %v1240
        %v1374 = vpop.f32.mrf.mxu0
        %v1375 = vadd.f32 %v1266, %v1374
        %v1376 = vpop.f32.mrf.mxu0
        %v1377 = vpop.f32.mrf.mxu0
        %v1378 = vadd.f32 %v1266, %v1377
        %v1379 = vpop.f32.mrf.mxu0
        %1380 = vmatprep.mubr.bf16.mxu0 0
        %1381 = vmatmul.mubr.bf16.gmra.mxu0 %v1241
        %v1382 = vpop.f32.mrf.mxu0
        %v1383 = vadd.f32 %v1266, %v1382
        %v1384 = vpop.f32.mrf.mxu0
        %v1385 = vpop.f32.mrf.mxu0
        %v1386 = vadd.f32 %v1266, %v1385
        %v1387 = vpop.f32.mrf.mxu0
        %1388 = vmatprep.mubr.bf16.mxu0 0
        %1389 = vmatmul.mubr.bf16.gmra.mxu0 %v1242
        %v1390 = vpop.f32.mrf.mxu0
        %v1391 = vadd.f32 %v1266, %v1390
        %v1392 = vpop.f32.mrf.mxu0
        %v1393 = vpop.f32.mrf.mxu0
        %v1394 = vadd.f32 %v1266, %v1393
        %v1395 = vpop.f32.mrf.mxu0
        %1396 = vmatprep.mubr.bf16.mxu0 0
        %1397 = vmatmul.mubr.bf16.gmra.mxu0 %v1243
        %v1398 = vpop.f32.mrf.mxu0
        %v1399 = vadd.f32 %v1266, %v1398
        %v1400 = vpop.f32.mrf.mxu0
        %v1401 = vpop.f32.mrf.mxu0
        %v1402 = vadd.f32 %v1266, %v1401
        %v1403 = vpop.f32.mrf.mxu0
        %1404 = vmatprep.mubr.bf16.mxu0 0
        %1405 = vmatmul.mubr.bf16.gmra.mxu0 %v1244
        %v1406 = vpop.f32.mrf.mxu0
        %v1407 = vadd.f32 %v1266, %v1406
        %v1408 = vpop.f32.mrf.mxu0
        %v1409 = vpop.f32.mrf.mxu0
        %v1410 = vadd.f32 %v1266, %v1409
        %v1411 = vpop.f32.mrf.mxu0
        %1412 = vdwg.mxu0
        %v1413 = vmul.f32 %v1174, 0.2
        %v1414 = vmul.f32 %v1176, 0.2
        %v1415 = vmul.f32 %v1178, 0.2
        %v1416 = vmul.f32 %v1180, 0.2
        %v1417 = vmul.f32 %v1182, 0.2
        %v1418 = vmul.f32 %v1184, 0.2
        %v1419 = vmul.f32 %v1186, 0.2
        %v1420 = vmul.f32 %v1188, 0.2
        %v1421 = vmul.f32 %v1190, 0.2
        %v1422 = vmul.f32 %v1192, 0.2
        %v1423 = vmul.f32 %v1194, 0.2
        %v1424 = vmul.f32 %v1196, 0.2
        %v1425 = vmul.f32 %v1198, 0.2
        %v1426 = vmul.f32 %v1200, 0.2
        %v1427 = vmul.f32 %v1202, 0.2
        %v1428 = vmul.f32 %v1204, 0.2
        %v1429 = vmax.f32 %v1174, %v1413
        %v1430 = vmax.f32 %v1176, %v1414
        %v1431 = vmax.f32 %v1178, %v1415
        %v1432 = vmax.f32 %v1180, %v1416
        %v1433 = vmax.f32 %v1182, %v1417
        %v1434 = vmax.f32 %v1184, %v1418
        %v1435 = vmax.f32 %v1186, %v1419
        %v1436 = vmax.f32 %v1188, %v1420
        %v1437 = vmax.f32 %v1190, %v1421
        %v1438 = vmax.f32 %v1192, %v1422
        %v1439 = vmax.f32 %v1194, %v1423
        %v1440 = vmax.f32 %v1196, %v1424
        %v1441 = vmax.f32 %v1198, %v1425
        %v1442 = vmax.f32 %v1200, %v1426
        %v1443 = vmax.f32 %v1202, %v1427
        %v1444 = vmax.f32 %v1204, %v1428
        %v1445 = vpack.c.bf16 %v1430, %v1429
        %v1446 = vpack.c.bf16 %v1432, %v1431
        %v1447 = vpack.c.bf16 %v1434, %v1433
        %v1448 = vpack.c.bf16 %v1436, %v1435
        %v1449 = vpack.c.bf16 %v1438, %v1437
        %v1450 = vpack.c.bf16 %v1440, %v1439
        %v1451 = vpack.c.bf16 %v1442, %v1441
        %v1452 = vpack.c.bf16 %v1444, %v1443
        %v1453 = vld [vmem:[%s9] sm:$0xf]
        %v1454 = vld [vmem:[%s9 + $0x4] sm:$0xf]
        %v1455 = vld [vmem:[%s9 + $0x8] sm:$0xf]
        %v1456 = vld [vmem:[%s9 + $0xc] sm:$0xf]
        %v1457 = vld [vmem:[%s9 + $0x10] sm:$0xf]
        %v1458 = vld [vmem:[%s9 + $0x14] sm:$0xf]
        %v1459 = vld [vmem:[%s9 + $0x18] sm:$0xf]
        %v1460 = vld [vmem:[%s9 + $0x1c] sm:$0xf]
        %v1461 = vld [vmem:[%s9 + $0x20] sm:$0xf]
        %v1462 = vld [vmem:[%s9 + $0x24] sm:$0xf]
        %v1463 = vld [vmem:[%s9 + $0x28] sm:$0xf]
        %v1464 = vld [vmem:[%s9 + $0x2c] sm:$0xf]
        %v1465 = vld [vmem:[%s9 + $0x30] sm:$0xf]
        %v1466 = vld [vmem:[%s9 + $0x34] sm:$0xf]
        %v1467 = vld [vmem:[%s9 + $0x38] sm:$0xf]
        %v1468 = vld [vmem:[%s9 + $0x3c] sm:$0xf]
        %v1469 = vld [vmem:[%s10] sm:$0x1]
        %v1471 = vlaneseq
        %v1472 = vshrl.u32 %v1471, 7
        %v1473 = vsub.s32 0, %v1472
        %v1474 = vrot.slane %v1469, %v1473
        %v1492 = vunpack.c.l.b16 %v1453
        %v1493 = vunpack.c.l.b16 %v1454
        %v1494 = vunpack.c.l.b16 %v1455
        %v1495 = vunpack.c.l.b16 %v1456
        %v1496 = vunpack.c.l.b16 %v1457
        %v1497 = vunpack.c.l.b16 %v1458
        %v1498 = vunpack.c.l.b16 %v1459
        %v1499 = vunpack.c.l.b16 %v1460
        %v1500 = vunpack.c.l.b16 %v1461
        %v1501 = vunpack.c.l.b16 %v1462
        %v1502 = vunpack.c.l.b16 %v1463
        %v1503 = vunpack.c.l.b16 %v1464
        %v1504 = vunpack.c.l.b16 %v1465
        %v1505 = vunpack.c.l.b16 %v1466
        %v1506 = vunpack.c.l.b16 %v1467
        %v1507 = vunpack.c.l.b16 %v1468
        %v1508 = vpack.c.b16 %v1493, %v1492
        %v1509 = vpack.c.b16 %v1495, %v1494
        %v1510 = vpack.c.b16 %v1497, %v1496
        %v1511 = vpack.c.b16 %v1499, %v1498
        %v1512 = vpack.c.b16 %v1501, %v1500
        %v1513 = vpack.c.b16 %v1503, %v1502
        %v1514 = vpack.c.b16 %v1505, %v1504
        %v1515 = vpack.c.b16 %v1507, %v1506
        %1524 = vmatprep.subr.bf16.mxu0 0
        %1525 = vmatpush1.bf16.msra.mxu0 %v1515
        %1526 = vmatprep.subr.bf16.mxu0 0
        %1527 = vmatpush1.bf16.msra.mxu0 %v1514
        %1528 = vmatprep.subr.bf16.mxu0 0
        %1529 = vmatpush1.bf16.msra.mxu0 %v1513
        %1530 = vmatprep.subr.bf16.mxu0 0
        %1531 = vmatpush1.bf16.msra.mxu0 %v1512
        %1532 = vmatprep.subr.bf16.mxu0 0
        %1533 = vmatpush1.bf16.msra.mxu0 %v1511
        %1534 = vmatprep.subr.bf16.mxu0 0
        %1535 = vmatpush1.bf16.msra.mxu0 %v1510
        %1536 = vmatprep.subr.bf16.mxu0 0
        %1537 = vmatpush1.bf16.msra.mxu0 %v1509
        %1538 = vmatprep.subr.bf16.mxu0 0
        %1539 = vmatpush1.bf16.msra.mxu0 %v1508
        %1540 = vmatprep.subr.bf16.mxu0 0
        %1541 = vmatpush2.bf16.msra.mxu0 0
        %1542 = vmatprep.subr.bf16.mxu0 0
        %1543 = vmatpush2.bf16.msra.mxu0 0
        %1544 = vmatprep.subr.bf16.mxu0 0
        %1545 = vmatpush2.bf16.msra.mxu0 0
        %1546 = vmatprep.subr.bf16.mxu0 0
        %1547 = vmatpush2.bf16.msra.mxu0 0
        %1548 = vmatprep.subr.bf16.mxu0 0
        %1549 = vmatpush2.bf16.msra.mxu0 0
        %1550 = vmatprep.subr.bf16.mxu0 0
        %1551 = vmatpush2.bf16.msra.mxu0 0
        %1552 = vmatprep.subr.bf16.mxu0 0
        %1553 = vmatpush2.bf16.msra.mxu0 0
        %1554 = vmatprep.subr.bf16.mxu0 0
        %1555 = vmatpush2.bf16.msra.mxu0 0
        %1556 = vmatprep.mubr.bf16.mxu0 0
        %1557 = vmatmul.mubr.bf16.gmra.mxu0 %v1445
        %v1558 = vpop.f32.mrf.mxu0
        %v1559 = vadd.f32 %v1474, %v1558
        %v1560 = vpop.f32.mrf.mxu0
        %v1561 = vpop.f32.mrf.mxu0
        %v1562 = vadd.f32 %v1474, %v1561
        %v1563 = vpop.f32.mrf.mxu0
        %1564 = vmatprep.mubr.bf16.mxu0 0
        %1565 = vmatmul.mubr.bf16.gmra.mxu0 %v1446
        %v1566 = vpop.f32.mrf.mxu0
        %v1567 = vadd.f32 %v1474, %v1566
        %v1568 = vpop.f32.mrf.mxu0
        %v1569 = vpop.f32.mrf.mxu0
        %v1570 = vadd.f32 %v1474, %v1569
        %v1571 = vpop.f32.mrf.mxu0
        %1572 = vmatprep.mubr.bf16.mxu0 0
        %1573 = vmatmul.mubr.bf16.gmra.mxu0 %v1447
        %v1574 = vpop.f32.mrf.mxu0
        %v1575 = vadd.f32 %v1474, %v1574
        %v1576 = vpop.f32.mrf.mxu0
        %v1577 = vpop.f32.mrf.mxu0
        %v1578 = vadd.f32 %v1474, %v1577
        %v1579 = vpop.f32.mrf.mxu0
        %1580 = vmatprep.mubr.bf16.mxu0 0
        %1581 = vmatmul.mubr.bf16.gmra.mxu0 %v1448
        %v1582 = vpop.f32.mrf.mxu0
        %v1583 = vadd.f32 %v1474, %v1582
        %v1584 = vpop.f32.mrf.mxu0
        %v1585 = vpop.f32.mrf.mxu0
        %v1586 = vadd.f32 %v1474, %v1585
        %v1587 = vpop.f32.mrf.mxu0
        %1588 = vmatprep.mubr.bf16.mxu0 0
        %1589 = vmatmul.mubr.bf16.gmra.mxu0 %v1449
        %v1590 = vpop.f32.mrf.mxu0
        %v1591 = vadd.f32 %v1474, %v1590
        %v1592 = vpop.f32.mrf.mxu0
        %v1593 = vpop.f32.mrf.mxu0
        %v1594 = vadd.f32 %v1474, %v1593
        %v1595 = vpop.f32.mrf.mxu0
        %1596 = vmatprep.mubr.bf16.mxu0 0
        %1597 = vmatmul.mubr.bf16.gmra.mxu0 %v1450
        %v1598 = vpop.f32.mrf.mxu0
        %v1599 = vadd.f32 %v1474, %v1598
        %v1600 = vpop.f32.mrf.mxu0
        %v1601 = vpop.f32.mrf.mxu0
        %v1602 = vadd.f32 %v1474, %v1601
        %v1603 = vpop.f32.mrf.mxu0
        %1604 = vmatprep.mubr.bf16.mxu0 0
        %1605 = vmatmul.mubr.bf16.gmra.mxu0 %v1451
        %v1606 = vpop.f32.mrf.mxu0
        %v1607 = vadd.f32 %v1474, %v1606
        %v1608 = vpop.f32.mrf.mxu0
        %v1609 = vpop.f32.mrf.mxu0
        %v1610 = vadd.f32 %v1474, %v1609
        %v1611 = vpop.f32.mrf.mxu0
        %1612 = vmatprep.mubr.bf16.mxu0 0
        %1613 = vmatmul.mubr.bf16.gmra.mxu0 %v1452
        %v1614 = vpop.f32.mrf.mxu0
        %v1615 = vadd.f32 %v1474, %v1614
        %v1616 = vpop.f32.mrf.mxu0
        %v1617 = vpop.f32.mrf.mxu0
        %v1618 = vadd.f32 %v1474, %v1617
        %v1619 = vpop.f32.mrf.mxu0
        %1620 = vdwg.mxu0
        %v1621 = vmul.f32 %v1559, 0.2
        %v1622 = vmul.f32 %v1562, 0.2
        %v1623 = vmul.f32 %v1567, 0.2
        %v1624 = vmul.f32 %v1570, 0.2
        %v1625 = vmul.f32 %v1575, 0.2
        %v1626 = vmul.f32 %v1578, 0.2
        %v1627 = vmul.f32 %v1583, 0.2
        %v1628 = vmul.f32 %v1586, 0.2
        %v1629 = vmul.f32 %v1591, 0.2
        %v1630 = vmul.f32 %v1594, 0.2
        %v1631 = vmul.f32 %v1599, 0.2
        %v1632 = vmul.f32 %v1602, 0.2
        %v1633 = vmul.f32 %v1607, 0.2
        %v1634 = vmul.f32 %v1610, 0.2
        %v1635 = vmul.f32 %v1615, 0.2
        %v1636 = vmul.f32 %v1618, 0.2
        %v1637 = vmax.f32 %v1559, %v1621
        %v1638 = vmax.f32 %v1562, %v1622
        %v1639 = vmax.f32 %v1567, %v1623
        %v1640 = vmax.f32 %v1570, %v1624
        %v1641 = vmax.f32 %v1575, %v1625
        %v1642 = vmax.f32 %v1578, %v1626
        %v1643 = vmax.f32 %v1583, %v1627
        %v1644 = vmax.f32 %v1586, %v1628
        %v1645 = vmax.f32 %v1591, %v1629
        %v1646 = vmax.f32 %v1594, %v1630
        %v1647 = vmax.f32 %v1599, %v1631
        %v1648 = vmax.f32 %v1602, %v1632
        %v1649 = vmax.f32 %v1607, %v1633
        %v1650 = vmax.f32 %v1610, %v1634
        %v1651 = vmax.f32 %v1615, %v1635
        %v1652 = vmax.f32 %v1618, %v1636
        %v1653 = vpack.c.bf16 %v1638, %v1637
        %v1654 = vpack.c.bf16 %v1640, %v1639
        %v1655 = vpack.c.bf16 %v1642, %v1641
        %v1656 = vpack.c.bf16 %v1644, %v1643
        %v1657 = vpack.c.bf16 %v1646, %v1645
        %v1658 = vpack.c.bf16 %v1648, %v1647
        %v1659 = vpack.c.bf16 %v1650, %v1649
        %v1660 = vpack.c.bf16 %v1652, %v1651
        %v1661 = vld [vmem:[%s11] sm:$0xf]
        %v1662 = vld [vmem:[%s11 + $0x4] sm:$0xf]
        %v1663 = vld [vmem:[%s11 + $0x8] sm:$0xf]
        %v1664 = vld [vmem:[%s11 + $0xc] sm:$0xf]
        %v1665 = vld [vmem:[%s11 + $0x10] sm:$0xf]
        %v1666 = vld [vmem:[%s11 + $0x14] sm:$0xf]
        %v1667 = vld [vmem:[%s11 + $0x18] sm:$0xf]
        %v1668 = vld [vmem:[%s11 + $0x1c] sm:$0xf]
        %v1669 = vld [vmem:[%s12] sm:$0x1]
        %v1671 = vlaneseq
        %v1672 = vshrl.u32 %v1671, 7
        %v1673 = vsub.s32 0, %v1672
        %v1674 = vrot.slane %v1669, %v1673
        %v1684 = vunpack.c.l.b16 %v1661
        %v1685 = vunpack.c.l.b16 %v1662
        %v1686 = vunpack.c.l.b16 %v1663
        %v1687 = vunpack.c.l.b16 %v1664
        %v1688 = vunpack.c.l.b16 %v1665
        %v1689 = vunpack.c.l.b16 %v1666
        %v1690 = vunpack.c.l.b16 %v1667
        %v1691 = vunpack.c.l.b16 %v1668
        %v1692 = vpack.c.b16 %v1685, %v1684
        %v1693 = vpack.c.b16 %v1687, %v1686
        %v1694 = vpack.c.b16 %v1689, %v1688
        %v1695 = vpack.c.b16 %v1691, %v1690
        %vm1700 = vcmask 523264
        %v1702 = vsel %vm1700, %v1653, 0
        %v1705 = vsel %vm1700, %v1654, 0
        %v1708 = vsel %vm1700, %v1655, 0
        %v1711 = vsel %vm1700, %v1656, 0
        %v1714 = vsel %vm1700, %v1657, 0
        %v1717 = vsel %vm1700, %v1658, 0
        %v1720 = vsel %vm1700, %v1659, 0
        %v1723 = vsel %vm1700, %v1660, 0
        %1725 = vmatprep.subr.bf16.mxu0 0
        %1726 = vmatpush1.bf16.msra.mxu0 0
        %1727 = vmatprep.subr.bf16.mxu0 0
        %1728 = vmatpush1.bf16.msra.mxu0 0
        %1729 = vmatprep.subr.bf16.mxu0 0
        %1730 = vmatpush1.bf16.msra.mxu0 0
        %1731 = vmatprep.subr.bf16.mxu0 0
        %1732 = vmatpush1.bf16.msra.mxu0 0
        %1733 = vmatprep.subr.bf16.mxu0 0
        %1734 = vmatpush1.bf16.msra.mxu0 %v1695
        %1735 = vmatprep.subr.bf16.mxu0 0
        %1736 = vmatpush1.bf16.msra.mxu0 %v1694
        %1737 = vmatprep.subr.bf16.mxu0 0
        %1738 = vmatpush1.bf16.msra.mxu0 %v1693
        %1739 = vmatprep.subr.bf16.mxu0 0
        %1740 = vmatpush1.bf16.msra.mxu0 %v1692
        %1741 = vmatprep.subr.bf16.mxu0 0
        %1742 = vmatpush2.bf16.msra.mxu0 0
        %1743 = vmatprep.subr.bf16.mxu0 0
        %1744 = vmatpush2.bf16.msra.mxu0 0
        %1745 = vmatprep.subr.bf16.mxu0 0
        %1746 = vmatpush2.bf16.msra.mxu0 0
        %1747 = vmatprep.subr.bf16.mxu0 0
        %1748 = vmatpush2.bf16.msra.mxu0 0
        %1749 = vmatprep.subr.bf16.mxu0 0
        %1750 = vmatpush2.bf16.msra.mxu0 0
        %1751 = vmatprep.subr.bf16.mxu0 0
        %1752 = vmatpush2.bf16.msra.mxu0 0
        %1753 = vmatprep.subr.bf16.mxu0 0
        %1754 = vmatpush2.bf16.msra.mxu0 0
        %1755 = vmatprep.subr.bf16.mxu0 0
        %1756 = vmatpush2.bf16.msra.mxu0 0
        %1757 = vmatprep.mubr.bf16.mxu0 0
        %1758 = vmatmul.mubr.bf16.gmra.mxu0 %v1702
        %v1759 = vpop.f32.mrf.mxu0
        %v1760 = vadd.f32 %v1674, %v1759
        %v1761 = vpop.f32.mrf.mxu0
        %v1762 = vpop.f32.mrf.mxu0
        %v1763 = vadd.f32 %v1674, %v1762
        %v1764 = vpop.f32.mrf.mxu0
        %1765 = vmatprep.mubr.bf16.mxu0 0
        %1766 = vmatmul.mubr.bf16.gmra.mxu0 %v1705
        %v1767 = vpop.f32.mrf.mxu0
        %v1768 = vadd.f32 %v1674, %v1767
        %v1769 = vpop.f32.mrf.mxu0
        %v1770 = vpop.f32.mrf.mxu0
        %v1771 = vadd.f32 %v1674, %v1770
        %v1772 = vpop.f32.mrf.mxu0
        %1773 = vmatprep.mubr.bf16.mxu0 0
        %1774 = vmatmul.mubr.bf16.gmra.mxu0 %v1708
        %v1775 = vpop.f32.mrf.mxu0
        %v1776 = vadd.f32 %v1674, %v1775
        %v1777 = vpop.f32.mrf.mxu0
        %v1778 = vpop.f32.mrf.mxu0
        %v1779 = vadd.f32 %v1674, %v1778
        %v1780 = vpop.f32.mrf.mxu0
        %1781 = vmatprep.mubr.bf16.mxu0 0
        %1782 = vmatmul.mubr.bf16.gmra.mxu0 %v1711
        %v1783 = vpop.f32.mrf.mxu0
        %v1784 = vadd.f32 %v1674, %v1783
        %v1785 = vpop.f32.mrf.mxu0
        %v1786 = vpop.f32.mrf.mxu0
        %v1787 = vadd.f32 %v1674, %v1786
        %v1788 = vpop.f32.mrf.mxu0
        %1789 = vmatprep.mubr.bf16.mxu0 0
        %1790 = vmatmul.mubr.bf16.gmra.mxu0 %v1714
        %v1791 = vpop.f32.mrf.mxu0
        %v1792 = vadd.f32 %v1674, %v1791
        %v1793 = vpop.f32.mrf.mxu0
        %v1794 = vpop.f32.mrf.mxu0
        %v1795 = vadd.f32 %v1674, %v1794
        %v1796 = vpop.f32.mrf.mxu0
        %1797 = vmatprep.mubr.bf16.mxu0 0
        %1798 = vmatmul.mubr.bf16.gmra.mxu0 %v1717
        %v1799 = vpop.f32.mrf.mxu0
        %v1800 = vadd.f32 %v1674, %v1799
        %v1801 = vpop.f32.mrf.mxu0
        %v1802 = vpop.f32.mrf.mxu0
        %v1803 = vadd.f32 %v1674, %v1802
        %v1804 = vpop.f32.mrf.mxu0
        %1805 = vmatprep.mubr.bf16.mxu0 0
        %1806 = vmatmul.mubr.bf16.gmra.mxu0 %v1720
        %v1807 = vpop.f32.mrf.mxu0
        %v1808 = vadd.f32 %v1674, %v1807
        %v1809 = vpop.f32.mrf.mxu0
        %v1810 = vpop.f32.mrf.mxu0
        %v1811 = vadd.f32 %v1674, %v1810
        %v1812 = vpop.f32.mrf.mxu0
        %1813 = vmatprep.mubr.bf16.mxu0 0
        %1814 = vmatmul.mubr.bf16.gmra.mxu0 %v1723
        %v1815 = vpop.f32.mrf.mxu0
        %v1816 = vadd.f32 %v1674, %v1815
        %v1817 = vpop.f32.mrf.mxu0
        %v1818 = vpop.f32.mrf.mxu0
        %v1819 = vadd.f32 %v1674, %v1818
        %v1820 = vpop.f32.mrf.mxu0
        %1821 = vdwg.mxu0
        %v1822 = vxor.u32 %v1351, 2147483648
        %v1823 = vxor.u32 %v1354, 2147483648
        %v1824 = vxor.u32 %v1359, 2147483648
        %v1825 = vxor.u32 %v1362, 2147483648
        %v1826 = vxor.u32 %v1367, 2147483648
        %v1827 = vxor.u32 %v1370, 2147483648
        %v1828 = vxor.u32 %v1375, 2147483648
        %v1829 = vxor.u32 %v1378, 2147483648
        %v1830 = vxor.u32 %v1383, 2147483648
        %v1831 = vxor.u32 %v1386, 2147483648
        %v1832 = vxor.u32 %v1391, 2147483648
        %v1833 = vxor.u32 %v1394, 2147483648
        %v1834 = vxor.u32 %v1399, 2147483648
        %v1835 = vxor.u32 %v1402, 2147483648
        %v1836 = vxor.u32 %v1407, 2147483648
        %v1837 = vxor.u32 %v1410, 2147483648
        %v1838 = vmul.f32 %v1822, 1.442695
        %v1839 = vpow.pop %v1838
        %v1840 = vmul.f32 %v1823, 1.442695
        %v1841 = vpow.pop %v1840
        %v1842 = vmul.f32 %v1824, 1.442695
        %v1843 = vpow.pop %v1842
        %v1844 = vmul.f32 %v1825, 1.442695
        %v1845 = vpow.pop %v1844
        %v1846 = vmul.f32 %v1826, 1.442695
        %v1847 = vpow.pop %v1846
        %v1848 = vmul.f32 %v1827, 1.442695
        %v1849 = vpow.pop %v1848
        %v1850 = vmul.f32 %v1828, 1.442695
        %v1851 = vpow.pop %v1850
        %v1852 = vmul.f32 %v1829, 1.442695
        %v1853 = vpow.pop %v1852
        %v1854 = vmul.f32 %v1830, 1.442695
        %v1855 = vpow.pop %v1854
        %v1856 = vmul.f32 %v1831, 1.442695
        %v1857 = vpow.pop %v1856
        %v1858 = vmul.f32 %v1832, 1.442695
        %v1859 = vpow.pop %v1858
        %v1860 = vmul.f32 %v1833, 1.442695
        %v1861 = vpow.pop %v1860
        %v1862 = vmul.f32 %v1834, 1.442695
        %v1863 = vpow.pop %v1862
        %v1864 = vmul.f32 %v1835, 1.442695
        %v1865 = vpow.pop %v1864
        %v1866 = vmul.f32 %v1836, 1.442695
        %v1867 = vpow.pop %v1866
        %v1868 = vmul.f32 %v1837, 1.442695
        %v1869 = vpow.pop %v1868
        %v1870 = vadd.f32 %v1839, 1.0
        %v1871 = vadd.f32 %v1841, 1.0
        %v1872 = vadd.f32 %v1843, 1.0
        %v1873 = vadd.f32 %v1845, 1.0
        %v1874 = vadd.f32 %v1847, 1.0
        %v1875 = vadd.f32 %v1849, 1.0
        %v1876 = vadd.f32 %v1851, 1.0
        %v1877 = vadd.f32 %v1853, 1.0
        %v1878 = vadd.f32 %v1855, 1.0
        %v1879 = vadd.f32 %v1857, 1.0
        %v1880 = vadd.f32 %v1859, 1.0
        %v1881 = vadd.f32 %v1861, 1.0
        %v1882 = vadd.f32 %v1863, 1.0
        %v1883 = vadd.f32 %v1865, 1.0
        %v1884 = vadd.f32 %v1867, 1.0
        %v1885 = vadd.f32 %v1869, 1.0
        %v1886 = vrcp.pop %v1870
        %v1887 = vmul.f32 1.0, %v1886
        %v1888 = vrcp.pop %v1871
        %v1889 = vmul.f32 1.0, %v1888
        %v1890 = vrcp.pop %v1872
        %v1891 = vmul.f32 1.0, %v1890
        %v1892 = vrcp.pop %v1873
        %v1893 = vmul.f32 1.0, %v1892
        %v1894 = vrcp.pop %v1874
        %v1895 = vmul.f32 1.0, %v1894
        %v1896 = vrcp.pop %v1875
        %v1897 = vmul.f32 1.0, %v1896
        %v1898 = vrcp.pop %v1876
        %v1899 = vmul.f32 1.0, %v1898
        %v1900 = vrcp.pop %v1877
        %v1901 = vmul.f32 1.0, %v1900
        %v1902 = vrcp.pop %v1878
        %v1903 = vmul.f32 1.0, %v1902
        %v1904 = vrcp.pop %v1879
        %v1905 = vmul.f32 1.0, %v1904
        %v1906 = vrcp.pop %v1880
        %v1907 = vmul.f32 1.0, %v1906
        %v1908 = vrcp.pop %v1881
        %v1909 = vmul.f32 1.0, %v1908
        %v1910 = vrcp.pop %v1882
        %v1911 = vmul.f32 1.0, %v1910
        %v1912 = vrcp.pop %v1883
        %v1913 = vmul.f32 1.0, %v1912
        %v1914 = vrcp.pop %v1884
        %v1915 = vmul.f32 1.0, %v1914
        %v1916 = vrcp.pop %v1885
        %v1917 = vmul.f32 1.0, %v1916
        %v1918 = vmul.f32 %v1887, %v532
        %v1919 = vmul.f32 %v1889, %v533
        %v1920 = vmul.f32 %v1891, %v534
        %v1921 = vmul.f32 %v1893, %v535
        %v1922 = vmul.f32 %v1895, %v536
        %v1923 = vmul.f32 %v1897, %v537
        %v1924 = vmul.f32 %v1899, %v538
        %v1925 = vmul.f32 %v1901, %v539
        %v1926 = vmul.f32 %v1903, %v540
        %v1927 = vmul.f32 %v1905, %v541
        %v1928 = vmul.f32 %v1907, %v542
        %v1929 = vmul.f32 %v1909, %v543
        %v1930 = vmul.f32 %v1911, %v544
        %v1931 = vmul.f32 %v1913, %v545
        %v1932 = vmul.f32 %v1915, %v546
        %v1933 = vmul.f32 %v1917, %v547
        %v1934 = vstv %s530
        %v1935 = vmul.f32 %v1918, %v1934
        %v1936 = vmul.f32 %v1919, %v1934
        %v1937 = vmul.f32 %v1920, %v1934
        %v1938 = vmul.f32 %v1921, %v1934
        %v1939 = vmul.f32 %v1922, %v1934
        %v1940 = vmul.f32 %v1923, %v1934
        %v1941 = vmul.f32 %v1924, %v1934
        %v1942 = vmul.f32 %v1925, %v1934
        %v1943 = vmul.f32 %v1926, %v1934
        %v1944 = vmul.f32 %v1927, %v1934
        %v1945 = vmul.f32 %v1928, %v1934
        %v1946 = vmul.f32 %v1929, %v1934
        %v1947 = vmul.f32 %v1930, %v1934
        %v1948 = vmul.f32 %v1931, %v1934
        %v1949 = vmul.f32 %v1932, %v1934
        %v1950 = vmul.f32 %v1933, %v1934
        %v1951 = vstv %s531
        %v1952 = vmul.f32 %v1760, %v1951
        %v1953 = vmul.f32 %v1763, %v1951
        %v1954 = vmul.f32 %v1768, %v1951
        %v1955 = vmul.f32 %v1771, %v1951
        %v1956 = vmul.f32 %v1776, %v1951
        %v1957 = vmul.f32 %v1779, %v1951
        %v1958 = vmul.f32 %v1784, %v1951
        %v1959 = vmul.f32 %v1787, %v1951
        %v1960 = vmul.f32 %v1792, %v1951
        %v1961 = vmul.f32 %v1795, %v1951
        %v1962 = vmul.f32 %v1800, %v1951
        %v1963 = vmul.f32 %v1803, %v1951
        %v1964 = vmul.f32 %v1808, %v1951
        %v1965 = vmul.f32 %v1811, %v1951
        %v1966 = vmul.f32 %v1816, %v1951
        %v1967 = vmul.f32 %v1819, %v1951
        %v1968 = vadd.f32 %v1935, %v1952
        %v1969 = vadd.f32 %v1936, %v1953
        %v1970 = vadd.f32 %v1937, %v1954
        %v1971 = vadd.f32 %v1938, %v1955
        %v1972 = vadd.f32 %v1939, %v1956
        %v1973 = vadd.f32 %v1940, %v1957
        %v1974 = vadd.f32 %v1941, %v1958
        %v1975 = vadd.f32 %v1942, %v1959
        %v1976 = vadd.f32 %v1943, %v1960
        %v1977 = vadd.f32 %v1944, %v1961
        %v1978 = vadd.f32 %v1945, %v1962
        %v1979 = vadd.f32 %v1946, %v1963
        %v1980 = vadd.f32 %v1947, %v1964
        %v1981 = vadd.f32 %v1948, %v1965
        %v1982 = vadd.f32 %v1949, %v1966
        %v1983 = vadd.f32 %v1950, %v1967
        %1984 = vst.msk [vmem:[%s527] sm:$0xff] %vm786, %v1968
        %1985 = vst.msk [vmem:[%s527 + $0x8] sm:$0xff] %vm786, %v1969
        %1986 = vst.msk [vmem:[%s527 + $0x10] sm:$0xff] %vm786, %v1970
        %1987 = vst.msk [vmem:[%s527 + $0x18] sm:$0xff] %vm786, %v1971
        %1988 = vst.msk [vmem:[%s527 + $0x20] sm:$0xff] %vm786, %v1972
        %1989 = vst.msk [vmem:[%s527 + $0x28] sm:$0xff] %vm786, %v1973
        %1990 = vst.msk [vmem:[%s527 + $0x30] sm:$0xff] %vm786, %v1974
        %1991 = vst.msk [vmem:[%s527 + $0x38] sm:$0xff] %vm786, %v1975
        %1992 = vst.msk [vmem:[%s527 + $0x40] sm:$0xff] %vm786, %v1976
        %1993 = vst.msk [vmem:[%s527 + $0x48] sm:$0xff] %vm786, %v1977
        %1994 = vst.msk [vmem:[%s527 + $0x50] sm:$0xff] %vm786, %v1978
        %1995 = vst.msk [vmem:[%s527 + $0x58] sm:$0xff] %vm786, %v1979
        %1996 = vst.msk [vmem:[%s527 + $0x60] sm:$0xff] %vm786, %v1980
        %1997 = vst.msk [vmem:[%s527 + $0x68] sm:$0xff] %vm786, %v1981
        %1998 = vst.msk [vmem:[%s527 + $0x70] sm:$0xff] %vm786, %v1982
        %1999 = vst.msk [vmem:[%s527 + $0x78] sm:$0xff] %vm786, %v1983
        %s2000 = smul.u32 16, %s26
        %p2001 = scmp.lt.s32.totalorder %s2000, 31
        %s2002 = scalar_select %p2001, %s2000, 31
        %s2003 = smul.addr %s2002, 8
        %s2004 = scalar_lea.vmem %s14, %s2003
        // Predicated region
        $region81: #{tpu_custom_call.1} parent=75 // pred_check
          %p2005 = pneg %p353
        $region82: #{tpu_custom_call.1} parent=75 // pred_check_branch
          %2007 = sbr.rel (%p2005) target = $region84
        $region83: #{tpu_custom_call.1} parent=75 // pred_region
          %s2008 = smul.u32 16, %s26
        $region84: #{tpu_custom_call.1} parent=75 // pred_fallthru
          _
      $region76: #{tpu_custom_call.1} parent=5 // pred_fallthru
        _
      %p2009 = scmp.le.s32.totalorder 2, %s21
      // Predicated region
      $region85: #{tpu_custom_call.1} parent=5 // pred_check
        %p2010 = pneg %p2009
      $region86: #{tpu_custom_call.1} parent=5 // pred_check_branch
        %2012 = sbr.rel (%p2010) target = $region88
      $region87: #{tpu_custom_call.1} parent=5 // pred_region
        %s2013 = ssub.s32 %s21, 2
        // Predicated region
        $region89: #{tpu_custom_call.1} parent=87 // pred_check
          %p2014 = pneg %p359
        $region90: #{tpu_custom_call.1} parent=87 // pred_check_branch
          %2016 = sbr.rel (%p2014) target = $region92
        $region91: #{tpu_custom_call.1} parent=87 // pred_region
          %s2017 = smul.u32 16, %s27
          %p2018 = scmp.lt.s32.totalorder %s2017, 31
          %s2019 = scalar_select %p2018, %s2017, 31
          %s2020 = smul.addr %s2019, 8
          %s2021 = scalar_lea.vmem %s14, %s2020
        $region92: #{tpu_custom_call.1} parent=87 // pred_fallthru
          _
      $region88: #{tpu_custom_call.1} parent=5 // pred_fallthru
        _
    $region6: #{tpu_custom_call.1} parent=1 // loop_footer
      %s25 = sadd.s32 1, %s21
    $region7: #{tpu_custom_call.1} parent=1 // loop_footer_branch
      %20 = sbr.rel target = $region3
    $region8: #{tpu_custom_call.1} parent=1 // loop_exit
      _
    %2022 = vsyncpa [#allocation3], 1
    %s2023 = scalar_lea.sflag [#allocation3], 1
    %2024 = vsyncpa %s2023, 1

// kernel: tpu_custom_call.1
$region0: #{tpu_custom_call.1}
  #allocation0 [shape = 'u32[]', space=smem, size = 0x4, offset = 0x4, fixed_abs, tag = 'smem constant byte address 0x4 - core index']
  #allocation1 [shape = 'u32[144,128]{1,0:T(1,128)}', space=vmem, size = 0x12000, scoped, tag = 'internal scratch']
  %s0 = inlined_call_operand.vmem [shape: f32[256,32], index: 0, kind: input, shape index: {}]
  %s1 = inlined_call_operand.vmem [shape: bf16[256,16], index: 1, kind: input, shape index: {}]
  %s2 = inlined_call_operand.vmem [shape: bf16[256,16], index: 2, kind: input, shape index: {}]
  %s3 = inlined_call_operand.vmem [shape: bf16[32,256], index: 3, kind: input, shape index: {}]
  %s4 = inlined_call_operand.vmem [shape: bf16[16,256], index: 4, kind: input, shape index: {}]
  %s5 = inlined_call_operand.vmem [shape: bf16[16,256], index: 5, kind: input, shape index: {}]
  %s6 = inlined_call_operand.vmem [shape: f32[1,256], index: 6, kind: input, shape index: {}]
  %s7 = inlined_call_operand.vmem [shape: bf16[128,32], index: 7, kind: input, shape index: {}]
  %s8 = inlined_call_operand.vmem [shape: f32[1,32], index: 8, kind: input, shape index: {}]
  %s9 = inlined_call_operand.vmem [shape: bf16[128,64], index: 9, kind: input, shape index: {}]
  %s10 = inlined_call_operand.vmem [shape: f32[1,64], index: 10, kind: input, shape index: {}]
  %s11 = inlined_call_operand.vmem [shape: bf16[64,32], index: 11, kind: input, shape index: {}]
  %s12 = inlined_call_operand.vmem [shape: f32[1,32], index: 12, kind: input, shape index: {}]
  %s13 = inlined_call_operand.vmem [shape: f32[2], index: 13, kind: input, shape index: {}]
  %s14 = inlined_call_operand.vmem [shape: f32[256,32], index: 14, kind: output, shape index: {}]
  %s15 = sld [smem:[#allocation0]]
  $region93: #{tpu_custom_call.1} parent=0
    _
  %s17 = ssub.s32 1, %s15
  %s18 = scalar_select 0, %s17, %s15
  $region1: #{tpu_custom_call.1} parent=0
    #allocation2 [shape = 'u8[512]{0}', space=smem, size = 0x200, scoped, tag = 'input window, operand 13, single buffered']
    #allocation3 [shape = 's32[2]{0}', space=sflag, size = 0x8, scoped, tag = 'scoped memory for tpu_custom_call.1']
    %19 = vsyncpa [#allocation3], 0
    loop: start=0, step=1, limit=4
    $region2: #{tpu_custom_call.1} parent=1 // loop_pre_header
      _
    $region3: #{tpu_custom_call.1} parent=1 // loop_header
      %s21 = sphi 0, %s25
      %p22 = scmp.ge.s32.totalorder %s21, 4
      %s31 = sphi 0, %s33
      %s34 = sphi 0, %s31
      %s35 = sphi 0, %s34
      %s51 = sphi 0, %s35
      %s57 = sphi 0, %s59
      %s60 = sphi 0, %s57
      %s61 = sphi 0, %s60
      %s77 = sphi 0, %s61
      %s83 = sphi 0, %s85
      %s86 = sphi 0, %s83
      %s87 = sphi 0, %s86
      %s103 = sphi 0, %s87
      %s107 = sphi 0, %s107
      %s109 = sphi 0, %s107
      %s110 = sphi 0, %s109
      %s124 = sphi 0, %s110
      %s128 = sphi 0, %s128
      %s130 = sphi 0, %s128
      %s131 = sphi 0, %s130
      %s145 = sphi 0, %s131
      %s149 = sphi 0, %s149
      %s151 = sphi 0, %s149
      %s152 = sphi 0, %s151
      %s166 = sphi 0, %s152
      %s170 = sphi 0, %s170
      %s172 = sphi 0, %s170
      %s173 = sphi 0, %s172
      %s187 = sphi 0, %s173
      %s191 = sphi 0, %s191
      %s193 = sphi 0, %s191
      %s194 = sphi 0, %s193
      %s208 = sphi 0, %s194
      %s212 = sphi 0, %s212
      %s214 = sphi 0, %s212
      %s215 = sphi 0, %s214
      %s229 = sphi 0, %s215
      %s233 = sphi 0, %s233
      %s235 = sphi 0, %s233
      %s236 = sphi 0, %s235
      %s250 = sphi 0, %s236
      %s254 = sphi 0, %s254
      %s256 = sphi 0, %s254
      %s257 = sphi 0, %s256
      %s271 = sphi 0, %s257
      %s275 = sphi 0, %s275
      %s277 = sphi 0, %s275
      %s278 = sphi 0, %s277
      %s292 = sphi 0, %s278
      %s296 = sphi 0, %s296
      %s298 = sphi 0, %s296
      %s299 = sphi 0, %s298
      %s313 = sphi 0, %s299
      %s317 = sphi 0, %s317
      %s319 = sphi 0, %s317
      %s320 = sphi 0, %s319
      %s334 = sphi 0, %s320
      %s340 = sphi 0, %s342
      %s343 = sphi 0, %s340
      %s344 = sphi 0, %s343
      %s360 = sphi 0, %s344
    $region4: #{tpu_custom_call.1} parent=1 // loop_header_branch
      %24 = sbr.rel (%p22) target = $region8
    $region5: #{tpu_custom_call.1} parent=1 // loop_body
      %s26 = ssub.s32 %s21, 1
      %s27 = ssub.s32 %s21, 2
      %s28 = sadd.s32 %s21, 1
      %s29 = ssub.s32 %s21, %s28
      %p30 = scmp.eq.s32.totalorder %s29, 0
      %s32 = sadd.s32 %s31, 1
      %s33 = scalar_select %p30, %s31, %s32
      %p36 = pneg %p30
      %p37 = scmp.eq.s32.totalorder %s21, 1
      %p38 = por %p36, %p37
      %p39 = scmp.ne.s32.totalorder %s31, %s34
      %p40 = scmp.eq.s32.totalorder %s21, 0
      %p41 = por %p39, %p40
      %p42 = scmp.ne.s32.totalorder %s31, %s34
      %p43 = scmp.eq.s32.totalorder %s26, 1
      %p44 = por %p42, %p43
      %p45 = scmp.ne.s32.totalorder %s34, %s35
      %p46 = scmp.eq.s32.totalorder %s26, 0
      %p47 = por %p45, %p46
      %p48 = scmp.ne.s32.totalorder %s34, %s35
      %p49 = scmp.eq.s32.totalorder %s27, 1
      %p50 = por %p48, %p49
      %p52 = scmp.ne.s32.totalorder %s35, %s51
      %p53 = scmp.eq.s32.totalorder %s27, 0
      %p54 = por %p52, %p53
      %s55 = ssub.s32 %s21, %s28
      %p56 = scmp.eq.s32.totalorder %s55, 0
      %s58 = sadd.s32 %s57, 1
      %s59 = scalar_select %p56, %s57, %s58
      %p62 = pneg %p56
      %p63 = scmp.eq.s32.totalorder %s21, 1
      %p64 = por %p62, %p63
      %p65 = scmp.ne.s32.totalorder %s57, %s60
      %p66 = scmp.eq.s32.totalorder %s21, 0
      %p67 = por %p65, %p66
      %p68 = scmp.ne.s32.totalorder %s57, %s60
      %p69 = scmp.eq.s32.totalorder %s26, 1
      %p70 = por %p68, %p69
      %p71 = scmp.ne.s32.totalorder %s60, %s61
      %p72 = scmp.eq.s32.totalorder %s26, 0
      %p73 = por %p71, %p72
      %p74 = scmp.ne.s32.totalorder %s60, %s61
      %p75 = scmp.eq.s32.totalorder %s27, 1
      %p76 = por %p74, %p75
      %p78 = scmp.ne.s32.totalorder %s61, %s77
      %p79 = scmp.eq.s32.totalorder %s27, 0
      %p80 = por %p78, %p79
      %s81 = ssub.s32 %s21, %s28
      %p82 = scmp.eq.s32.totalorder %s81, 0
      %s84 = sadd.s32 %s83, 1
      %s85 = scalar_select %p82, %s83, %s84
      %p88 = pneg %p82
      %p89 = scmp.eq.s32.totalorder %s21, 1
      %p90 = por %p88, %p89
      %p91 = scmp.ne.s32.totalorder %s83, %s86
      %p92 = scmp.eq.s32.totalorder %s21, 0
      %p93 = por %p91, %p92
      %p94 = scmp.ne.s32.totalorder %s83, %s86
      %p95 = scmp.eq.s32.totalorder %s26, 1
      %p96 = por %p94, %p95
      %p97 = scmp.ne.s32.totalorder %s86, %s87
      %p98 = scmp.eq.s32.totalorder %s26, 0
      %p99 = por %p97, %p98
      %p100 = scmp.ne.s32.totalorder %s86, %s87
      %p101 = scmp.eq.s32.totalorder %s27, 1
      %p102 = por %p100, %p101
      %p104 = scmp.ne.s32.totalorder %s87, %s103
      %p105 = scmp.eq.s32.totalorder %s27, 0
      %p106 = por %p104, %p105
      %s108 = sadd.s32 %s107, 1
      %p111 = scmp.eq.s32.totalorder %s21, 1
      %p112 = scmp.ne.s32.totalorder %s107, %s109
      %p113 = scmp.eq.s32.totalorder %s21, 0
      %p114 = por %p112, %p113
      %p115 = scmp.ne.s32.totalorder %s107, %s109
      %p116 = scmp.eq.s32.totalorder %s26, 1
      %p117 = por %p115, %p116
      %p118 = scmp.ne.s32.totalorder %s109, %s110
      %p119 = scmp.eq.s32.totalorder %s26, 0
      %p120 = por %p118, %p119
      %p121 = scmp.ne.s32.totalorder %s109, %s110
      %p122 = scmp.eq.s32.totalorder %s27, 1
      %p123 = por %p121, %p122
      %p125 = scmp.ne.s32.totalorder %s110, %s124
      %p126 = scmp.eq.s32.totalorder %s27, 0
      %p127 = por %p125, %p126
      %s129 = sadd.s32 %s128, 1
      %p132 = scmp.eq.s32.totalorder %s21, 1
      %p133 = scmp.ne.s32.totalorder %s128, %s130
      %p134 = scmp.eq.s32.totalorder %s21, 0
      %p135 = por %p133, %p134
      %p136 = scmp.ne.s32.totalorder %s128, %s130
      %p137 = scmp.eq.s32.totalorder %s26, 1
      %p138 = por %p136, %p137
      %p139 = scmp.ne.s32.totalorder %s130, %s131
      %p140 = scmp.eq.s32.totalorder %s26, 0
      %p141 = por %p139, %p140
      %p142 = scmp.ne.s32.totalorder %s130, %s131
      %p143 = scmp.eq.s32.totalorder %s27, 1
      %p144 = por %p142, %p143
      %p146 = scmp.ne.s32.totalorder %s131, %s145
      %p147 = scmp.eq.s32.totalorder %s27, 0
      %p148 = por %p146, %p147
      %s150 = sadd.s32 %s149, 1
      %p153 = scmp.eq.s32.totalorder %s21, 1
      %p154 = scmp.ne.s32.totalorder %s149, %s151
      %p155 = scmp.eq.s32.totalorder %s21, 0
      %p156 = por %p154, %p155
      %p157 = scmp.ne.s32.totalorder %s149, %s151
      %p158 = scmp.eq.s32.totalorder %s26, 1
      %p159 = por %p157, %p158
      %p160 = scmp.ne.s32.totalorder %s151, %s152
      %p161 = scmp.eq.s32.totalorder %s26, 0
      %p162 = por %p160, %p161
      %p163 = scmp.ne.s32.totalorder %s151, %s152
      %p164 = scmp.eq.s32.totalorder %s27, 1
      %p165 = por %p163, %p164
      %p167 = scmp.ne.s32.totalorder %s152, %s166
      %p168 = scmp.eq.s32.totalorder %s27, 0
      %p169 = por %p167, %p168
      %s171 = sadd.s32 %s170, 1
      %p174 = scmp.eq.s32.totalorder %s21, 1
      %p175 = scmp.ne.s32.totalorder %s170, %s172
      %p176 = scmp.eq.s32.totalorder %s21, 0
      %p177 = por %p175, %p176
      %p178 = scmp.ne.s32.totalorder %s170, %s172
      %p179 = scmp.eq.s32.totalorder %s26, 1
      %p180 = por %p178, %p179
      %p181 = scmp.ne.s32.totalorder %s172, %s173
      %p182 = scmp.eq.s32.totalorder %s26, 0
      %p183 = por %p181, %p182
      %p184 = scmp.ne.s32.totalorder %s172, %s173
      %p185 = scmp.eq.s32.totalorder %s27, 1
      %p186 = por %p184, %p185
      %p188 = scmp.ne.s32.totalorder %s173, %s187
      %p189 = scmp.eq.s32.totalorder %s27, 0
      %p190 = por %p188, %p189
      %s192 = sadd.s32 %s191, 1
      %p195 = scmp.eq.s32.totalorder %s21, 1
      %p196 = scmp.ne.s32.totalorder %s191, %s193
      %p197 = scmp.eq.s32.totalorder %s21, 0
      %p198 = por %p196, %p197
      %p199 = scmp.ne.s32.totalorder %s191, %s193
      %p200 = scmp.eq.s32.totalorder %s26, 1
      %p201 = por %p199, %p200
      %p202 = scmp.ne.s32.totalorder %s193, %s194
      %p203 = scmp.eq.s32.totalorder %s26, 0
      %p204 = por %p202, %p203
      %p205 = scmp.ne.s32.totalorder %s193, %s194
      %p206 = scmp.eq.s32.totalorder %s27, 1
      %p207 = por %p205, %p206
      %p209 = scmp.ne.s32.totalorder %s194, %s208
      %p210 = scmp.eq.s32.totalorder %s27, 0
      %p211 = por %p209, %p210
      %s213 = sadd.s32 %s212, 1
      %p216 = scmp.eq.s32.totalorder %s21, 1
      %p217 = scmp.ne.s32.totalorder %s212, %s214
      %p218 = scmp.eq.s32.totalorder %s21, 0
      %p219 = por %p217, %p218
      %p220 = scmp.ne.s32.totalorder %s212, %s214
      %p221 = scmp.eq.s32.totalorder %s26, 1
      %p222 = por %p220, %p221
      %p223 = scmp.ne.s32.totalorder %s214, %s215
      %p224 = scmp.eq.s32.totalorder %s26, 0
      %p225 = por %p223, %p224
      %p226 = scmp.ne.s32.totalorder %s214, %s215
      %p227 = scmp.eq.s32.totalorder %s27, 1
      %p228 = por %p226, %p227
      %p230 = scmp.ne.s32.totalorder %s215, %s229
      %p231 = scmp.eq.s32.totalorder %s27, 0
      %p232 = por %p230, %p231
      %s234 = sadd.s32 %s233, 1
      %p237 = scmp.eq.s32.totalorder %s21, 1
      %p238 = scmp.ne.s32.totalorder %s233, %s235
      %p239 = scmp.eq.s32.totalorder %s21, 0
      %p240 = por %p238, %p239
      %p241 = scmp.ne.s32.totalorder %s233, %s235
      %p242 = scmp.eq.s32.totalorder %s26, 1
      %p243 = por %p241, %p242
      %p244 = scmp.ne.s32.totalorder %s235, %s236
      %p245 = scmp.eq.s32.totalorder %s26, 0
      %p246 = por %p244, %p245
      %p247 = scmp.ne.s32.totalorder %s235, %s236
      %p248 = scmp.eq.s32.totalorder %s27, 1
      %p249 = por %p247, %p248
      %p251 = scmp.ne.s32.totalorder %s236, %s250
      %p252 = scmp.eq.s32.totalorder %s27, 0
      %p253 = por %p251, %p252
      %s255 = sadd.s32 %s254, 1
      %p258 = scmp.eq.s32.totalorder %s21, 1
      %p259 = scmp.ne.s32.totalorder %s254, %s256
      %p260 = scmp.eq.s32.totalorder %s21, 0
      %p261 = por %p259, %p260
      %p262 = scmp.ne.s32.totalorder %s254, %s256
      %p263 = scmp.eq.s32.totalorder %s26, 1
      %p264 = por %p262, %p263
      %p265 = scmp.ne.s32.totalorder %s256, %s257
      %p266 = scmp.eq.s32.totalorder %s26, 0
      %p267 = por %p265, %p266
      %p268 = scmp.ne.s32.totalorder %s256, %s257
      %p269 = scmp.eq.s32.totalorder %s27, 1
      %p270 = por %p268, %p269
      %p272 = scmp.ne.s32.totalorder %s257, %s271
      %p273 = scmp.eq.s32.totalorder %s27, 0
      %p274 = por %p272, %p273
      %s276 = sadd.s32 %s275, 1
      %p279 = scmp.eq.s32.totalorder %s21, 1
      %p280 = scmp.ne.s32.totalorder %s275, %s277
      %p281 = scmp.eq.s32.totalorder %s21, 0
      %p282 = por %p280, %p281
      %p283 = scmp.ne.s32.totalorder %s275, %s277
      %p284 = scmp.eq.s32.totalorder %s26, 1
      %p285 = por %p283, %p284
      %p286 = scmp.ne.s32.totalorder %s277, %s278
      %p287 = scmp.eq.s32.totalorder %s26, 0
      %p288 = por %p286, %p287
      %p289 = scmp.ne.s32.totalorder %s277, %s278
      %p290 = scmp.eq.s32.totalorder %s27, 1
      %p291 = por %p289, %p290
      %p293 = scmp.ne.s32.totalorder %s278, %s292
      %p294 = scmp.eq.s32.totalorder %s27, 0
      %p295 = por %p293, %p294
      %s297 = sadd.s32 %s296, 1
      %p300 = scmp.eq.s32.totalorder %s21, 1
      %p301 = scmp.ne.s32.totalorder %s296, %s298
      %p302 = scmp.eq.s32.totalorder %s21, 0
      %p303 = por %p301, %p302
      %p304 = scmp.ne.s32.totalorder %s296, %s298
      %p305 = scmp.eq.s32.totalorder %s26, 1
      %p306 = por %p304, %p305
      %p307 = scmp.ne.s32.totalorder %s298, %s299
      %p308 = scmp.eq.s32.totalorder %s26, 0
      %p309 = por %p307, %p308
      %p310 = scmp.ne.s32.totalorder %s298, %s299
      %p311 = scmp.eq.s32.totalorder %s27, 1
      %p312 = por %p310, %p311
      %p314 = scmp.ne.s32.totalorder %s299, %s313
      %p315 = scmp.eq.s32.totalorder %s27, 0
      %p316 = por %p314, %p315
      %s318 = sadd.s32 %s317, 1
      %p321 = scmp.eq.s32.totalorder %s21, 1
      %p322 = scmp.ne.s32.totalorder %s317, %s319
      %p323 = scmp.eq.s32.totalorder %s21, 0
      %p324 = por %p322, %p323
      %p325 = scmp.ne.s32.totalorder %s317, %s319
      %p326 = scmp.eq.s32.totalorder %s26, 1
      %p327 = por %p325, %p326
      %p328 = scmp.ne.s32.totalorder %s319, %s320
      %p329 = scmp.eq.s32.totalorder %s26, 0
      %p330 = por %p328, %p329
      %p331 = scmp.ne.s32.totalorder %s319, %s320
      %p332 = scmp.eq.s32.totalorder %s27, 1
      %p333 = por %p331, %p332
      %p335 = scmp.ne.s32.totalorder %s320, %s334
      %p336 = scmp.eq.s32.totalorder %s27, 0
      %p337 = por %p335, %p336
      %s338 = ssub.s32 %s21, %s28
      %p339 = scmp.eq.s32.totalorder %s338, 0
      %s341 = sadd.s32 %s340, 1
      %s342 = scalar_select %p339, %s340, %s341
      %p345 = pneg %p339
      %p346 = scmp.eq.s32.totalorder %s21, 1
      %p347 = por %p345, %p346
      %p348 = scmp.ne.s32.totalorder %s340, %s343
      %p349 = scmp.eq.s32.totalorder %s21, 0
      %p350 = por %p348, %p349
      %p351 = scmp.ne.s32.totalorder %s340, %s343
      %p352 = scmp.eq.s32.totalorder %s26, 1
      %p353 = por %p351, %p352
      %p354 = scmp.ne.s32.totalorder %s343, %s344
      %p355 = scmp.eq.s32.totalorder %s26, 0
      %p356 = por %p354, %p355
      %p357 = scmp.ne.s32.totalorder %s343, %s344
      %p358 = scmp.eq.s32.totalorder %s27, 1
      %p359 = por %p357, %p358
      %p361 = scmp.ne.s32.totalorder %s344, %s360
      %p362 = scmp.eq.s32.totalorder %s27, 0
      %p363 = por %p361, %p362
      %p364 = scmp.le.s32.totalorder 1, %s21
      %p365 = scmp.lt.s32.totalorder %s21, 3
      %p366 = pnand %p364, %p365
      %p367 = pneg %p366
      // Predicated region
      $region9: #{tpu_custom_call.1} parent=5 // pred_check
        _
      $region10: #{tpu_custom_call.1} parent=5 // pred_check_branch
        %369 = sbr.rel (%p366) target = $region12
      $region11: #{tpu_custom_call.1} parent=5 // pred_region
        %s370 = ssub.s32 %s21, 1
        // Predicated region
        $region13: #{tpu_custom_call.1} parent=11 // pred_check
          %p371 = pneg %p120
        $region14: #{tpu_custom_call.1} parent=11 // pred_check_branch
          %373 = sbr.rel (%p371) target = $region16
        $region15: #{tpu_custom_call.1} parent=11 // pred_region
          _
        $region16: #{tpu_custom_call.1} parent=11 // pred_fallthru
          _
        // Predicated region
        $region17: #{tpu_custom_call.1} parent=11 // pred_check
          %p374 = pneg %p141
        $region18: #{tpu_custom_call.1} parent=11 // pred_check_branch
          %376 = sbr.rel (%p374) target = $region20
        $region19: #{tpu_custom_call.1} parent=11 // pred_region
          _
        $region20: #{tpu_custom_call.1} parent=11 // pred_fallthru
          _
        // Predicated region
        $region21: #{tpu_custom_call.1} parent=11 // pred_check
          %p377 = pneg %p162
        $region22: #{tpu_custom_call.1} parent=11 // pred_check_branch
          %379 = sbr.rel (%p377) target = $region24
        $region23: #{tpu_custom_call.1} parent=11 // pred_region
          _
        $region24: #{tpu_custom_call.1} parent=11 // pred_fallthru
          _
        // Predicated region
        $region25: #{tpu_custom_call.1} parent=11 // pred_check
          %p380 = pneg %p183
        $region26: #{tpu_custom_call.1} parent=11 // pred_check_branch
          %382 = sbr.rel (%p380) target = $region28
        $region27: #{tpu_custom_call.1} parent=11 // pred_region
          _
        $region28: #{tpu_custom_call.1} parent=11 // pred_fallthru
          _
        // Predicated region
        $region29: #{tpu_custom_call.1} parent=11 // pred_check
          %p383 = pneg %p204
        $region30: #{tpu_custom_call.1} parent=11 // pred_check_branch
          %385 = sbr.rel (%p383) target = $region32
        $region31: #{tpu_custom_call.1} parent=11 // pred_region
          _
        $region32: #{tpu_custom_call.1} parent=11 // pred_fallthru
          _
        // Predicated region
        $region33: #{tpu_custom_call.1} parent=11 // pred_check
          %p386 = pneg %p225
        $region34: #{tpu_custom_call.1} parent=11 // pred_check_branch
          %388 = sbr.rel (%p386) target = $region36
        $region35: #{tpu_custom_call.1} parent=11 // pred_region
          _
        $region36: #{tpu_custom_call.1} parent=11 // pred_fallthru
          _
        // Predicated region
        $region37: #{tpu_custom_call.1} parent=11 // pred_check
          %p389 = pneg %p246
        $region38: #{tpu_custom_call.1} parent=11 // pred_check_branch
          %391 = sbr.rel (%p389) target = $region40
        $region39: #{tpu_custom_call.1} parent=11 // pred_region
          _
        $region40: #{tpu_custom_call.1} parent=11 // pred_fallthru
          _
        // Predicated region
        $region41: #{tpu_custom_call.1} parent=11 // pred_check
          %p392 = pneg %p267
        $region42: #{tpu_custom_call.1} parent=11 // pred_check_branch
          %394 = sbr.rel (%p392) target = $region44
        $region43: #{tpu_custom_call.1} parent=11 // pred_region
          _
        $region44: #{tpu_custom_call.1} parent=11 // pred_fallthru
          _
        // Predicated region
        $region45: #{tpu_custom_call.1} parent=11 // pred_check
          %p395 = pneg %p288
        $region46: #{tpu_custom_call.1} parent=11 // pred_check_branch
          %397 = sbr.rel (%p395) target = $region48
        $region47: #{tpu_custom_call.1} parent=11 // pred_region
          _
        $region48: #{tpu_custom_call.1} parent=11 // pred_fallthru
          _
        // Predicated region
        $region49: #{tpu_custom_call.1} parent=11 // pred_check
          %p398 = pneg %p309
        $region50: #{tpu_custom_call.1} parent=11 // pred_check_branch
          %400 = sbr.rel (%p398) target = $region52
        $region51: #{tpu_custom_call.1} parent=11 // pred_region
          _
        $region52: #{tpu_custom_call.1} parent=11 // pred_fallthru
          _
        // Predicated region
        $region53: #{tpu_custom_call.1} parent=11 // pred_check
          %p401 = pneg %p330
        $region54: #{tpu_custom_call.1} parent=11 // pred_check_branch
          %403 = sbr.rel (%p401) target = $region56
        $region55: #{tpu_custom_call.1} parent=11 // pred_region
          %s405 = ssub.s32 16, 16
          %406 = vsyncadd [#allocation3], %s405
          %s408 = sshll.u32 %s13, 4
          %s409 = int_to_ptr.vmem [resolvable:$true] %s408
          %411 = dma.vmem_to_smem %s409, 16, [#allocation2], [#allocation3]
        $region56: #{tpu_custom_call.1} parent=11 // pred_fallthru
          _
      $region12: #{tpu_custom_call.1} parent=5 // pred_fallthru
        _
      %p412 = scmp.lt.s32.totalorder %s21, 2
      // Predicated region
      $region57: #{tpu_custom_call.1} parent=5 // pred_check
        %p413 = pneg %p412
      $region58: #{tpu_custom_call.1} parent=5 // pred_check_branch
        %415 = sbr.rel (%p413) target = $region60
      $region59: #{tpu_custom_call.1} parent=5 // pred_region
        // Predicated region
        $region61: #{tpu_custom_call.1} parent=59 // pred_check
          %p416 = pneg %p41
        $region62: #{tpu_custom_call.1} parent=59 // pred_check_branch
          %418 = sbr.rel (%p416) target = $region64
        $region63: #{tpu_custom_call.1} parent=59 // pred_region
          %s419 = smul.u32 16, %s21
          %p420 = scmp.lt.s32.totalorder %s419, 31
          %s421 = scalar_select %p420, %s419, 31
          %s422 = smul.addr %s421, 8
          %s423 = scalar_lea.vmem %s0, %s422
          %s424 = smul.u32 16, %s21
        $region64: #{tpu_custom_call.1} parent=59 // pred_fallthru
          _
        // Predicated region
        $region65: #{tpu_custom_call.1} parent=59 // pred_check
          %p425 = pneg %p67
        $region66: #{tpu_custom_call.1} parent=59 // pred_check_branch
          %427 = sbr.rel (%p425) target = $region68
        $region67: #{tpu_custom_call.1} parent=59 // pred_region
          %s428 = smul.u32 16, %s21
          %p429 = scmp.lt.s32.totalorder %s428, 31
          %s430 = scalar_select %p429, %s428, 31
          %s431 = smul.addr %s430, 4
          %s432 = scalar_lea.vmem %s1, %s431
          %s433 = smul.u32 16, %s21
        $region68: #{tpu_custom_call.1} parent=59 // pred_fallthru
          _
        // Predicated region
        $region69: #{tpu_custom_call.1} parent=59 // pred_check
          %p434 = pneg %p93
        $region70: #{tpu_custom_call.1} parent=59 // pred_check_branch
          %436 = sbr.rel (%p434) target = $region72
        $region71: #{tpu_custom_call.1} parent=59 // pred_region
          %s437 = smul.u32 16, %s21
          %p438 = scmp.lt.s32.totalorder %s437, 31
          %s439 = scalar_select %p438, %s437, 31
          %s440 = smul.addr %s439, 4
          %s441 = scalar_lea.vmem %s2, %s440
          %s442 = smul.u32 16, %s21
        $region72: #{tpu_custom_call.1} parent=59 // pred_fallthru
          _
      $region60: #{tpu_custom_call.1} parent=5 // pred_fallthru
        _
      %p443 = scmp.le.s32.totalorder 1, %s21
      %p444 = scmp.lt.s32.totalorder %s21, 3
      %p445 = pnand %p443, %p444
      %p446 = pneg %p445
      // Predicated region
      $region73: #{tpu_custom_call.1} parent=5 // pred_check
        _
      $region74: #{tpu_custom_call.1} parent=5 // pred_check_branch
        %448 = sbr.rel (%p445) target = $region76
      $region75: #{tpu_custom_call.1} parent=5 // pred_region
        %s449 = ssub.s32 %s21, 1
        // Predicated region
        $region77: #{tpu_custom_call.1} parent=75 // pred_check
          %p450 = pneg %p330
        $region78: #{tpu_custom_call.1} parent=75 // pred_check_branch
          %452 = sbr.rel (%p450) target = $region80
        $region79: #{tpu_custom_call.1} parent=75 // pred_region
          %453 = dma.done [#allocation3], 16
        $region80: #{tpu_custom_call.1} parent=75 // pred_fallthru
          _
        %454 = sfence
        %s455 = smul.u32 16, %s26
        %p456 = scmp.lt.s32.totalorder %s455, 31
        %s457 = scalar_select %p456, %s455, 31
        %s458 = smul.addr %s457, 8
        %s459 = scalar_lea.vmem %s0, %s458
        %p460 = pneg %p47
        %p461 = pneg %p44
        %s462 = smul.u32 16, %s26
        %p463 = scmp.lt.s32.totalorder %s462, 31
        %s464 = scalar_select %p463, %s462, 31
        %s465 = smul.addr %s464, 4
        %s466 = scalar_lea.vmem %s1, %s465
        %p467 = pneg %p73
        %p468 = pneg %p70
        %s469 = smul.u32 16, %s26
        %p470 = scmp.lt.s32.totalorder %s469, 31
        %s471 = scalar_select %p470, %s469, 31
        %s472 = smul.addr %s471, 4
        %s473 = scalar_lea.vmem %s2, %s472
        %p474 = pneg %p99
        %p475 = pneg %p96
        %p476 = pneg %p120
        %p477 = pneg %p117
        %p478 = pneg %p141
        %p479 = pneg %p138
        %p480 = pneg %p162
        %p481 = pneg %p159
        %p482 = pneg %p183
        %p483 = pneg %p180
        %p484 = pneg %p204
        %p485 = pneg %p201
        %p486 = pneg %p225
        %p487 = pneg %p222
        %p488 = pneg %p246
        %p489 = pneg %p243
        %p490 = pneg %p267
        %p491 = pneg %p264
        %p492 = pneg %p288
        %p493 = pneg %p285
        %p494 = pneg %p309
        %p495 = pneg %p306
        %p496 = pneg %p330
        %p497 = pneg %p327
        %p498 = pneg %p356
        %p499 = pneg %p353
        %s500 = smul.u32 16, %s26
        %p501 = scmp.lt.s32.totalorder %s500, 31
        %s502 = scalar_select %p501, %s500, 31
        %s503 = smul.addr %s502, 8
        %s504 = scalar_lea.vmem %s14, %s503
        %s505 = smul.u32 16, %s26
        %p506 = scmp.lt.s32.totalorder %s505, 31
        %s507 = scalar_select %p506, %s505, 31
        %s508 = smul.addr %s507, 8
        %s509 = scalar_lea.vmem %s0, %s508
        %s510 = smul.u32 16, %s26
        %s511 = smul.u32 16, %s26
        %p512 = scmp.lt.s32.totalorder %s511, 31
        %s513 = scalar_select %p512, %s511, 31
        %s514 = smul.addr %s513, 4
        %s515 = scalar_lea.vmem %s1, %s514
        %s516 = smul.u32 16, %s26
        %s517 = smul.u32 16, %s26
        %p518 = scmp.lt.s32.totalorder %s517, 31
        %s519 = scalar_select %p518, %s517, 31
        %s520 = smul.addr %s519, 4
        %s521 = scalar_lea.vmem %s2, %s520
        %s522 = smul.u32 16, %s26
        %s523 = smul.u32 16, %s26
        %p524 = scmp.lt.s32.totalorder %s523, 31
        %s525 = scalar_select %p524, %s523, 31
        %s526 = smul.addr %s525, 8
        %s527 = scalar_lea.vmem %s14, %s526
        %s528 = smul.u32 16, %s26
        %s530 = sld [smem:[#allocation2]]
        %s531 = sld [smem:[#allocation2 + $0x1]]
        %v532 = vld [vmem:[%s509] sm:$0xff]
        %v533 = vld [vmem:[%s509 + $0x8] sm:$0xff]
        %v534 = vld [vmem:[%s509 + $0x10] sm:$0xff]
        %v535 = vld [vmem:[%s509 + $0x18] sm:$0xff]
        %v536 = vld [vmem:[%s509 + $0x20] sm:$0xff]
        %v537 = vld [vmem:[%s509 + $0x28] sm:$0xff]
        %v538 = vld [vmem:[%s509 + $0x30] sm:$0xff]
        %v539 = vld [vmem:[%s509 + $0x38] sm:$0xff]
        %v540 = vld [vmem:[%s509 + $0x40] sm:$0xff]
        %v541 = vld [vmem:[%s509 + $0x48] sm:$0xff]
        %v542 = vld [vmem:[%s509 + $0x50] sm:$0xff]
        %v543 = vld [vmem:[%s509 + $0x58] sm:$0xff]
        %v544 = vld [vmem:[%s509 + $0x60] sm:$0xff]
        %v545 = vld [vmem:[%s509 + $0x68] sm:$0xff]
        %v546 = vld [vmem:[%s509 + $0x70] sm:$0xff]
        %v547 = vld [vmem:[%s509 + $0x78] sm:$0xff]
        %v548 = vpack.c.bf16 %v533, %v532
        %v549 = vpack.c.bf16 %v535, %v534
        %v550 = vpack.c.bf16 %v537, %v536
        %v551 = vpack.c.bf16 %v539, %v538
        %v552 = vpack.c.bf16 %v541, %v540
        %v553 = vpack.c.bf16 %v543, %v542
        %v554 = vpack.c.bf16 %v545, %v544
        %v555 = vpack.c.bf16 %v547, %v546
        %v556 = vld [vmem:[%s3] sm:$0xff]
        %v557 = vld [vmem:[%s3 + $0x8] sm:$0xff]
        %v558 = vld [vmem:[%s3 + $0x10] sm:$0xff]
        %v559 = vld [vmem:[%s3 + $0x18] sm:$0xff]
        %v560 = vld [vmem:[%s515] sm:$0xf]
        %v561 = vld [vmem:[%s515 + $0x4] sm:$0xf]
        %v562 = vld [vmem:[%s515 + $0x8] sm:$0xf]
        %v563 = vld [vmem:[%s515 + $0xc] sm:$0xf]
        %v564 = vld [vmem:[%s515 + $0x10] sm:$0xf]
        %v565 = vld [vmem:[%s515 + $0x14] sm:$0xf]
        %v566 = vld [vmem:[%s515 + $0x18] sm:$0xf]
        %v567 = vld [vmem:[%s515 + $0x1c] sm:$0xf]
        %v568 = vld [vmem:[%s515 + $0x20] sm:$0xf]
        %v569 = vld [vmem:[%s515 + $0x24] sm:$0xf]
        %v570 = vld [vmem:[%s515 + $0x28] sm:$0xf]
        %v571 = vld [vmem:[%s515 + $0x2c] sm:$0xf]
        %v572 = vld [vmem:[%s515 + $0x30] sm:$0xf]
        %v573 = vld [vmem:[%s515 + $0x34] sm:$0xf]
        %v574 = vld [vmem:[%s515 + $0x38] sm:$0xf]
        %v575 = vld [vmem:[%s515 + $0x3c] sm:$0xf]
        %v576 = vld [vmem:[%s4] sm:$0xff]
        %v577 = vld [vmem:[%s4 + $0x8] sm:$0xff]
        %v594 = vunpack.c.l.b16 %v560
        %v595 = vunpack.c.l.b16 %v561
        %v596 = vunpack.c.l.b16 %v562
        %v597 = vunpack.c.l.b16 %v563
        %v598 = vunpack.c.l.b16 %v564
        %v599 = vunpack.c.l.b16 %v565
        %v600 = vunpack.c.l.b16 %v566
        %v601 = vunpack.c.l.b16 %v567
        %v602 = vunpack.c.l.b16 %v568
        %v603 = vunpack.c.l.b16 %v569
        %v604 = vunpack.c.l.b16 %v570
        %v605 = vunpack.c.l.b16 %v571
        %v606 = vunpack.c.l.b16 %v572
        %v607 = vunpack.c.l.b16 %v573
        %v608 = vunpack.c.l.b16 %v574
        %v609 = vunpack.c.l.b16 %v575
        %v610 = vpack.c.b16 %v595, %v594
        %v611 = vpack.c.b16 %v597, %v596
        %v612 = vpack.c.b16 %v599, %v598
        %v613 = vpack.c.b16 %v601, %v600
        %v614 = vpack.c.b16 %v603, %v602
        %v615 = vpack.c.b16 %v605, %v604
        %v616 = vpack.c.b16 %v607, %v606
        %v617 = vpack.c.b16 %v609, %v608
        %v620 = vunpack.c.l.b16 %v576
        %v621 = vunpack.c.h.b16 %v576
        %v622 = vunpack.c.l.b16 %v577
        %v623 = vunpack.c.h.b16 %v577
        %v624 = vpack.c.b16 %v622, %v620
        %v625 = vpack.c.b16 %v623, %v621
        %vm628 = vcmask 130048
        %v630 = vsel %vm628, %v610, 0
        %v633 = vsel %vm628, %v611, 0
        %v636 = vsel %vm628, %v612, 0
        %v639 = vsel %vm628, %v613, 0
        %v642 = vsel %vm628, %v614, 0
        %v645 = vsel %vm628, %v615, 0
        %v648 = vsel %vm628, %v616, 0
        %v651 = vsel %vm628, %v617, 0
        %653 = vmatprep.subr.bf16.mxu0 0
        %654 = vmatpush1.bf16.msra.mxu0 0
        %655 = vmatprep.subr.bf16.mxu0 0
        %656 = vmatpush1.bf16.msra.mxu0 0
        %657 = vmatprep.subr.bf16.mxu0 0
        %658 = vmatpush1.bf16.msra.mxu0 0
        %659 = vmatprep.subr.bf16.mxu0 0
        %660 = vmatpush1.bf16.msra.mxu0 0
        %661 = vmatprep.subr.bf16.mxu0 0
        %662 = vmatpush1.bf16.msra.mxu0 0
        %663 = vmatprep.subr.bf16.mxu0 0
        %664 = vmatpush1.bf16.msra.mxu0 0
        %665 = vmatprep.subr.bf16.mxu0 0
        %666 = vmatpush1.bf16.msra.mxu0 0
        %667 = vmatprep.subr.bf16.mxu0 %v625
        %668 = vmatpush1.bf16.msra.mxu0 %v624
        %669 = vmatprep.subr.bf16.mxu0 0
        %670 = vmatpush2.bf16.msra.mxu0 0
        %671 = vmatprep.subr.bf16.mxu0 0
        %672 = vmatpush2.bf16.msra.mxu0 0
        %673 = vmatprep.subr.bf16.mxu0 0
        %674 = vmatpush2.bf16.msra.mxu0 0
        %675 = vmatprep.subr.bf16.mxu0 0
        %676 = vmatpush2.bf16.msra.mxu0 0
        %677 = vmatprep.subr.bf16.mxu0 0
        %678 = vmatpush2.bf16.msra.mxu0 0
        %679 = vmatprep.subr.bf16.mxu0 0
        %680 = vmatpush2.bf16.msra.mxu0 0
        %681 = vmatprep.subr.bf16.mxu0 0
        %682 = vmatpush2.bf16.msra.mxu0 0
        %683 = vmatprep.subr.bf16.mxu0 0
        %684 = vmatpush2.bf16.msra.mxu0 0
        %685 = vmatprep.mubr.bf16.mxu0 0
        %686 = vmatmul.mubr.bf16.gmra.mxu0 %v630
        %v687 = vpop.f32.mrf.mxu0
        %v688 = vadd.f32 0.0, %v687
        %v689 = vpop.f32.mrf.mxu0
        %v690 = vadd.f32 0.0, %v689
        %v691 = vpop.f32.mrf.mxu0
        %v692 = vadd.f32 0.0, %v691
        %v693 = vpop.f32.mrf.mxu0
        %v694 = vadd.f32 0.0, %v693
        %695 = vmatprep.mubr.bf16.mxu0 0
        %696 = vmatmul.mubr.bf16.gmra.mxu0 %v633
        %v697 = vpop.f32.mrf.mxu0
        %v698 = vadd.f32 0.0, %v697
        %v699 = vpop.f32.mrf.mxu0
        %v700 = vadd.f32 0.0, %v699
        %v701 = vpop.f32.mrf.mxu0
        %v702 = vadd.f32 0.0, %v701
        %v703 = vpop.f32.mrf.mxu0
        %v704 = vadd.f32 0.0, %v703
        %705 = vmatprep.mubr.bf16.mxu0 0
        %706 = vmatmul.mubr.bf16.gmra.mxu0 %v636
        %v707 = vpop.f32.mrf.mxu0
        %v708 = vadd.f32 0.0, %v707
        %v709 = vpop.f32.mrf.mxu0
        %v710 = vadd.f32 0.0, %v709
        %v711 = vpop.f32.mrf.mxu0
        %v712 = vadd.f32 0.0, %v711
        %v713 = vpop.f32.mrf.mxu0
        %v714 = vadd.f32 0.0, %v713
        %715 = vmatprep.mubr.bf16.mxu0 0
        %716 = vmatmul.mubr.bf16.gmra.mxu0 %v639
        %v717 = vpop.f32.mrf.mxu0
        %v718 = vadd.f32 0.0, %v717
        %v719 = vpop.f32.mrf.mxu0
        %v720 = vadd.f32 0.0, %v719
        %v721 = vpop.f32.mrf.mxu0
        %v722 = vadd.f32 0.0, %v721
        %v723 = vpop.f32.mrf.mxu0
        %v724 = vadd.f32 0.0, %v723
        %725 = vmatprep.mubr.bf16.mxu0 0
        %726 = vmatmul.mubr.bf16.gmra.mxu0 %v642
        %v727 = vpop.f32.mrf.mxu0
        %v728 = vadd.f32 0.0, %v727
        %v729 = vpop.f32.mrf.mxu0
        %v730 = vadd.f32 0.0, %v729
        %v731 = vpop.f32.mrf.mxu0
        %v732 = vadd.f32 0.0, %v731
        %v733 = vpop.f32.mrf.mxu0
        %v734 = vadd.f32 0.0, %v733
        %735 = vmatprep.mubr.bf16.mxu0 0
        %736 = vmatmul.mubr.bf16.gmra.mxu0 %v645
        %v737 = vpop.f32.mrf.mxu0
        %v738 = vadd.f32 0.0, %v737
        %v739 = vpop.f32.mrf.mxu0
        %v740 = vadd.f32 0.0, %v739
        %v741 = vpop.f32.mrf.mxu0
        %v742 = vadd.f32 0.0, %v741
        %v743 = vpop.f32.mrf.mxu0
        %v744 = vadd.f32 0.0, %v743
        %745 = vmatprep.mubr.bf16.mxu0 0
        %746 = vmatmul.mubr.bf16.gmra.mxu0 %v648
        %v747 = vpop.f32.mrf.mxu0
        %v748 = vadd.f32 0.0, %v747
        %v749 = vpop.f32.mrf.mxu0
        %v750 = vadd.f32 0.0, %v749
        %v751 = vpop.f32.mrf.mxu0
        %v752 = vadd.f32 0.0, %v751
        %v753 = vpop.f32.mrf.mxu0
        %v754 = vadd.f32 0.0, %v753
        %755 = vmatprep.mubr.bf16.mxu0 0
        %756 = vmatmul.mubr.bf16.gmra.mxu0 %v651
        %v757 = vpop.f32.mrf.mxu0
        %v758 = vadd.f32 0.0, %v757
        %v759 = vpop.f32.mrf.mxu0
        %v760 = vadd.f32 0.0, %v759
        %v761 = vpop.f32.mrf.mxu0
        %v762 = vadd.f32 0.0, %v761
        %v763 = vpop.f32.mrf.mxu0
        %v764 = vadd.f32 0.0, %v763
        %765 = vdwg.mxu0
        %v770 = vunpack.c.l.b16 %v556
        %v771 = vunpack.c.h.b16 %v556
        %v772 = vunpack.c.l.b16 %v557
        %v773 = vunpack.c.h.b16 %v557
        %v774 = vunpack.c.l.b16 %v558
        %v775 = vunpack.c.h.b16 %v558
        %v776 = vunpack.c.l.b16 %v559
        %v777 = vunpack.c.h.b16 %v559
        %v778 = vpack.c.b16 %v772, %v770
        %v779 = vpack.c.b16 %v773, %v771
        %v780 = vpack.c.b16 %v776, %v774
        %v781 = vpack.c.b16 %v777, %v775
        %vm786 = vcmask 261120
        %v788 = vsel %vm786, %v548, 0
        %v791 = vsel %vm786, %v549, 0
        %v794 = vsel %vm786, %v550, 0
        %v797 = vsel %vm786, %v551, 0
        %v800 = vsel %vm786, %v552, 0
        %v803 = vsel %vm786, %v553, 0
        %v806 = vsel %vm786, %v554, 0
        %v809 = vsel %vm786, %v555, 0
        %811 = vmatprep.subr.bf16.mxu0 0
        %812 = vmatpush1.bf16.msra.mxu0 0
        %813 = vmatprep.subr.bf16.mxu0 0
        %814 = vmatpush1.bf16.msra.mxu0 0
        %815 = vmatprep.subr.bf16.mxu0 0
        %816 = vmatpush1.bf16.msra.mxu0 0
        %817 = vmatprep.subr.bf16.mxu0 0
        %818 = vmatpush1.bf16.msra.mxu0 0
        %819 = vmatprep.subr.bf16.mxu0 0
        %820 = vmatpush1.bf16.msra.mxu0 0
        %821 = vmatprep.subr.bf16.mxu0 0
        %822 = vmatpush1.bf16.msra.mxu0 0
        %823 = vmatprep.subr.bf16.mxu0 %v781
        %824 = vmatpush1.bf16.msra.mxu0 %v780
        %825 = vmatprep.subr.bf16.mxu0 %v779
        %826 = vmatpush1.bf16.msra.mxu0 %v778
        %827 = vmatprep.subr.bf16.mxu0 0
        %828 = vmatpush2.bf16.msra.mxu0 0
        %829 = vmatprep.subr.bf16.mxu0 0
        %830 = vmatpush2.bf16.msra.mxu0 0
        %831 = vmatprep.subr.bf16.mxu0 0
        %832 = vmatpush2.bf16.msra.mxu0 0
        %833 = vmatprep.subr.bf16.mxu0 0
        %834 = vmatpush2.bf16.msra.mxu0 0
        %835 = vmatprep.subr.bf16.mxu0 0
        %836 = vmatpush2.bf16.msra.mxu0 0
        %837 = vmatprep.subr.bf16.mxu0 0
        %838 = vmatpush2.bf16.msra.mxu0 0
        %839 = vmatprep.subr.bf16.mxu0 0
        %840 = vmatpush2.bf16.msra.mxu0 0
        %841 = vmatprep.subr.bf16.mxu0 0
        %842 = vmatpush2.bf16.msra.mxu0 0
        %843 = vmatprep.mubr.bf16.mxu0 0
        %844 = vmatmul.mubr.bf16.gmra.mxu0 %v788
        %v845 = vpop.f32.mrf.mxu0
        %v846 = vadd.f32 %v688, %v845
        %v847 = vpop.f32.mrf.mxu0
        %v848 = vadd.f32 %v690, %v847
        %v849 = vpop.f32.mrf.mxu0
        %v850 = vadd.f32 %v692, %v849
        %v851 = vpop.f32.mrf.mxu0
        %v852 = vadd.f32 %v694, %v851
        %853 = vmatprep.mubr.bf16.mxu0 0
        %854 = vmatmul.mubr.bf16.gmra.mxu0 %v791
        %v855 = vpop.f32.mrf.mxu0
        %v856 = vadd.f32 %v698, %v855
        %v857 = vpop.f32.mrf.mxu0
        %v858 = vadd.f32 %v700, %v857
        %v859 = vpop.f32.mrf.mxu0
        %v860 = vadd.f32 %v702, %v859
        %v861 = vpop.f32.mrf.mxu0
        %v862 = vadd.f32 %v704, %v861
        %863 = vmatprep.mubr.bf16.mxu0 0
        %864 = vmatmul.mubr.bf16.gmra.mxu0 %v794
        %v865 = vpop.f32.mrf.mxu0
        %v866 = vadd.f32 %v708, %v865
        %v867 = vpop.f32.mrf.mxu0
        %v868 = vadd.f32 %v710, %v867
        %v869 = vpop.f32.mrf.mxu0
        %v870 = vadd.f32 %v712, %v869
        %v871 = vpop.f32.mrf.mxu0
        %v872 = vadd.f32 %v714, %v871
        %873 = vmatprep.mubr.bf16.mxu0 0
        %874 = vmatmul.mubr.bf16.gmra.mxu0 %v797
        %v875 = vpop.f32.mrf.mxu0
        %v876 = vadd.f32 %v718, %v875
        %v877 = vpop.f32.mrf.mxu0
        %v878 = vadd.f32 %v720, %v877
        %v879 = vpop.f32.mrf.mxu0
        %v880 = vadd.f32 %v722, %v879
        %v881 = vpop.f32.mrf.mxu0
        %v882 = vadd.f32 %v724, %v881
        %883 = vmatprep.mubr.bf16.mxu0 0
        %884 = vmatmul.mubr.bf16.gmra.mxu0 %v800
        %v885 = vpop.f32.mrf.mxu0
        %v886 = vadd.f32 %v728, %v885
        %v887 = vpop.f32.mrf.mxu0
        %v888 = vadd.f32 %v730, %v887
        %v889 = vpop.f32.mrf.mxu0
        %v890 = vadd.f32 %v732, %v889
        %v891 = vpop.f32.mrf.mxu0
        %v892 = vadd.f32 %v734, %v891
        %893 = vmatprep.mubr.bf16.mxu0 0
        %894 = vmatmul.mubr.bf16.gmra.mxu0 %v803
        %v895 = vpop.f32.mrf.mxu0
        %v896 = vadd.f32 %v738, %v895
        %v897 = vpop.f32.mrf.mxu0
        %v898 = vadd.f32 %v740, %v897
        %v899 = vpop.f32.mrf.mxu0
        %v900 = vadd.f32 %v742, %v899
        %v901 = vpop.f32.mrf.mxu0
        %v902 = vadd.f32 %v744, %v901
        %903 = vmatprep.mubr.bf16.mxu0 0
        %904 = vmatmul.mubr.bf16.gmra.mxu0 %v806
        %v905 = vpop.f32.mrf.mxu0
        %v906 = vadd.f32 %v748, %v905
        %v907 = vpop.f32.mrf.mxu0
        %v908 = vadd.f32 %v750, %v907
        %v909 = vpop.f32.mrf.mxu0
        %v910 = vadd.f32 %v752, %v909
        %v911 = vpop.f32.mrf.mxu0
        %v912 = vadd.f32 %v754, %v911
        %913 = vmatprep.mubr.bf16.mxu0 0
        %914 = vmatmul.mubr.bf16.gmra.mxu0 %v809
        %v915 = vpop.f32.mrf.mxu0
        %v916 = vadd.f32 %v758, %v915
        %v917 = vpop.f32.mrf.mxu0
        %v918 = vadd.f32 %v760, %v917
        %v919 = vpop.f32.mrf.mxu0
        %v920 = vadd.f32 %v762, %v919
        %v921 = vpop.f32.mrf.mxu0
        %v922 = vadd.f32 %v764, %v921
        %923 = vdwg.mxu0
        %v924 = vld [vmem:[%s521] sm:$0xf]
        %v925 = vld [vmem:[%s521 + $0x4] sm:$0xf]
        %v926 = vld [vmem:[%s521 + $0x8] sm:$0xf]
        %v927 = vld [vmem:[%s521 + $0xc] sm:$0xf]
        %v928 = vld [vmem:[%s521 + $0x10] sm:$0xf]
        %v929 = vld [vmem:[%s521 + $0x14] sm:$0xf]
        %v930 = vld [vmem:[%s521 + $0x18] sm:$0xf]
        %v931 = vld [vmem:[%s521 + $0x1c] sm:$0xf]
        %v932 = vld [vmem:[%s521 + $0x20] sm:$0xf]
        %v933 = vld [vmem:[%s521 + $0x24] sm:$0xf]
        %v934 = vld [vmem:[%s521 + $0x28] sm:$0xf]
        %v935 = vld [vmem:[%s521 + $0x2c] sm:$0xf]
        %v936 = vld [vmem:[%s521 + $0x30] sm:$0xf]
        %v937 = vld [vmem:[%s521 + $0x34] sm:$0xf]
        %v938 = vld [vmem:[%s521 + $0x38] sm:$0xf]
        %v939 = vld [vmem:[%s521 + $0x3c] sm:$0xf]
        %v940 = vld [vmem:[%s5] sm:$0xff]
        %v941 = vld [vmem:[%s5 + $0x8] sm:$0xff]
        %v958 = vunpack.c.l.b16 %v924
        %v959 = vunpack.c.l.b16 %v925
        %v960 = vunpack.c.l.b16 %v926
        %v961 = vunpack.c.l.b16 %v927
        %v962 = vunpack.c.l.b16 %v928
        %v963 = vunpack.c.l.b16 %v929
        %v964 = vunpack.c.l.b16 %v930
        %v965 = vunpack.c.l.b16 %v931
        %v966 = vunpack.c.l.b16 %v932
        %v967 = vunpack.c.l.b16 %v933
        %v968 = vunpack.c.l.b16 %v934
        %v969 = vunpack.c.l.b16 %v935
        %v970 = vunpack.c.l.b16 %v936
        %v971 = vunpack.c.l.b16 %v937
        %v972 = vunpack.c.l.b16 %v938
        %v973 = vunpack.c.l.b16 %v939
        %v974 = vpack.c.b16 %v959, %v958
        %v975 = vpack.c.b16 %v961, %v960
        %v976 = vpack.c.b16 %v963, %v962
        %v977 = vpack.c.b16 %v965, %v964
        %v978 = vpack.c.b16 %v967, %v966
        %v979 = vpack.c.b16 %v969, %v968
        %v980 = vpack.c.b16 %v971, %v970
        %v981 = vpack.c.b16 %v973, %v972
        %v984 = vunpack.c.l.b16 %v940
        %v985 = vunpack.c.h.b16 %v940
        %v986 = vunpack.c.l.b16 %v941
        %v987 = vunpack.c.h.b16 %v941
        %v988 = vpack.c.b16 %v986, %v984
        %v989 = vpack.c.b16 %v987, %v985
        %v993 = vsel %vm628, %v974, 0
        %v996 = vsel %vm628, %v975, 0
        %v999 = vsel %vm628, %v976, 0
        %v1002 = vsel %vm628, %v977, 0
        %v1005 = vsel %vm628, %v978, 0
        %v1008 = vsel %vm628, %v979, 0
        %v1011 = vsel %vm628, %v980, 0
        %v1014 = vsel %vm628, %v981, 0
        %1016 = vmatprep.subr.bf16.mxu0 0
        %1017 = vmatpush1.bf16.msra.mxu0 0
        %1018 = vmatprep.subr.bf16.mxu0 0
        %1019 = vmatpush1.bf16.msra.mxu0 0
        %1020 = vmatprep.subr.bf16.mxu0 0
        %1021 = vmatpush1.bf16.msra.mxu0 0
        %1022 = vmatprep.subr.bf16.mxu0 0
        %1023 = vmatpush1.bf16.msra.mxu0 0
        %1024 = vmatprep.subr.bf16.mxu0 0
        %1025 = vmatpush1.bf16.msra.mxu0 0
        %1026 = vmatprep.subr.bf16.mxu0 0
        %1027 = vmatpush1.bf16.msra.mxu0 0
        %1028 = vmatprep.subr.bf16.mxu0 0
        %1029 = vmatpush1.bf16.msra.mxu0 0
        %1030 = vmatprep.subr.bf16.mxu0 %v989
        %1031 = vmatpush1.bf16.msra.mxu0 %v988
        %1032 = vmatprep.subr.bf16.mxu0 0
        %1033 = vmatpush2.bf16.msra.mxu0 0
        %1034 = vmatprep.subr.bf16.mxu0 0
        %1035 = vmatpush2.bf16.msra.mxu0 0
        %1036 = vmatprep.subr.bf16.mxu0 0
        %1037 = vmatpush2.bf16.msra.mxu0 0
        %1038 = vmatprep.subr.bf16.mxu0 0
        %1039 = vmatpush2.bf16.msra.mxu0 0
        %1040 = vmatprep.subr.bf16.mxu0 0
        %1041 = vmatpush2.bf16.msra.mxu0 0
        %1042 = vmatprep.subr.bf16.mxu0 0
        %1043 = vmatpush2.bf16.msra.mxu0 0
        %1044 = vmatprep.subr.bf16.mxu0 0
        %1045 = vmatpush2.bf16.msra.mxu0 0
        %1046 = vmatprep.subr.bf16.mxu0 0
        %1047 = vmatpush2.bf16.msra.mxu0 0
        %1048 = vmatprep.mubr.bf16.mxu0 0
        %1049 = vmatmul.mubr.bf16.gmra.mxu0 %v993
        %v1050 = vpop.f32.mrf.mxu0
        %v1051 = vadd.f32 0.0, %v1050
        %v1052 = vpop.f32.mrf.mxu0
        %v1053 = vadd.f32 0.0, %v1052
        %v1054 = vpop.f32.mrf.mxu0
        %v1055 = vadd.f32 0.0, %v1054
        %v1056 = vpop.f32.mrf.mxu0
        %v1057 = vadd.f32 0.0, %v1056
        %1058 = vmatprep.mubr.bf16.mxu0 0
        %1059 = vmatmul.mubr.bf16.gmra.mxu0 %v996
        %v1060 = vpop.f32.mrf.mxu0
        %v1061 = vadd.f32 0.0, %v1060
        %v1062 = vpop.f32.mrf.mxu0
        %v1063 = vadd.f32 0.0, %v1062
        %v1064 = vpop.f32.mrf.mxu0
        %v1065 = vadd.f32 0.0, %v1064
        %v1066 = vpop.f32.mrf.mxu0
        %v1067 = vadd.f32 0.0, %v1066
        %1068 = vmatprep.mubr.bf16.mxu0 0
        %1069 = vmatmul.mubr.bf16.gmra.mxu0 %v999
        %v1070 = vpop.f32.mrf.mxu0
        %v1071 = vadd.f32 0.0, %v1070
        %v1072 = vpop.f32.mrf.mxu0
        %v1073 = vadd.f32 0.0, %v1072
        %v1074 = vpop.f32.mrf.mxu0
        %v1075 = vadd.f32 0.0, %v1074
        %v1076 = vpop.f32.mrf.mxu0
        %v1077 = vadd.f32 0.0, %v1076
        %1078 = vmatprep.mubr.bf16.mxu0 0
        %1079 = vmatmul.mubr.bf16.gmra.mxu0 %v1002
        %v1080 = vpop.f32.mrf.mxu0
        %v1081 = vadd.f32 0.0, %v1080
        %v1082 = vpop.f32.mrf.mxu0
        %v1083 = vadd.f32 0.0, %v1082
        %v1084 = vpop.f32.mrf.mxu0
        %v1085 = vadd.f32 0.0, %v1084
        %v1086 = vpop.f32.mrf.mxu0
        %v1087 = vadd.f32 0.0, %v1086
        %1088 = vmatprep.mubr.bf16.mxu0 0
        %1089 = vmatmul.mubr.bf16.gmra.mxu0 %v1005
        %v1090 = vpop.f32.mrf.mxu0
        %v1091 = vadd.f32 0.0, %v1090
        %v1092 = vpop.f32.mrf.mxu0
        %v1093 = vadd.f32 0.0, %v1092
        %v1094 = vpop.f32.mrf.mxu0
        %v1095 = vadd.f32 0.0, %v1094
        %v1096 = vpop.f32.mrf.mxu0
        %v1097 = vadd.f32 0.0, %v1096
        %1098 = vmatprep.mubr.bf16.mxu0 0
        %1099 = vmatmul.mubr.bf16.gmra.mxu0 %v1008
        %v1100 = vpop.f32.mrf.mxu0
        %v1101 = vadd.f32 0.0, %v1100
        %v1102 = vpop.f32.mrf.mxu0
        %v1103 = vadd.f32 0.0, %v1102
        %v1104 = vpop.f32.mrf.mxu0
        %v1105 = vadd.f32 0.0, %v1104
        %v1106 = vpop.f32.mrf.mxu0
        %v1107 = vadd.f32 0.0, %v1106
        %1108 = vmatprep.mubr.bf16.mxu0 0
        %1109 = vmatmul.mubr.bf16.gmra.mxu0 %v1011
        %v1110 = vpop.f32.mrf.mxu0
        %v1111 = vadd.f32 0.0, %v1110
        %v1112 = vpop.f32.mrf.mxu0
        %v1113 = vadd.f32 0.0, %v1112
        %v1114 = vpop.f32.mrf.mxu0
        %v1115 = vadd.f32 0.0, %v1114
        %v1116 = vpop.f32.mrf.mxu0
        %v1117 = vadd.f32 0.0, %v1116
        %1118 = vmatprep.mubr.bf16.mxu0 0
        %1119 = vmatmul.mubr.bf16.gmra.mxu0 %v1014
        %v1120 = vpop.f32.mrf.mxu0
        %v1121 = vadd.f32 0.0, %v1120
        %v1122 = vpop.f32.mrf.mxu0
        %v1123 = vadd.f32 0.0, %v1122
        %v1124 = vpop.f32.mrf.mxu0
        %v1125 = vadd.f32 0.0, %v1124
        %v1126 = vpop.f32.mrf.mxu0
        %v1127 = vadd.f32 0.0, %v1126
        %1128 = vdwg.mxu0
        %v1129 = vadd.f32 %v846, %v1051
        %v1130 = vadd.f32 %v848, %v1053
        %v1131 = vadd.f32 %v850, %v1055
        %v1132 = vadd.f32 %v852, %v1057
        %v1133 = vadd.f32 %v856, %v1061
        %v1134 = vadd.f32 %v858, %v1063
        %v1135 = vadd.f32 %v860, %v1065
        %v1136 = vadd.f32 %v862, %v1067
        %v1137 = vadd.f32 %v866, %v1071
        %v1138 = vadd.f32 %v868, %v1073
        %v1139 = vadd.f32 %v870, %v1075
        %v1140 = vadd.f32 %v872, %v1077
        %v1141 = vadd.f32 %v876, %v1081
        %v1142 = vadd.f32 %v878, %v1083
        %v1143 = vadd.f32 %v880, %v1085
        %v1144 = vadd.f32 %v882, %v1087
        %v1145 = vadd.f32 %v886, %v1091
        %v1146 = vadd.f32 %v888, %v1093
        %v1147 = vadd.f32 %v890, %v1095
        %v1148 = vadd.f32 %v892, %v1097
        %v1149 = vadd.f32 %v896, %v1101
        %v1150 = vadd.f32 %v898, %v1103
        %v1151 = vadd.f32 %v900, %v1105
        %v1152 = vadd.f32 %v902, %v1107
        %v1153 = vadd.f32 %v906, %v1111
        %v1154 = vadd.f32 %v908, %v1113
        %v1155 = vadd.f32 %v910, %v1115
        %v1156 = vadd.f32 %v912, %v1117
        %v1157 = vadd.f32 %v916, %v1121
        %v1158 = vadd.f32 %v918, %v1123
        %v1159 = vadd.f32 %v920, %v1125
        %v1160 = vadd.f32 %v922, %v1127
        %v1161 = vld [vmem:[%s6] sm:$0x3]
        %v1163 = vlaneseq
        %v1164 = vshrl.u32 %v1163, 7
        %v1165 = vsub.s32 0, %v1164
        %v1166 = vrot.slane %v1161, %v1165
        %v1167 = vlaneseq
        %v1168 = vshrl.u32 %v1167, 7
        %v1169 = vsub.s32 1, %v1168
        %v1170 = vrot.slane %v1161, %v1169
        %v1173 = vadd.f32 %v1129, %v1166
        %v1174 = vadd.f32 %v1130, %v1170
        %v1175 = vadd.f32 %v1131, %v1166
        %v1176 = vadd.f32 %v1132, %v1170
        %v1177 = vadd.f32 %v1133, %v1166
        %v1178 = vadd.f32 %v1134, %v1170
        %v1179 = vadd.f32 %v1135, %v1166
        %v1180 = vadd.f32 %v1136, %v1170
        %v1181 = vadd.f32 %v1137, %v1166
        %v1182 = vadd.f32 %v1138, %v1170
        %v1183 = vadd.f32 %v1139, %v1166
        %v1184 = vadd.f32 %v1140, %v1170
        %v1185 = vadd.f32 %v1141, %v1166
        %v1186 = vadd.f32 %v1142, %v1170
        %v1187 = vadd.f32 %v1143, %v1166
        %v1188 = vadd.f32 %v1144, %v1170
        %v1189 = vadd.f32 %v1145, %v1166
        %v1190 = vadd.f32 %v1146, %v1170
        %v1191 = vadd.f32 %v1147, %v1166
        %v1192 = vadd.f32 %v1148, %v1170
        %v1193 = vadd.f32 %v1149, %v1166
        %v1194 = vadd.f32 %v1150, %v1170
        %v1195 = vadd.f32 %v1151, %v1166
        %v1196 = vadd.f32 %v1152, %v1170
        %v1197 = vadd.f32 %v1153, %v1166
        %v1198 = vadd.f32 %v1154, %v1170
        %v1199 = vadd.f32 %v1155, %v1166
        %v1200 = vadd.f32 %v1156, %v1170
        %v1201 = vadd.f32 %v1157, %v1166
        %v1202 = vadd.f32 %v1158, %v1170
        %v1203 = vadd.f32 %v1159, %v1166
        %v1204 = vadd.f32 %v1160, %v1170
        %v1205 = vmul.f32 %v1173, 0.2
        %v1206 = vmul.f32 %v1175, 0.2
        %v1207 = vmul.f32 %v1177, 0.2
        %v1208 = vmul.f32 %v1179, 0.2
        %v1209 = vmul.f32 %v1181, 0.2
        %v1210 = vmul.f32 %v1183, 0.2
        %v1211 = vmul.f32 %v1185, 0.2
        %v1212 = vmul.f32 %v1187, 0.2
        %v1213 = vmul.f32 %v1189, 0.2
        %v1214 = vmul.f32 %v1191, 0.2
        %v1215 = vmul.f32 %v1193, 0.2
        %v1216 = vmul.f32 %v1195, 0.2
        %v1217 = vmul.f32 %v1197, 0.2
        %v1218 = vmul.f32 %v1199, 0.2
        %v1219 = vmul.f32 %v1201, 0.2
        %v1220 = vmul.f32 %v1203, 0.2
        %v1221 = vmax.f32 %v1173, %v1205
        %v1222 = vmax.f32 %v1175, %v1206
        %v1223 = vmax.f32 %v1177, %v1207
        %v1224 = vmax.f32 %v1179, %v1208
        %v1225 = vmax.f32 %v1181, %v1209
        %v1226 = vmax.f32 %v1183, %v1210
        %v1227 = vmax.f32 %v1185, %v1211
        %v1228 = vmax.f32 %v1187, %v1212
        %v1229 = vmax.f32 %v1189, %v1213
        %v1230 = vmax.f32 %v1191, %v1214
        %v1231 = vmax.f32 %v1193, %v1215
        %v1232 = vmax.f32 %v1195, %v1216
        %v1233 = vmax.f32 %v1197, %v1217
        %v1234 = vmax.f32 %v1199, %v1218
        %v1235 = vmax.f32 %v1201, %v1219
        %v1236 = vmax.f32 %v1203, %v1220
        %v1237 = vpack.c.bf16 %v1222, %v1221
        %v1238 = vpack.c.bf16 %v1224, %v1223
        %v1239 = vpack.c.bf16 %v1226, %v1225
        %v1240 = vpack.c.bf16 %v1228, %v1227
        %v1241 = vpack.c.bf16 %v1230, %v1229
        %v1242 = vpack.c.bf16 %v1232, %v1231
        %v1243 = vpack.c.bf16 %v1234, %v1233
        %v1244 = vpack.c.bf16 %v1236, %v1235
        %v1245 = vld [vmem:[%s7] sm:$0xf]
        %v1246 = vld [vmem:[%s7 + $0x4] sm:$0xf]
        %v1247 = vld [vmem:[%s7 + $0x8] sm:$0xf]
        %v1248 = vld [vmem:[%s7 + $0xc] sm:$0xf]
        %v1249 = vld [vmem:[%s7 + $0x10] sm:$0xf]
        %v1250 = vld [vmem:[%s7 + $0x14] sm:$0xf]
        %v1251 = vld [vmem:[%s7 + $0x18] sm:$0xf]
        %v1252 = vld [vmem:[%s7 + $0x1c] sm:$0xf]
        %v1253 = vld [vmem:[%s7 + $0x20] sm:$0xf]
        %v1254 = vld [vmem:[%s7 + $0x24] sm:$0xf]
        %v1255 = vld [vmem:[%s7 + $0x28] sm:$0xf]
        %v1256 = vld [vmem:[%s7 + $0x2c] sm:$0xf]
        %v1257 = vld [vmem:[%s7 + $0x30] sm:$0xf]
        %v1258 = vld [vmem:[%s7 + $0x34] sm:$0xf]
        %v1259 = vld [vmem:[%s7 + $0x38] sm:$0xf]
        %v1260 = vld [vmem:[%s7 + $0x3c] sm:$0xf]
        %v1261 = vld [vmem:[%s8] sm:$0x1]
        %v1263 = vlaneseq
        %v1264 = vshrl.u32 %v1263, 7
        %v1265 = vsub.s32 0, %v1264
        %v1266 = vrot.slane %v1261, %v1265
        %v1284 = vunpack.c.l.b16 %v1245
        %v1285 = vunpack.c.l.b16 %v1246
        %v1286 = vunpack.c.l.b16 %v1247
        %v1287 = vunpack.c.l.b16 %v1248
        %v1288 = vunpack.c.l.b16 %v1249
        %v1289 = vunpack.c.l.b16 %v1250
        %v1290 = vunpack.c.l.b16 %v1251
        %v1291 = vunpack.c.l.b16 %v1252
        %v1292 = vunpack.c.l.b16 %v1253
        %v1293 = vunpack.c.l.b16 %v1254
        %v1294 = vunpack.c.l.b16 %v1255
        %v1295 = vunpack.c.l.b16 %v1256
        %v1296 = vunpack.c.l.b16 %v1257
        %v1297 = vunpack.c.l.b16 %v1258
        %v1298 = vunpack.c.l.b16 %v1259
        %v1299 = vunpack.c.l.b16 %v1260
        %v1300 = vpack.c.b16 %v1285, %v1284
        %v1301 = vpack.c.b16 %v1287, %v1286
        %v1302 = vpack.c.b16 %v1289, %v1288
        %v1303 = vpack.c.b16 %v1291, %v1290
        %v1304 = vpack.c.b16 %v1293, %v1292
        %v1305 = vpack.c.b16 %v1295, %v1294
        %v1306 = vpack.c.b16 %v1297, %v1296
        %v1307 = vpack.c.b16 %v1299, %v1298
        %1316 = vmatprep.subr.bf16.mxu0 0
        %1317 = vmatpush1.bf16.msra.mxu0 %v1307
        %1318 = vmatprep.subr.bf16.mxu0 0
        %1319 = vmatpush1.bf16.msra.mxu0 %v1306
        %1320 = vmatprep.subr.bf16.mxu0 0
        %1321 = vmatpush1.bf16.msra.mxu0 %v1305
        %1322 = vmatprep.subr.bf16.mxu0 0
        %1323 = vmatpush1.bf16.msra.mxu0 %v1304
        %1324 = vmatprep.subr.bf16.mxu0 0
        %1325 = vmatpush1.bf16.msra.mxu0 %v1303
        %1326 = vmatprep.subr.bf16.mxu0 0
        %1327 = vmatpush1.bf16.msra.mxu0 %v1302
        %1328 = vmatprep.subr.bf16.mxu0 0
        %1329 = vmatpush1.bf16.msra.mxu0 %v1301
        %1330 = vmatprep.subr.bf16.mxu0 0
        %1331 = vmatpush1.bf16.msra.mxu0 %v1300
        %1332 = vmatprep.subr.bf16.mxu0 0
        %1333 = vmatpush2.bf16.msra.mxu0 0
        %1334 = vmatprep.subr.bf16.mxu0 0
        %1335 = vmatpush2.bf16.msra.mxu0 0
        %1336 = vmatprep.subr.bf16.mxu0 0
        %1337 = vmatpush2.bf16.msra.mxu0 0
        %1338 = vmatprep.subr.bf16.mxu0 0
        %1339 = vmatpush2.bf16.msra.mxu0 0
        %1340 = vmatprep.subr.bf16.mxu0 0
        %1341 = vmatpush2.bf16.msra.mxu0 0
        %1342 = vmatprep.subr.bf16.mxu0 0
        %1343 = vmatpush2.bf16.msra.mxu0 0
        %1344 = vmatprep.subr.bf16.mxu0 0
        %1345 = vmatpush2.bf16.msra.mxu0 0
        %1346 = vmatprep.subr.bf16.mxu0 0
        %1347 = vmatpush2.bf16.msra.mxu0 0
        %1348 = vmatprep.mubr.bf16.mxu0 0
        %1349 = vmatmul.mubr.bf16.gmra.mxu0 %v1237
        %v1350 = vpop.f32.mrf.mxu0
        %v1351 = vadd.f32 %v1266, %v1350
        %v1352 = vpop.f32.mrf.mxu0
        %v1353 = vpop.f32.mrf.mxu0
        %v1354 = vadd.f32 %v1266, %v1353
        %v1355 = vpop.f32.mrf.mxu0
        %1356 = vmatprep.mubr.bf16.mxu0 0
        %1357 = vmatmul.mubr.bf16.gmra.mxu0 %v1238
        %v1358 = vpop.f32.mrf.mxu0
        %v1359 = vadd.f32 %v1266, %v1358
        %v1360 = vpop.f32.mrf.mxu0
        %v1361 = vpop.f32.mrf.mxu0
        %v1362 = vadd.f32 %v1266, %v1361
        %v1363 = vpop.f32.mrf.mxu0
        %1364 = vmatprep.mubr.bf16.mxu0 0
        %1365 = vmatmul.mubr.bf16.gmra.mxu0 %v1239
        %v1366 = vpop.f32.mrf.mxu0
        %v1367 = vadd.f32 %v1266, %v1366
        %v1368 = vpop.f32.mrf.mxu0
        %v1369 = vpop.f32.mrf.mxu0
        %v1370 = vadd.f32 %v1266, %v1369
        %v1371 = vpop.f32.mrf.mxu0
        %1372 = vmatprep.mubr.bf16.mxu0 0
        %1373 = vmatmul.mubr.bf16.gmra.mxu0 %v1240
        %v1374 = vpop.f32.mrf.mxu0
        %v1375 = vadd.f32 %v1266, %v1374
        %v1376 = vpop.f32.mrf.mxu0
        %v1377 = vpop.f32.mrf.mxu0
        %v1378 = vadd.f32 %v1266, %v1377
        %v1379 = vpop.f32.mrf.mxu0
        %1380 = vmatprep.mubr.bf16.mxu0 0
        %1381 = vmatmul.mubr.bf16.gmra.mxu0 %v1241
        %v1382 = vpop.f32.mrf.mxu0
        %v1383 = vadd.f32 %v1266, %v1382
        %v1384 = vpop.f32.mrf.mxu0
        %v1385 = vpop.f32.mrf.mxu0
        %v1386 = vadd.f32 %v1266, %v1385
        %v1387 = vpop.f32.mrf.mxu0
        %1388 = vmatprep.mubr.bf16.mxu0 0
        %1389 = vmatmul.mubr.bf16.gmra.mxu0 %v1242
        %v1390 = vpop.f32.mrf.mxu0
        %v1391 = vadd.f32 %v1266, %v1390
        %v1392 = vpop.f32.mrf.mxu0
        %v1393 = vpop.f32.mrf.mxu0
        %v1394 = vadd.f32 %v1266, %v1393
        %v1395 = vpop.f32.mrf.mxu0
        %1396 = vmatprep.mubr.bf16.mxu0 0
        %1397 = vmatmul.mubr.bf16.gmra.mxu0 %v1243
        %v1398 = vpop.f32.mrf.mxu0
        %v1399 = vadd.f32 %v1266, %v1398
        %v1400 = vpop.f32.mrf.mxu0
        %v1401 = vpop.f32.mrf.mxu0
        %v1402 = vadd.f32 %v1266, %v1401
        %v1403 = vpop.f32.mrf.mxu0
        %1404 = vmatprep.mubr.bf16.mxu0 0
        %1405 = vmatmul.mubr.bf16.gmra.mxu0 %v1244
        %v1406 = vpop.f32.mrf.mxu0
        %v1407 = vadd.f32 %v1266, %v1406
        %v1408 = vpop.f32.mrf.mxu0
        %v1409 = vpop.f32.mrf.mxu0
        %v1410 = vadd.f32 %v1266, %v1409
        %v1411 = vpop.f32.mrf.mxu0
        %1412 = vdwg.mxu0
        %v1413 = vmul.f32 %v1174, 0.2
        %v1414 = vmul.f32 %v1176, 0.2
        %v1415 = vmul.f32 %v1178, 0.2
        %v1416 = vmul.f32 %v1180, 0.2
        %v1417 = vmul.f32 %v1182, 0.2
        %v1418 = vmul.f32 %v1184, 0.2
        %v1419 = vmul.f32 %v1186, 0.2
        %v1420 = vmul.f32 %v1188, 0.2
        %v1421 = vmul.f32 %v1190, 0.2
        %v1422 = vmul.f32 %v1192, 0.2
        %v1423 = vmul.f32 %v1194, 0.2
        %v1424 = vmul.f32 %v1196, 0.2
        %v1425 = vmul.f32 %v1198, 0.2
        %v1426 = vmul.f32 %v1200, 0.2
        %v1427 = vmul.f32 %v1202, 0.2
        %v1428 = vmul.f32 %v1204, 0.2
        %v1429 = vmax.f32 %v1174, %v1413
        %v1430 = vmax.f32 %v1176, %v1414
        %v1431 = vmax.f32 %v1178, %v1415
        %v1432 = vmax.f32 %v1180, %v1416
        %v1433 = vmax.f32 %v1182, %v1417
        %v1434 = vmax.f32 %v1184, %v1418
        %v1435 = vmax.f32 %v1186, %v1419
        %v1436 = vmax.f32 %v1188, %v1420
        %v1437 = vmax.f32 %v1190, %v1421
        %v1438 = vmax.f32 %v1192, %v1422
        %v1439 = vmax.f32 %v1194, %v1423
        %v1440 = vmax.f32 %v1196, %v1424
        %v1441 = vmax.f32 %v1198, %v1425
        %v1442 = vmax.f32 %v1200, %v1426
        %v1443 = vmax.f32 %v1202, %v1427
        %v1444 = vmax.f32 %v1204, %v1428
        %v1445 = vpack.c.bf16 %v1430, %v1429
        %v1446 = vpack.c.bf16 %v1432, %v1431
        %v1447 = vpack.c.bf16 %v1434, %v1433
        %v1448 = vpack.c.bf16 %v1436, %v1435
        %v1449 = vpack.c.bf16 %v1438, %v1437
        %v1450 = vpack.c.bf16 %v1440, %v1439
        %v1451 = vpack.c.bf16 %v1442, %v1441
        %v1452 = vpack.c.bf16 %v1444, %v1443
        %v1453 = vld [vmem:[%s9] sm:$0xf]
        %v1454 = vld [vmem:[%s9 + $0x4] sm:$0xf]
        %v1455 = vld [vmem:[%s9 + $0x8] sm:$0xf]
        %v1456 = vld [vmem:[%s9 + $0xc] sm:$0xf]
        %v1457 = vld [vmem:[%s9 + $0x10] sm:$0xf]
        %v1458 = vld [vmem:[%s9 + $0x14] sm:$0xf]
        %v1459 = vld [vmem:[%s9 + $0x18] sm:$0xf]
        %v1460 = vld [vmem:[%s9 + $0x1c] sm:$0xf]
        %v1461 = vld [vmem:[%s9 + $0x20] sm:$0xf]
        %v1462 = vld [vmem:[%s9 + $0x24] sm:$0xf]
        %v1463 = vld [vmem:[%s9 + $0x28] sm:$0xf]
        %v1464 = vld [vmem:[%s9 + $0x2c] sm:$0xf]
        %v1465 = vld [vmem:[%s9 + $0x30] sm:$0xf]
        %v1466 = vld [vmem:[%s9 + $0x34] sm:$0xf]
        %v1467 = vld [vmem:[%s9 + $0x38] sm:$0xf]
        %v1468 = vld [vmem:[%s9 + $0x3c] sm:$0xf]
        %v1469 = vld [vmem:[%s10] sm:$0x1]
        %v1471 = vlaneseq
        %v1472 = vshrl.u32 %v1471, 7
        %v1473 = vsub.s32 0, %v1472
        %v1474 = vrot.slane %v1469, %v1473
        %v1492 = vunpack.c.l.b16 %v1453
        %v1493 = vunpack.c.l.b16 %v1454
        %v1494 = vunpack.c.l.b16 %v1455
        %v1495 = vunpack.c.l.b16 %v1456
        %v1496 = vunpack.c.l.b16 %v1457
        %v1497 = vunpack.c.l.b16 %v1458
        %v1498 = vunpack.c.l.b16 %v1459
        %v1499 = vunpack.c.l.b16 %v1460
        %v1500 = vunpack.c.l.b16 %v1461
        %v1501 = vunpack.c.l.b16 %v1462
        %v1502 = vunpack.c.l.b16 %v1463
        %v1503 = vunpack.c.l.b16 %v1464
        %v1504 = vunpack.c.l.b16 %v1465
        %v1505 = vunpack.c.l.b16 %v1466
        %v1506 = vunpack.c.l.b16 %v1467
        %v1507 = vunpack.c.l.b16 %v1468
        %v1508 = vpack.c.b16 %v1493, %v1492
        %v1509 = vpack.c.b16 %v1495, %v1494
        %v1510 = vpack.c.b16 %v1497, %v1496
        %v1511 = vpack.c.b16 %v1499, %v1498
        %v1512 = vpack.c.b16 %v1501, %v1500
        %v1513 = vpack.c.b16 %v1503, %v1502
        %v1514 = vpack.c.b16 %v1505, %v1504
        %v1515 = vpack.c.b16 %v1507, %v1506
        %1524 = vmatprep.subr.bf16.mxu0 0
        %1525 = vmatpush1.bf16.msra.mxu0 %v1515
        %1526 = vmatprep.subr.bf16.mxu0 0
        %1527 = vmatpush1.bf16.msra.mxu0 %v1514
        %1528 = vmatprep.subr.bf16.mxu0 0
        %1529 = vmatpush1.bf16.msra.mxu0 %v1513
        %1530 = vmatprep.subr.bf16.mxu0 0
        %1531 = vmatpush1.bf16.msra.mxu0 %v1512
        %1532 = vmatprep.subr.bf16.mxu0 0
        %1533 = vmatpush1.bf16.msra.mxu0 %v1511
        %1534 = vmatprep.subr.bf16.mxu0 0
        %1535 = vmatpush1.bf16.msra.mxu0 %v1510
        %1536 = vmatprep.subr.bf16.mxu0 0
        %1537 = vmatpush1.bf16.msra.mxu0 %v1509
        %1538 = vmatprep.subr.bf16.mxu0 0
        %1539 = vmatpush1.bf16.msra.mxu0 %v1508
        %1540 = vmatprep.subr.bf16.mxu0 0
        %1541 = vmatpush2.bf16.msra.mxu0 0
        %1542 = vmatprep.subr.bf16.mxu0 0
        %1543 = vmatpush2.bf16.msra.mxu0 0
        %1544 = vmatprep.subr.bf16.mxu0 0
        %1545 = vmatpush2.bf16.msra.mxu0 0
        %1546 = vmatprep.subr.bf16.mxu0 0
        %1547 = vmatpush2.bf16.msra.mxu0 0
        %1548 = vmatprep.subr.bf16.mxu0 0
        %1549 = vmatpush2.bf16.msra.mxu0 0
        %1550 = vmatprep.subr.bf16.mxu0 0
        %1551 = vmatpush2.bf16.msra.mxu0 0
        %1552 = vmatprep.subr.bf16.mxu0 0
        %1553 = vmatpush2.bf16.msra.mxu0 0
        %1554 = vmatprep.subr.bf16.mxu0 0
        %1555 = vmatpush2.bf16.msra.mxu0 0
        %1556 = vmatprep.mubr.bf16.mxu0 0
        %1557 = vmatmul.mubr.bf16.gmra.mxu0 %v1445
        %v1558 = vpop.f32.mrf.mxu0
        %v1559 = vadd.f32 %v1474, %v1558
        %v1560 = vpop.f32.mrf.mxu0
        %v1561 = vpop.f32.mrf.mxu0
        %v1562 = vadd.f32 %v1474, %v1561
        %v1563 = vpop.f32.mrf.mxu0
        %1564 = vmatprep.mubr.bf16.mxu0 0
        %1565 = vmatmul.mubr.bf16.gmra.mxu0 %v1446
        %v1566 = vpop.f32.mrf.mxu0
        %v1567 = vadd.f32 %v1474, %v1566
        %v1568 = vpop.f32.mrf.mxu0
        %v1569 = vpop.f32.mrf.mxu0
        %v1570 = vadd.f32 %v1474, %v1569
        %v1571 = vpop.f32.mrf.mxu0
        %1572 = vmatprep.mubr.bf16.mxu0 0
        %1573 = vmatmul.mubr.bf16.gmra.mxu0 %v1447
        %v1574 = vpop.f32.mrf.mxu0
        %v1575 = vadd.f32 %v1474, %v1574
        %v1576 = vpop.f32.mrf.mxu0
        %v1577 = vpop.f32.mrf.mxu0
        %v1578 = vadd.f32 %v1474, %v1577
        %v1579 = vpop.f32.mrf.mxu0
        %1580 = vmatprep.mubr.bf16.mxu0 0
        %1581 = vmatmul.mubr.bf16.gmra.mxu0 %v1448
        %v1582 = vpop.f32.mrf.mxu0
        %v1583 = vadd.f32 %v1474, %v1582
        %v1584 = vpop.f32.mrf.mxu0
        %v1585 = vpop.f32.mrf.mxu0
        %v1586 = vadd.f32 %v1474, %v1585
        %v1587 = vpop.f32.mrf.mxu0
        %1588 = vmatprep.mubr.bf16.mxu0 0
        %1589 = vmatmul.mubr.bf16.gmra.mxu0 %v1449
        %v1590 = vpop.f32.mrf.mxu0
        %v1591 = vadd.f32 %v1474, %v1590
        %v1592 = vpop.f32.mrf.mxu0
        %v1593 = vpop.f32.mrf.mxu0
        %v1594 = vadd.f32 %v1474, %v1593
        %v1595 = vpop.f32.mrf.mxu0
        %1596 = vmatprep.mubr.bf16.mxu0 0
        %1597 = vmatmul.mubr.bf16.gmra.mxu0 %v1450
        %v1598 = vpop.f32.mrf.mxu0
        %v1599 = vadd.f32 %v1474, %v1598
        %v1600 = vpop.f32.mrf.mxu0
        %v1601 = vpop.f32.mrf.mxu0
        %v1602 = vadd.f32 %v1474, %v1601
        %v1603 = vpop.f32.mrf.mxu0
        %1604 = vmatprep.mubr.bf16.mxu0 0
        %1605 = vmatmul.mubr.bf16.gmra.mxu0 %v1451
        %v1606 = vpop.f32.mrf.mxu0
        %v1607 = vadd.f32 %v1474, %v1606
        %v1608 = vpop.f32.mrf.mxu0
        %v1609 = vpop.f32.mrf.mxu0
        %v1610 = vadd.f32 %v1474, %v1609
        %v1611 = vpop.f32.mrf.mxu0
        %1612 = vmatprep.mubr.bf16.mxu0 0
        %1613 = vmatmul.mubr.bf16.gmra.mxu0 %v1452
        %v1614 = vpop.f32.mrf.mxu0
        %v1615 = vadd.f32 %v1474, %v1614
        %v1616 = vpop.f32.mrf.mxu0
        %v1617 = vpop.f32.mrf.mxu0
        %v1618 = vadd.f32 %v1474, %v1617
        %v1619 = vpop.f32.mrf.mxu0
        %1620 = vdwg.mxu0
        %v1621 = vmul.f32 %v1559, 0.2
        %v1622 = vmul.f32 %v1562, 0.2
        %v1623 = vmul.f32 %v1567, 0.2
        %v1624 = vmul.f32 %v1570, 0.2
        %v1625 = vmul.f32 %v1575, 0.2
        %v1626 = vmul.f32 %v1578, 0.2
        %v1627 = vmul.f32 %v1583, 0.2
        %v1628 = vmul.f32 %v1586, 0.2
        %v1629 = vmul.f32 %v1591, 0.2
        %v1630 = vmul.f32 %v1594, 0.2
        %v1631 = vmul.f32 %v1599, 0.2
        %v1632 = vmul.f32 %v1602, 0.2
        %v1633 = vmul.f32 %v1607, 0.2
        %v1634 = vmul.f32 %v1610, 0.2
        %v1635 = vmul.f32 %v1615, 0.2
        %v1636 = vmul.f32 %v1618, 0.2
        %v1637 = vmax.f32 %v1559, %v1621
        %v1638 = vmax.f32 %v1562, %v1622
        %v1639 = vmax.f32 %v1567, %v1623
        %v1640 = vmax.f32 %v1570, %v1624
        %v1641 = vmax.f32 %v1575, %v1625
        %v1642 = vmax.f32 %v1578, %v1626
        %v1643 = vmax.f32 %v1583, %v1627
        %v1644 = vmax.f32 %v1586, %v1628
        %v1645 = vmax.f32 %v1591, %v1629
        %v1646 = vmax.f32 %v1594, %v1630
        %v1647 = vmax.f32 %v1599, %v1631
        %v1648 = vmax.f32 %v1602, %v1632
        %v1649 = vmax.f32 %v1607, %v1633
        %v1650 = vmax.f32 %v1610, %v1634
        %v1651 = vmax.f32 %v1615, %v1635
        %v1652 = vmax.f32 %v1618, %v1636
        %v1653 = vpack.c.bf16 %v1638, %v1637
        %v1654 = vpack.c.bf16 %v1640, %v1639
        %v1655 = vpack.c.bf16 %v1642, %v1641
        %v1656 = vpack.c.bf16 %v1644, %v1643
        %v1657 = vpack.c.bf16 %v1646, %v1645
        %v1658 = vpack.c.bf16 %v1648, %v1647
        %v1659 = vpack.c.bf16 %v1650, %v1649
        %v1660 = vpack.c.bf16 %v1652, %v1651
        %v1661 = vld [vmem:[%s11] sm:$0xf]
        %v1662 = vld [vmem:[%s11 + $0x4] sm:$0xf]
        %v1663 = vld [vmem:[%s11 + $0x8] sm:$0xf]
        %v1664 = vld [vmem:[%s11 + $0xc] sm:$0xf]
        %v1665 = vld [vmem:[%s11 + $0x10] sm:$0xf]
        %v1666 = vld [vmem:[%s11 + $0x14] sm:$0xf]
        %v1667 = vld [vmem:[%s11 + $0x18] sm:$0xf]
        %v1668 = vld [vmem:[%s11 + $0x1c] sm:$0xf]
        %v1669 = vld [vmem:[%s12] sm:$0x1]
        %v1671 = vlaneseq
        %v1672 = vshrl.u32 %v1671, 7
        %v1673 = vsub.s32 0, %v1672
        %v1674 = vrot.slane %v1669, %v1673
        %v1684 = vunpack.c.l.b16 %v1661
        %v1685 = vunpack.c.l.b16 %v1662
        %v1686 = vunpack.c.l.b16 %v1663
        %v1687 = vunpack.c.l.b16 %v1664
        %v1688 = vunpack.c.l.b16 %v1665
        %v1689 = vunpack.c.l.b16 %v1666
        %v1690 = vunpack.c.l.b16 %v1667
        %v1691 = vunpack.c.l.b16 %v1668
        %v1692 = vpack.c.b16 %v1685, %v1684
        %v1693 = vpack.c.b16 %v1687, %v1686
        %v1694 = vpack.c.b16 %v1689, %v1688
        %v1695 = vpack.c.b16 %v1691, %v1690
        %vm1700 = vcmask 523264
        %v1702 = vsel %vm1700, %v1653, 0
        %v1705 = vsel %vm1700, %v1654, 0
        %v1708 = vsel %vm1700, %v1655, 0
        %v1711 = vsel %vm1700, %v1656, 0
        %v1714 = vsel %vm1700, %v1657, 0
        %v1717 = vsel %vm1700, %v1658, 0
        %v1720 = vsel %vm1700, %v1659, 0
        %v1723 = vsel %vm1700, %v1660, 0
        %1725 = vmatprep.subr.bf16.mxu0 0
        %1726 = vmatpush1.bf16.msra.mxu0 0
        %1727 = vmatprep.subr.bf16.mxu0 0
        %1728 = vmatpush1.bf16.msra.mxu0 0
        %1729 = vmatprep.subr.bf16.mxu0 0
        %1730 = vmatpush1.bf16.msra.mxu0 0
        %1731 = vmatprep.subr.bf16.mxu0 0
        %1732 = vmatpush1.bf16.msra.mxu0 0
        %1733 = vmatprep.subr.bf16.mxu0 0
        %1734 = vmatpush1.bf16.msra.mxu0 %v1695
        %1735 = vmatprep.subr.bf16.mxu0 0
        %1736 = vmatpush1.bf16.msra.mxu0 %v1694
        %1737 = vmatprep.subr.bf16.mxu0 0
        %1738 = vmatpush1.bf16.msra.mxu0 %v1693
        %1739 = vmatprep.subr.bf16.mxu0 0
        %1740 = vmatpush1.bf16.msra.mxu0 %v1692
        %1741 = vmatprep.subr.bf16.mxu0 0
        %1742 = vmatpush2.bf16.msra.mxu0 0
        %1743 = vmatprep.subr.bf16.mxu0 0
        %1744 = vmatpush2.bf16.msra.mxu0 0
        %1745 = vmatprep.subr.bf16.mxu0 0
        %1746 = vmatpush2.bf16.msra.mxu0 0
        %1747 = vmatprep.subr.bf16.mxu0 0
        %1748 = vmatpush2.bf16.msra.mxu0 0
        %1749 = vmatprep.subr.bf16.mxu0 0
        %1750 = vmatpush2.bf16.msra.mxu0 0
        %1751 = vmatprep.subr.bf16.mxu0 0
        %1752 = vmatpush2.bf16.msra.mxu0 0
        %1753 = vmatprep.subr.bf16.mxu0 0
        %1754 = vmatpush2.bf16.msra.mxu0 0
        %1755 = vmatprep.subr.bf16.mxu0 0
        %1756 = vmatpush2.bf16.msra.mxu0 0
        %1757 = vmatprep.mubr.bf16.mxu0 0
        %1758 = vmatmul.mubr.bf16.gmra.mxu0 %v1702
        %v1759 = vpop.f32.mrf.mxu0
        %v1760 = vadd.f32 %v1674, %v1759
        %v1761 = vpop.f32.mrf.mxu0
        %v1762 = vpop.f32.mrf.mxu0
        %v1763 = vadd.f32 %v1674, %v1762
        %v1764 = vpop.f32.mrf.mxu0
        %1765 = vmatprep.mubr.bf16.mxu0 0
        %1766 = vmatmul.mubr.bf16.gmra.mxu0 %v1705
        %v1767 = vpop.f32.mrf.mxu0
        %v1768 = vadd.f32 %v1674, %v1767
        %v1769 = vpop.f32.mrf.mxu0
        %v1770 = vpop.f32.mrf.mxu0
        %v1771 = vadd.f32 %v1674, %v1770
        %v1772 = vpop.f32.mrf.mxu0
        %1773 = vmatprep.mubr.bf16.mxu0 0
        %1774 = vmatmul.mubr.bf16.gmra.mxu0 %v1708
        %v1775 = vpop.f32.mrf.mxu0
        %v1776 = vadd.f32 %v1674, %v1775
        %v1777 = vpop.f32.mrf.mxu0
        %v1778 = vpop.f32.mrf.mxu0
        %v1779 = vadd.f32 %v1674, %v1778
        %v1780 = vpop.f32.mrf.mxu0
        %1781 = vmatprep.mubr.bf16.mxu0 0
        %1782 = vmatmul.mubr.bf16.gmra.mxu0 %v1711
        %v1783 = vpop.f32.mrf.mxu0
        %v1784 = vadd.f32 %v1674, %v1783
        %v1785 = vpop.f32.mrf.mxu0
        %v1786 = vpop.f32.mrf.mxu0
        %v1787 = vadd.f32 %v1674, %v1786
        %v1788 = vpop.f32.mrf.mxu0
        %1789 = vmatprep.mubr.bf16.mxu0 0
        %1790 = vmatmul.mubr.bf16.gmra.mxu0 %v1714
        %v1791 = vpop.f32.mrf.mxu0
        %v1792 = vadd.f32 %v1674, %v1791
        %v1793 = vpop.f32.mrf.mxu0
        %v1794 = vpop.f32.mrf.mxu0
        %v1795 = vadd.f32 %v1674, %v1794
        %v1796 = vpop.f32.mrf.mxu0
        %1797 = vmatprep.mubr.bf16.mxu0 0
        %1798 = vmatmul.mubr.bf16.gmra.mxu0 %v1717
        %v1799 = vpop.f32.mrf.mxu0
        %v1800 = vadd.f32 %v1674, %v1799
        %v1801 = vpop.f32.mrf.mxu0
        %v1802 = vpop.f32.mrf.mxu0
        %v1803 = vadd.f32 %v1674, %v1802
        %v1804 = vpop.f32.mrf.mxu0
        %1805 = vmatprep.mubr.bf16.mxu0 0
        %1806 = vmatmul.mubr.bf16.gmra.mxu0 %v1720
        %v1807 = vpop.f32.mrf.mxu0
        %v1808 = vadd.f32 %v1674, %v1807
        %v1809 = vpop.f32.mrf.mxu0
        %v1810 = vpop.f32.mrf.mxu0
        %v1811 = vadd.f32 %v1674, %v1810
        %v1812 = vpop.f32.mrf.mxu0
        %1813 = vmatprep.mubr.bf16.mxu0 0
        %1814 = vmatmul.mubr.bf16.gmra.mxu0 %v1723
        %v1815 = vpop.f32.mrf.mxu0
        %v1816 = vadd.f32 %v1674, %v1815
        %v1817 = vpop.f32.mrf.mxu0
        %v1818 = vpop.f32.mrf.mxu0
        %v1819 = vadd.f32 %v1674, %v1818
        %v1820 = vpop.f32.mrf.mxu0
        %1821 = vdwg.mxu0
        %v1822 = vxor.u32 %v1351, 2147483648
        %v1823 = vxor.u32 %v1354, 2147483648
        %v1824 = vxor.u32 %v1359, 2147483648
        %v1825 = vxor.u32 %v1362, 2147483648
        %v1826 = vxor.u32 %v1367, 2147483648
        %v1827 = vxor.u32 %v1370, 2147483648
        %v1828 = vxor.u32 %v1375, 2147483648
        %v1829 = vxor.u32 %v1378, 2147483648
        %v1830 = vxor.u32 %v1383, 2147483648
        %v1831 = vxor.u32 %v1386, 2147483648
        %v1832 = vxor.u32 %v1391, 2147483648
        %v1833 = vxor.u32 %v1394, 2147483648
        %v1834 = vxor.u32 %v1399, 2147483648
        %v1835 = vxor.u32 %v1402, 2147483648
        %v1836 = vxor.u32 %v1407, 2147483648
        %v1837 = vxor.u32 %v1410, 2147483648
        %v1838 = vmul.f32 %v1822, 1.442695
        %v1839 = vpow.pop %v1838
        %v1840 = vmul.f32 %v1823, 1.442695
        %v1841 = vpow.pop %v1840
        %v1842 = vmul.f32 %v1824, 1.442695
        %v1843 = vpow.pop %v1842
        %v1844 = vmul.f32 %v1825, 1.442695
        %v1845 = vpow.pop %v1844
        %v1846 = vmul.f32 %v1826, 1.442695
        %v1847 = vpow.pop %v1846
        %v1848 = vmul.f32 %v1827, 1.442695
        %v1849 = vpow.pop %v1848
        %v1850 = vmul.f32 %v1828, 1.442695
        %v1851 = vpow.pop %v1850
        %v1852 = vmul.f32 %v1829, 1.442695
        %v1853 = vpow.pop %v1852
        %v1854 = vmul.f32 %v1830, 1.442695
        %v1855 = vpow.pop %v1854
        %v1856 = vmul.f32 %v1831, 1.442695
        %v1857 = vpow.pop %v1856
        %v1858 = vmul.f32 %v1832, 1.442695
        %v1859 = vpow.pop %v1858
        %v1860 = vmul.f32 %v1833, 1.442695
        %v1861 = vpow.pop %v1860
        %v1862 = vmul.f32 %v1834, 1.442695
        %v1863 = vpow.pop %v1862
        %v1864 = vmul.f32 %v1835, 1.442695
        %v1865 = vpow.pop %v1864
        %v1866 = vmul.f32 %v1836, 1.442695
        %v1867 = vpow.pop %v1866
        %v1868 = vmul.f32 %v1837, 1.442695
        %v1869 = vpow.pop %v1868
        %v1870 = vadd.f32 %v1839, 1.0
        %v1871 = vadd.f32 %v1841, 1.0
        %v1872 = vadd.f32 %v1843, 1.0
        %v1873 = vadd.f32 %v1845, 1.0
        %v1874 = vadd.f32 %v1847, 1.0
        %v1875 = vadd.f32 %v1849, 1.0
        %v1876 = vadd.f32 %v1851, 1.0
        %v1877 = vadd.f32 %v1853, 1.0
        %v1878 = vadd.f32 %v1855, 1.0
        %v1879 = vadd.f32 %v1857, 1.0
        %v1880 = vadd.f32 %v1859, 1.0
        %v1881 = vadd.f32 %v1861, 1.0
        %v1882 = vadd.f32 %v1863, 1.0
        %v1883 = vadd.f32 %v1865, 1.0
        %v1884 = vadd.f32 %v1867, 1.0
        %v1885 = vadd.f32 %v1869, 1.0
        %v1886 = vrcp.pop %v1870
        %v1887 = vmul.f32 1.0, %v1886
        %v1888 = vrcp.pop %v1871
        %v1889 = vmul.f32 1.0, %v1888
        %v1890 = vrcp.pop %v1872
        %v1891 = vmul.f32 1.0, %v1890
        %v1892 = vrcp.pop %v1873
        %v1893 = vmul.f32 1.0, %v1892
        %v1894 = vrcp.pop %v1874
        %v1895 = vmul.f32 1.0, %v1894
        %v1896 = vrcp.pop %v1875
        %v1897 = vmul.f32 1.0, %v1896
        %v1898 = vrcp.pop %v1876
        %v1899 = vmul.f32 1.0, %v1898
        %v1900 = vrcp.pop %v1877
        %v1901 = vmul.f32 1.0, %v1900
        %v1902 = vrcp.pop %v1878
        %v1903 = vmul.f32 1.0, %v1902
        %v1904 = vrcp.pop %v1879
        %v1905 = vmul.f32 1.0, %v1904
        %v1906 = vrcp.pop %v1880
        %v1907 = vmul.f32 1.0, %v1906
        %v1908 = vrcp.pop %v1881
        %v1909 = vmul.f32 1.0, %v1908
        %v1910 = vrcp.pop %v1882
        %v1911 = vmul.f32 1.0, %v1910
        %v1912 = vrcp.pop %v1883
        %v1913 = vmul.f32 1.0, %v1912
        %v1914 = vrcp.pop %v1884
        %v1915 = vmul.f32 1.0, %v1914
        %v1916 = vrcp.pop %v1885
        %v1917 = vmul.f32 1.0, %v1916
        %v1918 = vmul.f32 %v1887, %v532
        %v1919 = vmul.f32 %v1889, %v533
        %v1920 = vmul.f32 %v1891, %v534
        %v1921 = vmul.f32 %v1893, %v535
        %v1922 = vmul.f32 %v1895, %v536
        %v1923 = vmul.f32 %v1897, %v537
        %v1924 = vmul.f32 %v1899, %v538
        %v1925 = vmul.f32 %v1901, %v539
        %v1926 = vmul.f32 %v1903, %v540
        %v1927 = vmul.f32 %v1905, %v541
        %v1928 = vmul.f32 %v1907, %v542
        %v1929 = vmul.f32 %v1909, %v543
        %v1930 = vmul.f32 %v1911, %v544
        %v1931 = vmul.f32 %v1913, %v545
        %v1932 = vmul.f32 %v1915, %v546
        %v1933 = vmul.f32 %v1917, %v547
        %v1934 = vstv %s530
        %v1935 = vmul.f32 %v1918, %v1934
        %v1936 = vmul.f32 %v1919, %v1934
        %v1937 = vmul.f32 %v1920, %v1934
        %v1938 = vmul.f32 %v1921, %v1934
        %v1939 = vmul.f32 %v1922, %v1934
        %v1940 = vmul.f32 %v1923, %v1934
        %v1941 = vmul.f32 %v1924, %v1934
        %v1942 = vmul.f32 %v1925, %v1934
        %v1943 = vmul.f32 %v1926, %v1934
        %v1944 = vmul.f32 %v1927, %v1934
        %v1945 = vmul.f32 %v1928, %v1934
        %v1946 = vmul.f32 %v1929, %v1934
        %v1947 = vmul.f32 %v1930, %v1934
        %v1948 = vmul.f32 %v1931, %v1934
        %v1949 = vmul.f32 %v1932, %v1934
        %v1950 = vmul.f32 %v1933, %v1934
        %v1951 = vstv %s531
        %v1952 = vmul.f32 %v1760, %v1951
        %v1953 = vmul.f32 %v1763, %v1951
        %v1954 = vmul.f32 %v1768, %v1951
        %v1955 = vmul.f32 %v1771, %v1951
        %v1956 = vmul.f32 %v1776, %v1951
        %v1957 = vmul.f32 %v1779, %v1951
        %v1958 = vmul.f32 %v1784, %v1951
        %v1959 = vmul.f32 %v1787, %v1951
        %v1960 = vmul.f32 %v1792, %v1951
        %v1961 = vmul.f32 %v1795, %v1951
        %v1962 = vmul.f32 %v1800, %v1951
        %v1963 = vmul.f32 %v1803, %v1951
        %v1964 = vmul.f32 %v1808, %v1951
        %v1965 = vmul.f32 %v1811, %v1951
        %v1966 = vmul.f32 %v1816, %v1951
        %v1967 = vmul.f32 %v1819, %v1951
        %v1968 = vadd.f32 %v1935, %v1952
        %v1969 = vadd.f32 %v1936, %v1953
        %v1970 = vadd.f32 %v1937, %v1954
        %v1971 = vadd.f32 %v1938, %v1955
        %v1972 = vadd.f32 %v1939, %v1956
        %v1973 = vadd.f32 %v1940, %v1957
        %v1974 = vadd.f32 %v1941, %v1958
        %v1975 = vadd.f32 %v1942, %v1959
        %v1976 = vadd.f32 %v1943, %v1960
        %v1977 = vadd.f32 %v1944, %v1961
        %v1978 = vadd.f32 %v1945, %v1962
        %v1979 = vadd.f32 %v1946, %v1963
        %v1980 = vadd.f32 %v1947, %v1964
        %v1981 = vadd.f32 %v1948, %v1965
        %v1982 = vadd.f32 %v1949, %v1966
        %v1983 = vadd.f32 %v1950, %v1967
        %1984 = vst.msk [vmem:[%s527] sm:$0xff] %vm786, %v1968
        %1985 = vst.msk [vmem:[%s527 + $0x8] sm:$0xff] %vm786, %v1969
        %1986 = vst.msk [vmem:[%s527 + $0x10] sm:$0xff] %vm786, %v1970
        %1987 = vst.msk [vmem:[%s527 + $0x18] sm:$0xff] %vm786, %v1971
        %1988 = vst.msk [vmem:[%s527 + $0x20] sm:$0xff] %vm786, %v1972
        %1989 = vst.msk [vmem:[%s527 + $0x28] sm:$0xff] %vm786, %v1973
        %1990 = vst.msk [vmem:[%s527 + $0x30] sm:$0xff] %vm786, %v1974
        %1991 = vst.msk [vmem:[%s527 + $0x38] sm:$0xff] %vm786, %v1975
        %1992 = vst.msk [vmem:[%s527 + $0x40] sm:$0xff] %vm786, %v1976
        %1993 = vst.msk [vmem:[%s527 + $0x48] sm:$0xff] %vm786, %v1977
        %1994 = vst.msk [vmem:[%s527 + $0x50] sm:$0xff] %vm786, %v1978
        %1995 = vst.msk [vmem:[%s527 + $0x58] sm:$0xff] %vm786, %v1979
        %1996 = vst.msk [vmem:[%s527 + $0x60] sm:$0xff] %vm786, %v1980
        %1997 = vst.msk [vmem:[%s527 + $0x68] sm:$0xff] %vm786, %v1981
        %1998 = vst.msk [vmem:[%s527 + $0x70] sm:$0xff] %vm786, %v1982
        %1999 = vst.msk [vmem:[%s527 + $0x78] sm:$0xff] %vm786, %v1983
        %s2000 = smul.u32 16, %s26
        %p2001 = scmp.lt.s32.totalorder %s2000, 31
        %s2002 = scalar_select %p2001, %s2000, 31
        %s2003 = smul.addr %s2002, 8
        %s2004 = scalar_lea.vmem %s14, %s2003
        // Predicated region
        $region81: #{tpu_custom_call.1} parent=75 // pred_check
          %p2005 = pneg %p353
        $region82: #{tpu_custom_call.1} parent=75 // pred_check_branch
          %2007 = sbr.rel (%p2005) target = $region84
        $region83: #{tpu_custom_call.1} parent=75 // pred_region
          %s2008 = smul.u32 16, %s26
        $region84: #{tpu_custom_call.1} parent=75 // pred_fallthru
          _
      $region76: #{tpu_custom_call.1} parent=5 // pred_fallthru
        _
      %p2009 = scmp.le.s32.totalorder 2, %s21
      // Predicated region
      $region85: #{tpu_custom_call.1} parent=5 // pred_check
        %p2010 = pneg %p2009
      $region86: #{tpu_custom_call.1} parent=5 // pred_check_branch
        %2012 = sbr.rel (%p2010) target = $region88
      $region87: #{tpu_custom_call.1} parent=5 // pred_region
        %s2013 = ssub.s32 %s21, 2
        // Predicated region
        $region89: #{tpu_custom_call.1} parent=87 // pred_check
          %p2014 = pneg %p359
        $region90: #{tpu_custom_call.1} parent=87 // pred_check_branch
          %2016 = sbr.rel (%p2014) target = $region92
        $region91: #{tpu_custom_call.1} parent=87 // pred_region
          %s2017 = smul.u32 16, %s27
          %p2018 = scmp.lt.s32.totalorder %s2017, 31
          %s2019 = scalar_select %p2018, %s2017, 31
          %s2020 = smul.addr %s2019, 8
          %s2021 = scalar_lea.vmem %s14, %s2020
        $region92: #{tpu_custom_call.1} parent=87 // pred_fallthru
          _
      $region88: #{tpu_custom_call.1} parent=5 // pred_fallthru
        _
    $region6: #{tpu_custom_call.1} parent=1 // loop_footer
      %s25 = sadd.s32 1, %s21
    $region7: #{tpu_custom_call.1} parent=1 // loop_footer_branch
      %20 = sbr.rel target = $region3
    $region8: #{tpu_custom_call.1} parent=1 // loop_exit
      _
    %2022 = vsyncpa [#allocation3], 1
    %s2023 = scalar_lea.sflag [#allocation3], 1
    %2024 = vsyncpa %s2023, 1

</llo_original>
